<compile_context>
chip_gen: v5e
topology: v5e:2x2
jax: 0.10.0
libtpu: 0.0.40
codegen_flags: <defaults>
</compile_context>

<pallas_src>
import jax
import jax.numpy as jnp
import numpy as np
from jax.experimental import pallas as pl
from jax.experimental.pallas import tpu as pltpu

# Layer geometry implied by the module (Linear expects 64*7*7 => 1x28x28 input)
PWE1, OH1, OW1, C1 = 16, 14, 14, 32   # conv1: padded phase row length 16 -> RO1=224
PWE2, OH2, OW2, C2 = 8, 7, 7, 64      # conv2: padded phase row length 8  -> RO2=56


def _round_up(n, m):
    return ((n + m - 1) // m) * m


def _pick_tb(batch, cap=8):
    """Largest batch-tile <= cap that divides `batch` and keeps >=2 grid steps
    (so both v7x TensorCores get work)."""
    tb = 1
    for cand in range(1, min(cap, batch) + 1):
        if batch % cand == 0 and batch // cand >= 2:
            tb = cand
    return tb


# ---------------------------------------------------------------------------
# Pallas kernels
# ---------------------------------------------------------------------------
def _make_conv_kernel(PWe, OH, Cin4, Cout, TB):
    """Fused 3x3 conv (pad=1) + bias + ReLU + 2x2 max-pool on a TB-image tile.

    ph_ref holds, per image, the 4 row/col-parity phases of the zero-padded
    input packed along the lane axis (4*Cin lanes) and flattened row-major
    over (phase_row, phase_col) with row length PWe.  For pool quadrant
    (dy,dx) and conv tap (ky,kx), the needed input is a static row slice of
    that packed block at one of only FOUR offsets {0, 1, PWe, PWe+1}; the tap
    weights were pre-scattered at init into one (4*Cin, 4*Cout) matrix per
    offset group with the 4 pool quadrants packed along the output axis.  So
    the whole conv for all 4 quadrants is 4 MXU matmuls per batch tile — no
    in-kernel im2col / gather / lane broadcasts at all.  Each output row block
    contains OH*PWe "extended" rows per image (garbage columns ox>=OW are
    handled downstream).
    """
    RO = OH * PWe                 # extended rows per image (multiple of 8)
    offs = (0, 1, PWe, PWe + 1)   # offset group g = 2*ra + cb

    def kernel(ph_ref, w_ref, b_ref, o_ref):
        # ph_ref: (TB, RPH, 4*Cin)  w_ref: (4, 4*Cin, 4*Cout)
        # b_ref : (1, Cout)         o_ref: (TB, RO, Cout)
        def group(g):
            xg = ph_ref[:, offs[g]:offs[g] + RO, :]        # (TB, RO, 4*Cin) view
            xg = xg.reshape(TB * RO, Cin4)                 # RO % 8 == 0: free merge
            return jnp.dot(xg, w_ref[g], preferred_element_type=jnp.float32)

        acc = group(0)
        for g in range(1, 4):
            acc = acc + group(g)                           # (TB*RO, 4*Cout)

        # max over the 4 pool quadrants (packed along lanes), then bias + ReLU.
        # relu(max_q(conv_q) + b) == maxpool(relu(conv + b)) exactly.
        y = jnp.maximum(
            jnp.maximum(acc[:, 0 * Cout:1 * Cout], acc[:, 1 * Cout:2 * Cout]),
            jnp.maximum(acc[:, 2 * Cout:3 * Cout], acc[:, 3 * Cout:4 * Cout]))
        y = jnp.maximum(y + b_ref[...], 0.0)
        o_ref[...] = y.reshape(TB, RO, Cout)

    return kernel


def _mlp_kernel(x_ref, w1_ref, b1_ref, w2_ref, b2_ref, o_ref):
    """Linear(3584->128, garbage rows zeroed in W1) + ReLU + Linear(128->10)."""
    h = jnp.dot(x_ref[...], w1_ref[...], preferred_element_type=jnp.float32) + b1_ref[...]
    h = jnp.maximum(h, 0.0)
    o_ref[...] = jnp.dot(h, w2_ref[...], preferred_element_type=jnp.float32) + b2_ref[...]


# ---------------------------------------------------------------------------
# pallas_call wrappers + the (single, fused) XLA glue pass per conv layer
# ---------------------------------------------------------------------------
def _pack_phases(x_nhwc, PWe, OH):
    """Zero-pad by 1px (to 2*PH x 2*PWe), split into the 4 row/col parity
    phases, flatten each row-major (row length PWe) and pack the 4 phases
    along the channel/lane axis -> (B, RPH, 4*C).  One fused XLA gather."""
    B, H, W, C = x_nhwc.shape
    PH = OH + 1                                   # H is even for this model
    RPH = _round_up(PH * PWe + 1, 8)              # +1 halo row for offset PWe+1
    xp = jnp.pad(x_nhwc, ((0, 0), (1, 2 * PH - H - 1), (1, 2 * PWe - W - 1), (0, 0)))
    ph = [xp[:, a::2, b::2, :].reshape(B, PH * PWe, C) for a in (0, 1) for b in (0, 1)]
    packed = jnp.concatenate(ph, axis=-1)         # (B, PH*PWe, 4*C), lane idx = 2a+b
    return jnp.pad(packed, ((0, 0), (0, RPH - PH * PWe), (0, 0)))


def conv_relu_pool(phases, w_pack, b_row, *, OH, PWe, Cout, TB):
    """3x3 conv (pad=1) + bias + ReLU + MaxPool(2), extended-row output."""
    B, RPH, Cin4 = phases.shape
    RO = OH * PWe
    return pl.pallas_call(
        _make_conv_kernel(PWe, OH, Cin4, Cout, TB),
        out_shape=jax.ShapeDtypeStruct((B, RO, Cout), jnp.float32),
        grid=(B // TB,),
        in_specs=[
            pl.BlockSpec((TB, RPH, Cin4), lambda i: (i, 0, 0)),
            pl.BlockSpec((4, Cin4, 4 * Cout), lambda i: (0, 0, 0)),   # resident
            pl.BlockSpec((1, Cout), lambda i: (0, 0)),                # resident
        ],
        out_specs=pl.BlockSpec((TB, RO, Cout), lambda i: (i, 0, 0)),
        compiler_params=pltpu.CompilerParams(dimension_semantics=("parallel",)),
    )(phases, w_pack, b_row)


def mlp_head(x_flat, w1, b1, w2, b2, block_m=256):
    Bn, K = x_flat.shape
    N1, N2 = w1.shape[1], w2.shape[1]
    bm = min(block_m, Bn)                         # 256 is VMEM-safe on v7x too
    return pl.pallas_call(
        _mlp_kernel,
        out_shape=jax.ShapeDtypeStruct((Bn, N2), jnp.float32),
        grid=(pl.cdiv(Bn, bm),),
        in_specs=[pl.BlockSpec((bm, K), lambda i: (i, 0)),
                  pl.BlockSpec((K, N1), lambda i: (0, 0)),   # W1 resident over M tiles
                  pl.BlockSpec((1, N1), lambda i: (0, 0)),
                  pl.BlockSpec((N1, N2), lambda i: (0, 0)),
                  pl.BlockSpec((1, N2), lambda i: (0, 0))],
        out_specs=pl.BlockSpec((bm, N2), lambda i: (i, 0)),
        compiler_params=pltpu.CompilerParams(dimension_semantics=("parallel",)),
    )(x_flat, w1, b1, w2, b2)


def cnn_forward(x_nchw, kp):
    """Pallas implementation of CNN.forward on NCHW float32 input (B,1,28,28)."""
    B = x_nchw.shape[0]
    TB = _pick_tb(B)
    x = jnp.transpose(x_nchw, (0, 2, 3, 1))                       # NCHW -> NHWC (Cin=1)

    ph1 = _pack_phases(x, PWE1, OH1)                              # (B, 248, 4)
    o1 = conv_relu_pool(ph1, kp["w1p"], kp["b1r"], OH=OH1, PWe=PWE1, Cout=C1, TB=TB)
    h1 = o1.reshape(B, OH1, PWE1, C1)[:, :, :OW1, :]              # (B,14,14,32)

    ph2 = _pack_phases(h1, PWE2, OH2)                             # (B, 72, 128)
    o2 = conv_relu_pool(ph2, kp["w2p"], kp["b2r"], OH=OH2, PWe=PWE2, Cout=C2, TB=TB)

    # (B, 56, 64) -> (B, 3584) is a contiguous (free) reshape; the garbage
    # extended column ox==7 is neutralized by zero rows in fw1e.
    flat = o2.reshape(B, OH2 * PWE2 * C2)
    return mlp_head(flat, kp["fw1e"], kp["fb1"], kp["fw2"], kp["fb2"])


# ---------------------------------------------------------------------------
# Deterministic parameter init (PyTorch-convention shapes) + kernel repacking
# ---------------------------------------------------------------------------
def _pack_conv_weight(w_oihw):
    """(Cout,Cin,3,3) torch conv weight -> (4, 4*Cin, 4*Cout): one matrix per
    row-offset group g=2*ra+cb, input rows indexed by (phase 2a+b, cin),
    output cols by (pool quadrant q=2*dy+dx, cout)."""
    w = np.asarray(w_oihw)
    Cout, Cin = w.shape[0], w.shape[1]
    w = np.transpose(w, (2, 3, 1, 0))                             # (ky, kx, Cin, Cout)
    wp = np.zeros((4, 4 * Cin, 4 * Cout), np.float32)
    for dy in (0, 1):
        for dx in (0, 1):
            q = 2 * dy + dx
            for ky in range(3):
                for kx in range(3):
                    ra, a = (dy + ky) // 2, (dy + ky) % 2
                    cb, b = (dx + kx) // 2, (dx + kx) % 2
                    g = 2 * ra + cb
                    wp[g, (2 * a + b) * Cin:(2 * a + b + 1) * Cin,
                          q * Cout:(q + 1) * Cout] = w[ky, kx]
    return jnp.asarray(wp)


def init_params(key):
    ks = jax.random.split(key, 8)
    raw = {
        "conv1_w": jax.random.normal(ks[0], (32, 1, 3, 3), jnp.float32) * 0.10,
        "conv1_b": jax.random.normal(ks[1], (32,), jnp.float32) * 0.10,
        "conv2_w": jax.random.normal(ks[2], (64, 32, 3, 3), jnp.float32) * 0.05,
        "conv2_b": jax.random.normal(ks[3], (64,), jnp.float32) * 0.05,
        "fc1_w": jax.random.normal(ks[4], (128, 64 * 7 * 7), jnp.float32) * 0.02,
        "fc1_b": jax.random.normal(ks[5], (128,), jnp.float32) * 0.02,
        "fc2_w": jax.random.normal(ks[6], (10, 128), jnp.float32) * 0.05,
        "fc2_b": jax.random.normal(ks[7], (10,), jnp.float32) * 0.05,
    }
    # torch flattens NCHW (c, oy, ox); our MLP input is the conv2 *extended*
    # output flattened (oy, ox_ext, c) with ox_ext in [0, 8).  Permute fc1's
    # weight rows once here and zero the rows hit by the garbage column.
    fw1 = np.asarray(raw["fc1_w"]).reshape(128, 64, 7, 7)
    fw1 = np.transpose(fw1, (2, 3, 1, 0))                         # (oy, ox, c, n)
    fw1e = np.zeros((OH2, PWE2, 64, 128), np.float32)
    fw1e[:, :OW2] = fw1
    fw1e = fw1e.reshape(OH2 * PWE2 * 64, 128)                     # (3584, 128)

    kp = {
        "w1p": _pack_conv_weight(raw["conv1_w"]),                 # (4,   4, 128)
        "b1r": raw["conv1_b"].reshape(1, 32),
        "w2p": _pack_conv_weight(raw["conv2_w"]),                 # (4, 128, 256)
        "b2r": raw["conv2_b"].reshape(1, 64),
        "fw1e": jnp.asarray(fw1e), "fb1": raw["fc1_b"].reshape(1, 128),
        "fw2": raw["fc2_w"].T, "fb2": raw["fc2_b"].reshape(1, 10),
    }
    return raw, kp


# ---------------------------------------------------------------------------
# Pure-JAX reference (mirrors the PyTorch module exactly)
# ---------------------------------------------------------------------------
def reference_forward(x_nchw, r):
    dn = ("NCHW", "OIHW", "NCHW")
    y = jax.lax.conv_general_dilated(x_nchw, r["conv1_w"], (1, 1),
                                     [(1, 1), (1, 1)], dimension_numbers=dn)
    y = jax.nn.relu(y + r["conv1_b"][None, :, None, None])
    y = jax.lax.reduce_window(y, -jnp.inf, jax.lax.max, (1, 1, 2, 2), (1, 1, 2, 2), "VALID")
    y = jax.lax.conv_general_dilated(y, r["conv2_w"], (1, 1),
                                     [(1, 1), (1, 1)], dimension_numbers=dn)
    y = jax.nn.relu(y + r["conv2_b"][None, :, None, None])
    y = jax.lax.reduce_window(y, -jnp.inf, jax.lax.max, (1, 1, 2, 2), (1, 1, 2, 2), "VALID")
    y = y.reshape(y.shape[0], -1)
    y = jax.nn.relu(y @ r["fc1_w"].T + r["fc1_b"])
    return y @ r["fc2_w"].T + r["fc2_b"]


if __name__ == "__main__":
    key = jax.random.PRNGKey(0)
    k_x, k_p = jax.random.split(key)
    # Input implied by the module: 1 channel, 28x28 (Linear expects 64*7*7).
    x = jax.random.normal(k_x, (2, 1, 28, 28), jnp.float32)

    raw_params, kernel_params = init_params(k_p)

    out = jax.block_until_ready(jax.jit(cnn_forward)(x, kernel_params))
    ref = jax.block_until_ready(reference_forward(x, raw_params))

    np.testing.assert_allclose(np.asarray(out), np.asarray(ref), rtol=1e-4, atol=1e-4)
    assert out.shape == (2, 10) and out.dtype == jnp.float32

    print("KERNEL_OK")
</pallas_src>

<mosaic_0001>
module attributes {stable_mosaic.version = 11 : i64} {
  func.func @kernel(%arg0: i32, %arg1: memref<1x248x4xf32, #tpu.memory_space<vmem>>, %arg2: memref<4x4x128xf32, #tpu.memory_space<vmem>>, %arg3: memref<1x32xf32, #tpu.memory_space<vmem>>, %arg4: memref<1x224x32xf32, #tpu.memory_space<vmem>>) attributes {dimension_semantics = [#tpu.dimension_semantics<parallel>], iteration_bounds = array<i64: 2>, scalar_prefetch = 0 : i64, scratch_operands = 0 : i64, tpu.core_type = #tpu.core_type<tc>, window_params = [{transform_indices = @transform_0, window_bounds = array<i64: 1, 248, 4>}, {pipeline_mode = #tpu.pipeline_mode<synchronous>, transform_indices = @transform_1, window_bounds = array<i64: 4, 4, 128>}, {pipeline_mode = #tpu.pipeline_mode<synchronous>, transform_indices = @transform_2, window_bounds = array<i64: 1, 32>}, {transform_indices = @transform_3, window_bounds = array<i64: 1, 224, 32>}]} {
    %c0 = arith.constant 0 : index
    %c0_0 = arith.constant 0 : index
    %c0_1 = arith.constant 0 : index
    %0 = vector.load %arg1[%c0, %c0_0, %c0_1] : memref<1x248x4xf32, #tpu.memory_space<vmem>>, vector<1x224x4xf32>
    %1 = vector.shape_cast %0 : vector<1x224x4xf32> to vector<224x4xf32>
    %c0_2 = arith.constant 0 : index
    %c0_3 = arith.constant 0 : index
    %c0_4 = arith.constant 0 : index
    %2 = vector.load %arg2[%c0_2, %c0_3, %c0_4] : memref<4x4x128xf32, #tpu.memory_space<vmem>>, vector<1x4x128xf32>
    %3 = vector.shape_cast %2 : vector<1x4x128xf32> to vector<4x128xf32>
    %cst = arith.constant dense<0.000000e+00> : vector<224x128xf32>
    %4 = tpu.matmul %1, %3, %cst {dimension_numbers = #tpu.dot_dimension_numbers<[1], [0], [0], [1], [0, 0, 1, 1], [], []>} : vector<224x4xf32>, vector<4x128xf32>, vector<224x128xf32> -> vector<224x128xf32>
    %c0_5 = arith.constant 0 : index
    %c1 = arith.constant 1 : index
    %c0_6 = arith.constant 0 : index
    %5 = vector.load %arg1[%c0_5, %c1, %c0_6] : memref<1x248x4xf32, #tpu.memory_space<vmem>>, vector<1x224x4xf32>
    %6 = vector.shape_cast %5 : vector<1x224x4xf32> to vector<224x4xf32>
    %c1_7 = arith.constant 1 : index
    %c0_8 = arith.constant 0 : index
    %c0_9 = arith.constant 0 : index
    %7 = vector.load %arg2[%c1_7, %c0_8, %c0_9] : memref<4x4x128xf32, #tpu.memory_space<vmem>>, vector<1x4x128xf32>
    %8 = vector.shape_cast %7 : vector<1x4x128xf32> to vector<4x128xf32>
    %cst_10 = arith.constant dense<0.000000e+00> : vector<224x128xf32>
    %9 = tpu.matmul %6, %8, %cst_10 {dimension_numbers = #tpu.dot_dimension_numbers<[1], [0], [0], [1], [0, 0, 1, 1], [], []>} : vector<224x4xf32>, vector<4x128xf32>, vector<224x128xf32> -> vector<224x128xf32>
    %10 = arith.addf %4, %9 : vector<224x128xf32>
    %c0_11 = arith.constant 0 : index
    %c16 = arith.constant 16 : index
    %c0_12 = arith.constant 0 : index
    %11 = vector.load %arg1[%c0_11, %c16, %c0_12] : memref<1x248x4xf32, #tpu.memory_space<vmem>>, vector<1x224x4xf32>
    %12 = vector.shape_cast %11 : vector<1x224x4xf32> to vector<224x4xf32>
    %c2 = arith.constant 2 : index
    %c0_13 = arith.constant 0 : index
    %c0_14 = arith.constant 0 : index
    %13 = vector.load %arg2[%c2, %c0_13, %c0_14] : memref<4x4x128xf32, #tpu.memory_space<vmem>>, vector<1x4x128xf32>
    %14 = vector.shape_cast %13 : vector<1x4x128xf32> to vector<4x128xf32>
    %cst_15 = arith.constant dense<0.000000e+00> : vector<224x128xf32>
    %15 = tpu.matmul %12, %14, %cst_15 {dimension_numbers = #tpu.dot_dimension_numbers<[1], [0], [0], [1], [0, 0, 1, 1], [], []>} : vector<224x4xf32>, vector<4x128xf32>, vector<224x128xf32> -> vector<224x128xf32>
    %16 = arith.addf %10, %15 : vector<224x128xf32>
    %c0_16 = arith.constant 0 : index
    %c17 = arith.constant 17 : index
    %c0_17 = arith.constant 0 : index
    %17 = vector.load %arg1[%c0_16, %c17, %c0_17] : memref<1x248x4xf32, #tpu.memory_space<vmem>>, vector<1x224x4xf32>
    %18 = vector.shape_cast %17 : vector<1x224x4xf32> to vector<224x4xf32>
    %c3 = arith.constant 3 : index
    %c0_18 = arith.constant 0 : index
    %c0_19 = arith.constant 0 : index
    %19 = vector.load %arg2[%c3, %c0_18, %c0_19] : memref<4x4x128xf32, #tpu.memory_space<vmem>>, vector<1x4x128xf32>
    %20 = vector.shape_cast %19 : vector<1x4x128xf32> to vector<4x128xf32>
    %cst_20 = arith.constant dense<0.000000e+00> : vector<224x128xf32>
    %21 = tpu.matmul %18, %20, %cst_20 {dimension_numbers = #tpu.dot_dimension_numbers<[1], [0], [0], [1], [0, 0, 1, 1], [], []>} : vector<224x4xf32>, vector<4x128xf32>, vector<224x128xf32> -> vector<224x128xf32>
    %22 = arith.addf %16, %21 : vector<224x128xf32>
    %23 = vector.extract_strided_slice %22 {offsets = [0, 0], sizes = [224, 32], strides = [1, 1]} : vector<224x128xf32> to vector<224x32xf32>
    %24 = vector.extract_strided_slice %22 {offsets = [0, 32], sizes = [224, 32], strides = [1, 1]} : vector<224x128xf32> to vector<224x32xf32>
    %25 = arith.maximumf %23, %24 : vector<224x32xf32>
    %26 = vector.extract_strided_slice %22 {offsets = [0, 64], sizes = [224, 32], strides = [1, 1]} : vector<224x128xf32> to vector<224x32xf32>
    %27 = vector.extract_strided_slice %22 {offsets = [0, 96], sizes = [224, 32], strides = [1, 1]} : vector<224x128xf32> to vector<224x32xf32>
    %28 = arith.maximumf %26, %27 : vector<224x32xf32>
    %29 = arith.maximumf %25, %28 : vector<224x32xf32>
    %c0_21 = arith.constant 0 : index
    %c0_22 = arith.constant 0 : index
    %30 = vector.load %arg3[%c0_21, %c0_22] : memref<1x32xf32, #tpu.memory_space<vmem>>, vector<1x32xf32>
    %31 = vector.broadcast %30 : vector<1x32xf32> to vector<224x32xf32>
    %32 = arith.addf %29, %31 : vector<224x32xf32>
    %cst_23 = arith.constant 0.000000e+00 : f32
    %33 = vector.broadcast %cst_23 : f32 to vector<224x32xf32>
    %34 = arith.maximumf %32, %33 : vector<224x32xf32>
    %35 = vector.shape_cast %34 : vector<224x32xf32> to vector<1x224x32xf32>
    %c0_24 = arith.constant 0 : index
    %c0_25 = arith.constant 0 : index
    %c0_26 = arith.constant 0 : index
    %36 = vector.load %arg4[%c0_24, %c0_25, %c0_26] : memref<1x224x32xf32, #tpu.memory_space<vmem>>, vector<1x224x32xf32>
    tpu.vector_store %arg4[%c0_24, %c0_25, %c0_26], %35 {strides = array<i32>} : memref<1x224x32xf32, #tpu.memory_space<vmem>>, vector<1x224x32xf32>,
    return
  }
  func.func @transform_0(%arg0: i32) -> (i32, i32, i32) {
    %c0_i32 = arith.constant 0 : i32
    %c0_i32_0 = arith.constant 0 : i32
    %c0_i32_1 = arith.constant 0 : i32
    return %arg0, %c0_i32, %c0_i32_0 : i32, i32, i32
  }
  func.func @transform_1(%arg0: i32) -> (i32, i32, i32) {
    %c0_i32 = arith.constant 0 : i32
    %c0_i32_0 = arith.constant 0 : i32
    %c0_i32_1 = arith.constant 0 : i32
    %c0_i32_2 = arith.constant 0 : i32
    return %c0_i32, %c0_i32_0, %c0_i32_1 : i32, i32, i32
  }
  func.func @transform_2(%arg0: i32) -> (i32, i32) {
    %c0_i32 = arith.constant 0 : i32
    %c0_i32_0 = arith.constant 0 : i32
    %c0_i32_1 = arith.constant 0 : i32
    return %c0_i32, %c0_i32_0 : i32, i32
  }
  func.func @transform_3(%arg0: i32) -> (i32, i32, i32) {
    %c0_i32 = arith.constant 0 : i32
    %c0_i32_0 = arith.constant 0 : i32
    %c0_i32_1 = arith.constant 0 : i32
    return %arg0, %c0_i32, %c0_i32_0 : i32, i32, i32
  }
}

module attributes {stable_mosaic.version = 11 : i64} {
  func.func @kernel(%arg0: i32, %arg1: memref<1x72x128xf32, #tpu.memory_space<vmem>>, %arg2: memref<4x128x256xf32, #tpu.memory_space<vmem>>, %arg3: memref<1x64xf32, #tpu.memory_space<vmem>>, %arg4: memref<1x56x64xf32, #tpu.memory_space<vmem>>) attributes {dimension_semantics = [#tpu.dimension_semantics<parallel>], iteration_bounds = array<i64: 2>, scalar_prefetch = 0 : i64, scratch_operands = 0 : i64, tpu.core_type = #tpu.core_type<tc>, window_params = [{transform_indices = @transform_0, window_bounds = array<i64: 1, 72, 128>}, {pipeline_mode = #tpu.pipeline_mode<synchronous>, transform_indices = @transform_1, window_bounds = array<i64: 4, 128, 256>}, {pipeline_mode = #tpu.pipeline_mode<synchronous>, transform_indices = @transform_2, window_bounds = array<i64: 1, 64>}, {transform_indices = @transform_3, window_bounds = array<i64: 1, 56, 64>}]} {
    %c0 = arith.constant 0 : index
    %c0_0 = arith.constant 0 : index
    %c0_1 = arith.constant 0 : index
    %0 = vector.load %arg1[%c0, %c0_0, %c0_1] : memref<1x72x128xf32, #tpu.memory_space<vmem>>, vector<1x56x128xf32>
    %1 = vector.shape_cast %0 : vector<1x56x128xf32> to vector<56x128xf32>
    %c0_2 = arith.constant 0 : index
    %c0_3 = arith.constant 0 : index
    %c0_4 = arith.constant 0 : index
    %2 = vector.load %arg2[%c0_2, %c0_3, %c0_4] : memref<4x128x256xf32, #tpu.memory_space<vmem>>, vector<1x128x256xf32>
    %3 = vector.shape_cast %2 : vector<1x128x256xf32> to vector<128x256xf32>
    %cst = arith.constant dense<0.000000e+00> : vector<56x256xf32>
    %4 = tpu.matmul %1, %3, %cst {dimension_numbers = #tpu.dot_dimension_numbers<[1], [0], [0], [1], [0, 0, 1, 1], [], []>} : vector<56x128xf32>, vector<128x256xf32>, vector<56x256xf32> -> vector<56x256xf32>
    %c0_5 = arith.constant 0 : index
    %c1 = arith.constant 1 : index
    %c0_6 = arith.constant 0 : index
    %5 = vector.load %arg1[%c0_5, %c1, %c0_6] : memref<1x72x128xf32, #tpu.memory_space<vmem>>, vector<1x56x128xf32>
    %6 = vector.shape_cast %5 : vector<1x56x128xf32> to vector<56x128xf32>
    %c1_7 = arith.constant 1 : index
    %c0_8 = arith.constant 0 : index
    %c0_9 = arith.constant 0 : index
    %7 = vector.load %arg2[%c1_7, %c0_8, %c0_9] : memref<4x128x256xf32, #tpu.memory_space<vmem>>, vector<1x128x256xf32>
    %8 = vector.shape_cast %7 : vector<1x128x256xf32> to vector<128x256xf32>
    %cst_10 = arith.constant dense<0.000000e+00> : vector<56x256xf32>
    %9 = tpu.matmul %6, %8, %cst_10 {dimension_numbers = #tpu.dot_dimension_numbers<[1], [0], [0], [1], [0, 0, 1, 1], [], []>} : vector<56x128xf32>, vector<128x256xf32>, vector<56x256xf32> -> vector<56x256xf32>
    %10 = arith.addf %4, %9 : vector<56x256xf32>
    %c0_11 = arith.constant 0 : index
    %c8 = arith.constant 8 : index
    %c0_12 = arith.constant 0 : index
    %11 = vector.load %arg1[%c0_11, %c8, %c0_12] : memref<1x72x128xf32, #tpu.memory_space<vmem>>, vector<1x56x128xf32>
    %12 = vector.shape_cast %11 : vector<1x56x128xf32> to vector<56x128xf32>
    %c2 = arith.constant 2 : index
    %c0_13 = arith.constant 0 : index
    %c0_14 = arith.constant 0 : index
    %13 = vector.load %arg2[%c2, %c0_13, %c0_14] : memref<4x128x256xf32, #tpu.memory_space<vmem>>, vector<1x128x256xf32>
    %14 = vector.shape_cast %13 : vector<1x128x256xf32> to vector<128x256xf32>
    %cst_15 = arith.constant dense<0.000000e+00> : vector<56x256xf32>
    %15 = tpu.matmul %12, %14, %cst_15 {dimension_numbers = #tpu.dot_dimension_numbers<[1], [0], [0], [1], [0, 0, 1, 1], [], []>} : vector<56x128xf32>, vector<128x256xf32>, vector<56x256xf32> -> vector<56x256xf32>
    %16 = arith.addf %10, %15 : vector<56x256xf32>
    %c0_16 = arith.constant 0 : index
    %c9 = arith.constant 9 : index
    %c0_17 = arith.constant 0 : index
    %17 = vector.load %arg1[%c0_16, %c9, %c0_17] : memref<1x72x128xf32, #tpu.memory_space<vmem>>, vector<1x56x128xf32>
    %18 = vector.shape_cast %17 : vector<1x56x128xf32> to vector<56x128xf32>
    %c3 = arith.constant 3 : index
    %c0_18 = arith.constant 0 : index
    %c0_19 = arith.constant 0 : index
    %19 = vector.load %arg2[%c3, %c0_18, %c0_19] : memref<4x128x256xf32, #tpu.memory_space<vmem>>, vector<1x128x256xf32>
    %20 = vector.shape_cast %19 : vector<1x128x256xf32> to vector<128x256xf32>
    %cst_20 = arith.constant dense<0.000000e+00> : vector<56x256xf32>
    %21 = tpu.matmul %18, %20, %cst_20 {dimension_numbers = #tpu.dot_dimension_numbers<[1], [0], [0], [1], [0, 0, 1, 1], [], []>} : vector<56x128xf32>, vector<128x256xf32>, vector<56x256xf32> -> vector<56x256xf32>
    %22 = arith.addf %16, %21 : vector<56x256xf32>
    %23 = vector.extract_strided_slice %22 {offsets = [0, 0], sizes = [56, 64], strides = [1, 1]} : vector<56x256xf32> to vector<56x64xf32>
    %24 = vector.extract_strided_slice %22 {offsets = [0, 64], sizes = [56, 64], strides = [1, 1]} : vector<56x256xf32> to vector<56x64xf32>
    %25 = arith.maximumf %23, %24 : vector<56x64xf32>
    %26 = vector.extract_strided_slice %22 {offsets = [0, 128], sizes = [56, 64], strides = [1, 1]} : vector<56x256xf32> to vector<56x64xf32>
    %27 = vector.extract_strided_slice %22 {offsets = [0, 192], sizes = [56, 64], strides = [1, 1]} : vector<56x256xf32> to vector<56x64xf32>
    %28 = arith.maximumf %26, %27 : vector<56x64xf32>
    %29 = arith.maximumf %25, %28 : vector<56x64xf32>
    %c0_21 = arith.constant 0 : index
    %c0_22 = arith.constant 0 : index
    %30 = vector.load %arg3[%c0_21, %c0_22] : memref<1x64xf32, #tpu.memory_space<vmem>>, vector<1x64xf32>
    %31 = vector.broadcast %30 : vector<1x64xf32> to vector<56x64xf32>
    %32 = arith.addf %29, %31 : vector<56x64xf32>
    %cst_23 = arith.constant 0.000000e+00 : f32
    %33 = vector.broadcast %cst_23 : f32 to vector<56x64xf32>
    %34 = arith.maximumf %32, %33 : vector<56x64xf32>
    %35 = vector.shape_cast %34 : vector<56x64xf32> to vector<1x56x64xf32>
    %c0_24 = arith.constant 0 : index
    %c0_25 = arith.constant 0 : index
    %c0_26 = arith.constant 0 : index
    %36 = vector.load %arg4[%c0_24, %c0_25, %c0_26] : memref<1x56x64xf32, #tpu.memory_space<vmem>>, vector<1x56x64xf32>
    tpu.vector_store %arg4[%c0_24, %c0_25, %c0_26], %35 {strides = array<i32>} : memref<1x56x64xf32, #tpu.memory_space<vmem>>, vector<1x56x64xf32>,
    return
  }
  func.func @transform_0(%arg0: i32) -> (i32, i32, i32) {
    %c0_i32 = arith.constant 0 : i32
    %c0_i32_0 = arith.constant 0 : i32
    %c0_i32_1 = arith.constant 0 : i32
    return %arg0, %c0_i32, %c0_i32_0 : i32, i32, i32
  }
  func.func @transform_1(%arg0: i32) -> (i32, i32, i32) {
    %c0_i32 = arith.constant 0 : i32
    %c0_i32_0 = arith.constant 0 : i32
    %c0_i32_1 = arith.constant 0 : i32
    %c0_i32_2 = arith.constant 0 : i32
    return %c0_i32, %c0_i32_0, %c0_i32_1 : i32, i32, i32
  }
  func.func @transform_2(%arg0: i32) -> (i32, i32) {
    %c0_i32 = arith.constant 0 : i32
    %c0_i32_0 = arith.constant 0 : i32
    %c0_i32_1 = arith.constant 0 : i32
    return %c0_i32, %c0_i32_0 : i32, i32
  }
  func.func @transform_3(%arg0: i32) -> (i32, i32, i32) {
    %c0_i32 = arith.constant 0 : i32
    %c0_i32_0 = arith.constant 0 : i32
    %c0_i32_1 = arith.constant 0 : i32
    return %arg0, %c0_i32, %c0_i32_0 : i32, i32, i32
  }
}

module attributes {stable_mosaic.version = 11 : i64} {
  func.func @_mlp_kernel(%arg0: i32, %arg1: memref<2x3584xf32, #tpu.memory_space<vmem>>, %arg2: memref<3584x128xf32, #tpu.memory_space<vmem>>, %arg3: memref<1x128xf32, #tpu.memory_space<vmem>>, %arg4: memref<128x10xf32, #tpu.memory_space<vmem>>, %arg5: memref<1x10xf32, #tpu.memory_space<vmem>>, %arg6: memref<2x10xf32, #tpu.memory_space<vmem>>) attributes {dimension_semantics = [#tpu.dimension_semantics<parallel>], iteration_bounds = array<i64: 1>, scalar_prefetch = 0 : i64, scratch_operands = 0 : i64, tpu.core_type = #tpu.core_type<tc>, window_params = [{transform_indices = @transform_0, window_bounds = array<i64: 2, 3584>}, {pipeline_mode = #tpu.pipeline_mode<synchronous>, transform_indices = @transform_1, window_bounds = array<i64: 3584, 128>}, {pipeline_mode = #tpu.pipeline_mode<synchronous>, transform_indices = @transform_2, window_bounds = array<i64: 1, 128>}, {pipeline_mode = #tpu.pipeline_mode<synchronous>, transform_indices = @transform_3, window_bounds = array<i64: 128, 10>}, {pipeline_mode = #tpu.pipeline_mode<synchronous>, transform_indices = @transform_4, window_bounds = array<i64: 1, 10>}, {transform_indices = @transform_5, window_bounds = array<i64: 2, 10>}]} {
    %c0 = arith.constant 0 : index
    %c0_0 = arith.constant 0 : index
    %0 = vector.load %arg1[%c0, %c0_0] : memref<2x3584xf32, #tpu.memory_space<vmem>>, vector<2x3584xf32>
    %c0_1 = arith.constant 0 : index
    %c0_2 = arith.constant 0 : index
    %1 = vector.load %arg2[%c0_1, %c0_2] : memref<3584x128xf32, #tpu.memory_space<vmem>>, vector<3584x128xf32>
    %cst = arith.constant dense<0.000000e+00> : vector<2x128xf32>
    %2 = tpu.matmul %0, %1, %cst {dimension_numbers = #tpu.dot_dimension_numbers<[1], [0], [0], [1], [0, 0, 1, 1], [], []>} : vector<2x3584xf32>, vector<3584x128xf32>, vector<2x128xf32> -> vector<2x128xf32>
    %c0_3 = arith.constant 0 : index
    %c0_4 = arith.constant 0 : index
    %3 = vector.load %arg3[%c0_3, %c0_4] : memref<1x128xf32, #tpu.memory_space<vmem>>, vector<1x128xf32>
    %4 = vector.broadcast %3 : vector<1x128xf32> to vector<2x128xf32>
    %5 = arith.addf %2, %4 : vector<2x128xf32>
    %cst_5 = arith.constant 0.000000e+00 : f32
    %6 = vector.broadcast %cst_5 : f32 to vector<2x128xf32>
    %7 = arith.maximumf %5, %6 : vector<2x128xf32>
    %c0_6 = arith.constant 0 : index
    %c0_7 = arith.constant 0 : index
    %8 = vector.load %arg4[%c0_6, %c0_7] : memref<128x10xf32, #tpu.memory_space<vmem>>, vector<128x10xf32>
    %cst_8 = arith.constant dense<0.000000e+00> : vector<2x10xf32>
    %9 = tpu.matmul %7, %8, %cst_8 {dimension_numbers = #tpu.dot_dimension_numbers<[1], [0], [0], [1], [0, 0, 1, 1], [], []>} : vector<2x128xf32>, vector<128x10xf32>, vector<2x10xf32> -> vector<2x10xf32>
    %c0_9 = arith.constant 0 : index
    %c0_10 = arith.constant 0 : index
    %10 = vector.load %arg5[%c0_9, %c0_10] : memref<1x10xf32, #tpu.memory_space<vmem>>, vector<1x10xf32>
    %11 = vector.broadcast %10 : vector<1x10xf32> to vector<2x10xf32>
    %12 = arith.addf %9, %11 : vector<2x10xf32>
    %c0_11 = arith.constant 0 : index
    %c0_12 = arith.constant 0 : index
    %13 = vector.load %arg6[%c0_11, %c0_12] : memref<2x10xf32, #tpu.memory_space<vmem>>, vector<2x10xf32>
    tpu.vector_store %arg6[%c0_11, %c0_12], %12 {strides = array<i32>} : memref<2x10xf32, #tpu.memory_space<vmem>>, vector<2x10xf32>,
    return
  }
  func.func @transform_0(%arg0: i32) -> (i32, i32) {
    %c0_i32 = arith.constant 0 : i32
    %c0_i32_0 = arith.constant 0 : i32
    return %arg0, %c0_i32 : i32, i32
  }
  func.func @transform_1(%arg0: i32) -> (i32, i32) {
    %c0_i32 = arith.constant 0 : i32
    %c0_i32_0 = arith.constant 0 : i32
    %c0_i32_1 = arith.constant 0 : i32
    return %c0_i32, %c0_i32_0 : i32, i32
  }
  func.func @transform_2(%arg0: i32) -> (i32, i32) {
    %c0_i32 = arith.constant 0 : i32
    %c0_i32_0 = arith.constant 0 : i32
    %c0_i32_1 = arith.constant 0 : i32
    return %c0_i32, %c0_i32_0 : i32, i32
  }
  func.func @transform_3(%arg0: i32) -> (i32, i32) {
    %c0_i32 = arith.constant 0 : i32
    %c0_i32_0 = arith.constant 0 : i32
    %c0_i32_1 = arith.constant 0 : i32
    return %c0_i32, %c0_i32_0 : i32, i32
  }
  func.func @transform_4(%arg0: i32) -> (i32, i32) {
    %c0_i32 = arith.constant 0 : i32
    %c0_i32_0 = arith.constant 0 : i32
    %c0_i32_1 = arith.constant 0 : i32
    return %c0_i32, %c0_i32_0 : i32, i32
  }
  func.func @transform_5(%arg0: i32) -> (i32, i32) {
    %c0_i32 = arith.constant 0 : i32
    %c0_i32_0 = arith.constant 0 : i32
    return %arg0, %c0_i32 : i32, i32
  }
}

</mosaic_0001>

<llo_original>
// kernel: cnn_forward.4
$region0: #{cnn_forward.4}
  #allocation0 [shape = 'u32[]', space=smem, size = 0x4, offset = 0x4, fixed_abs, tag = 'smem constant byte address 0x4 - core index']
  #allocation1 [shape = 'u32[72,128]{1,0:T(1,128)}', space=vmem, size = 0x9000, scoped, tag = 'internal scratch']
  %s0 = inlined_call_operand.vmem [shape: f32[2,72,128], index: 0, kind: input, shape index: {}]
  %s1 = inlined_call_operand.vmem [shape: f32[4,128,256], index: 1, kind: input, shape index: {}]
  %s2 = inlined_call_operand.vmem [shape: f32[1,64], index: 2, kind: input, shape index: {}]
  %s3 = inlined_call_operand.vmem [shape: f32[2,56,64], index: 3, kind: output, shape index: {}]
  %s4 = sld [smem:[#allocation0]]
  $region45: #{cnn_forward.4} parent=0
    _
  %s6 = ssub.s32 1, %s4
  %s7 = scalar_select 0, %s6, %s4
  loop: start=0, step=1, limit=4
  $region2: #{cnn_forward.4} parent=0 // loop_pre_header
    _
  $region3: #{cnn_forward.4} parent=0 // loop_header
    %s9 = sphi 0, %s13
    %p10 = scmp.ge.s32.totalorder %s9, 4
    %s19 = sphi 0, %s21
    %s22 = sphi 0, %s19
    %s23 = sphi 0, %s22
    %s39 = sphi 0, %s23
    %s43 = sphi 0, %s43
    %s45 = sphi 0, %s43
    %s46 = sphi 0, %s45
    %s60 = sphi 0, %s46
    %s64 = sphi 0, %s64
    %s66 = sphi 0, %s64
    %s67 = sphi 0, %s66
    %s81 = sphi 0, %s67
    %s87 = sphi 0, %s89
    %s90 = sphi 0, %s87
    %s91 = sphi 0, %s90
    %s107 = sphi 0, %s91
  $region4: #{cnn_forward.4} parent=0 // loop_header_branch
    %12 = sbr.rel (%p10) target = $region8
  $region5: #{cnn_forward.4} parent=0 // loop_body
    %s14 = ssub.s32 %s9, 1
    %s15 = ssub.s32 %s9, 2
    %s16 = sadd.s32 %s9, 1
    %s17 = ssub.s32 %s9, %s16
    %p18 = scmp.eq.s32.totalorder %s17, 0
    %s20 = sadd.s32 %s19, 1
    %s21 = scalar_select %p18, %s19, %s20
    %p24 = pneg %p18
    %p25 = scmp.eq.s32.totalorder %s9, 1
    %p26 = por %p24, %p25
    %p27 = scmp.ne.s32.totalorder %s19, %s22
    %p28 = scmp.eq.s32.totalorder %s9, 0
    %p29 = por %p27, %p28
    %p30 = scmp.ne.s32.totalorder %s19, %s22
    %p31 = scmp.eq.s32.totalorder %s14, 1
    %p32 = por %p30, %p31
    %p33 = scmp.ne.s32.totalorder %s22, %s23
    %p34 = scmp.eq.s32.totalorder %s14, 0
    %p35 = por %p33, %p34
    %p36 = scmp.ne.s32.totalorder %s22, %s23
    %p37 = scmp.eq.s32.totalorder %s15, 1
    %p38 = por %p36, %p37
    %p40 = scmp.ne.s32.totalorder %s23, %s39
    %p41 = scmp.eq.s32.totalorder %s15, 0
    %p42 = por %p40, %p41
    %s44 = sadd.s32 %s43, 1
    %p47 = scmp.eq.s32.totalorder %s9, 1
    %p48 = scmp.ne.s32.totalorder %s43, %s45
    %p49 = scmp.eq.s32.totalorder %s9, 0
    %p50 = por %p48, %p49
    %p51 = scmp.ne.s32.totalorder %s43, %s45
    %p52 = scmp.eq.s32.totalorder %s14, 1
    %p53 = por %p51, %p52
    %p54 = scmp.ne.s32.totalorder %s45, %s46
    %p55 = scmp.eq.s32.totalorder %s14, 0
    %p56 = por %p54, %p55
    %p57 = scmp.ne.s32.totalorder %s45, %s46
    %p58 = scmp.eq.s32.totalorder %s15, 1
    %p59 = por %p57, %p58
    %p61 = scmp.ne.s32.totalorder %s46, %s60
    %p62 = scmp.eq.s32.totalorder %s15, 0
    %p63 = por %p61, %p62
    %s65 = sadd.s32 %s64, 1
    %p68 = scmp.eq.s32.totalorder %s9, 1
    %p69 = scmp.ne.s32.totalorder %s64, %s66
    %p70 = scmp.eq.s32.totalorder %s9, 0
    %p71 = por %p69, %p70
    %p72 = scmp.ne.s32.totalorder %s64, %s66
    %p73 = scmp.eq.s32.totalorder %s14, 1
    %p74 = por %p72, %p73
    %p75 = scmp.ne.s32.totalorder %s66, %s67
    %p76 = scmp.eq.s32.totalorder %s14, 0
    %p77 = por %p75, %p76
    %p78 = scmp.ne.s32.totalorder %s66, %s67
    %p79 = scmp.eq.s32.totalorder %s15, 1
    %p80 = por %p78, %p79
    %p82 = scmp.ne.s32.totalorder %s67, %s81
    %p83 = scmp.eq.s32.totalorder %s15, 0
    %p84 = por %p82, %p83
    %s85 = ssub.s32 %s9, %s16
    %p86 = scmp.eq.s32.totalorder %s85, 0
    %s88 = sadd.s32 %s87, 1
    %s89 = scalar_select %p86, %s87, %s88
    %p92 = pneg %p86
    %p93 = scmp.eq.s32.totalorder %s9, 1
    %p94 = por %p92, %p93
    %p95 = scmp.ne.s32.totalorder %s87, %s90
    %p96 = scmp.eq.s32.totalorder %s9, 0
    %p97 = por %p95, %p96
    %p98 = scmp.ne.s32.totalorder %s87, %s90
    %p99 = scmp.eq.s32.totalorder %s14, 1
    %p100 = por %p98, %p99
    %p101 = scmp.ne.s32.totalorder %s90, %s91
    %p102 = scmp.eq.s32.totalorder %s14, 0
    %p103 = por %p101, %p102
    %p104 = scmp.ne.s32.totalorder %s90, %s91
    %p105 = scmp.eq.s32.totalorder %s15, 1
    %p106 = por %p104, %p105
    %p108 = scmp.ne.s32.totalorder %s91, %s107
    %p109 = scmp.eq.s32.totalorder %s15, 0
    %p110 = por %p108, %p109
    %p111 = scmp.le.s32.totalorder 1, %s9
    %p112 = scmp.lt.s32.totalorder %s9, 3
    %p113 = pnand %p111, %p112
    %p114 = pneg %p113
    // Predicated region
    $region9: #{cnn_forward.4} parent=5 // pred_check
      _
    $region10: #{cnn_forward.4} parent=5 // pred_check_branch
      %116 = sbr.rel (%p113) target = $region12
    $region11: #{cnn_forward.4} parent=5 // pred_region
      %s117 = ssub.s32 %s9, 1
      // Predicated region
      $region13: #{cnn_forward.4} parent=11 // pred_check
        %p118 = pneg %p56
      $region14: #{cnn_forward.4} parent=11 // pred_check_branch
        %120 = sbr.rel (%p118) target = $region16
      $region15: #{cnn_forward.4} parent=11 // pred_region
        _
      $region16: #{cnn_forward.4} parent=11 // pred_fallthru
        _
      // Predicated region
      $region17: #{cnn_forward.4} parent=11 // pred_check
        %p121 = pneg %p77
      $region18: #{cnn_forward.4} parent=11 // pred_check_branch
        %123 = sbr.rel (%p121) target = $region20
      $region19: #{cnn_forward.4} parent=11 // pred_region
        _
      $region20: #{cnn_forward.4} parent=11 // pred_fallthru
        _
    $region12: #{cnn_forward.4} parent=5 // pred_fallthru
      _
    %p124 = scmp.lt.s32.totalorder %s9, 2
    // Predicated region
    $region21: #{cnn_forward.4} parent=5 // pred_check
      %p125 = pneg %p124
    $region22: #{cnn_forward.4} parent=5 // pred_check_branch
      %127 = sbr.rel (%p125) target = $region24
    $region23: #{cnn_forward.4} parent=5 // pred_region
      // Predicated region
      $region25: #{cnn_forward.4} parent=23 // pred_check
        %p128 = pneg %p29
      $region26: #{cnn_forward.4} parent=23 // pred_check_branch
        %130 = sbr.rel (%p128) target = $region28
      $region27: #{cnn_forward.4} parent=23 // pred_region
        %p131 = scmp.lt.s32.totalorder %s9, 1
        %s132 = scalar_select %p131, %s9, 1
        %s133 = smul.addr %s132, 9
        %s134 = smul.addr %s133, 8
        %s135 = scalar_lea.vmem %s0, %s134
      $region28: #{cnn_forward.4} parent=23 // pred_fallthru
        _
    $region24: #{cnn_forward.4} parent=5 // pred_fallthru
      _
    %p136 = scmp.le.s32.totalorder 1, %s9
    %p137 = scmp.lt.s32.totalorder %s9, 3
    %p138 = pnand %p136, %p137
    %p139 = pneg %p138
    // Predicated region
    $region29: #{cnn_forward.4} parent=5 // pred_check
      _
    $region30: #{cnn_forward.4} parent=5 // pred_check_branch
      %141 = sbr.rel (%p138) target = $region32
    $region31: #{cnn_forward.4} parent=5 // pred_region
      %s142 = ssub.s32 %s9, 1
      %p143 = scmp.lt.s32.totalorder %s14, 1
      %s144 = scalar_select %p143, %s14, 1
      %s145 = smul.addr %s144, 9
      %s146 = smul.addr %s145, 8
      %s147 = scalar_lea.vmem %s0, %s146
      %p148 = pneg %p35
      %p149 = pneg %p32
      %p150 = pneg %p56
      %p151 = pneg %p53
      %p152 = pneg %p77
      %p153 = pneg %p74
      %p154 = pneg %p103
      %p155 = pneg %p100
      %p156 = scmp.lt.s32.totalorder %s14, 1
      %s157 = scalar_select %p156, %s14, 1
      %s158 = smul.addr %s157, 7
      %s159 = smul.addr %s158, 8
      %s160 = scalar_lea.vmem %s3, %s159
      %p161 = scmp.lt.s32.totalorder %s14, 1
      %s162 = scalar_select %p161, %s14, 1
      %s163 = smul.addr %s162, 9
      %s164 = smul.addr %s163, 8
      %s165 = scalar_lea.vmem %s0, %s164
      %p166 = scmp.lt.s32.totalorder %s14, 1
      %s167 = scalar_select %p166, %s14, 1
      %s168 = smul.addr %s167, 7
      %s169 = smul.addr %s168, 8
      %s170 = scalar_lea.vmem %s3, %s169
      %v171 = vld [vmem:[%s165] sm:$0xff]
      %v172 = vld [vmem:[%s165 + $0x8] sm:$0xff]
      %v173 = vld [vmem:[%s165 + $0x10] sm:$0xff]
      %v174 = vld [vmem:[%s165 + $0x18] sm:$0xff]
      %v175 = vld [vmem:[%s165 + $0x20] sm:$0xff]
      %v176 = vld [vmem:[%s165 + $0x28] sm:$0xff]
      %v177 = vld [vmem:[%s165 + $0x30] sm:$0xff]
      %v178 = vld [vmem:[%s1] sm:$0xff]
      %v179 = vld [vmem:[%s1 + $0x8] sm:$0xff]
      %v180 = vld [vmem:[%s1 + $0x10] sm:$0xff]
      %v181 = vld [vmem:[%s1 + $0x18] sm:$0xff]
      %v182 = vld [vmem:[%s1 + $0x20] sm:$0xff]
      %v183 = vld [vmem:[%s1 + $0x28] sm:$0xff]
      %v184 = vld [vmem:[%s1 + $0x30] sm:$0xff]
      %v185 = vld [vmem:[%s1 + $0x38] sm:$0xff]
      %v186 = vld [vmem:[%s1 + $0x40] sm:$0xff]
      %v187 = vld [vmem:[%s1 + $0x48] sm:$0xff]
      %v188 = vld [vmem:[%s1 + $0x50] sm:$0xff]
      %v189 = vld [vmem:[%s1 + $0x58] sm:$0xff]
      %v190 = vld [vmem:[%s1 + $0x60] sm:$0xff]
      %v191 = vld [vmem:[%s1 + $0x68] sm:$0xff]
      %v192 = vld [vmem:[%s1 + $0x70] sm:$0xff]
      %v193 = vld [vmem:[%s1 + $0x78] sm:$0xff]
      %v194 = vld [vmem:[%s1 + $0x80] sm:$0xff]
      %v195 = vld [vmem:[%s1 + $0x88] sm:$0xff]
      %v196 = vld [vmem:[%s1 + $0x90] sm:$0xff]
      %v197 = vld [vmem:[%s1 + $0x98] sm:$0xff]
      %v198 = vld [vmem:[%s1 + $0xa0] sm:$0xff]
      %v199 = vld [vmem:[%s1 + $0xa8] sm:$0xff]
      %v200 = vld [vmem:[%s1 + $0xb0] sm:$0xff]
      %v201 = vld [vmem:[%s1 + $0xb8] sm:$0xff]
      %v202 = vld [vmem:[%s1 + $0xc0] sm:$0xff]
      %v203 = vld [vmem:[%s1 + $0xc8] sm:$0xff]
      %v204 = vld [vmem:[%s1 + $0xd0] sm:$0xff]
      %v205 = vld [vmem:[%s1 + $0xd8] sm:$0xff]
      %v206 = vld [vmem:[%s1 + $0xe0] sm:$0xff]
      %v207 = vld [vmem:[%s1 + $0xe8] sm:$0xff]
      %v208 = vld [vmem:[%s1 + $0xf0] sm:$0xff]
      %v209 = vld [vmem:[%s1 + $0xf8] sm:$0xff]
      %v210 = vld [vmem:[%s165 + $0x1] sm:$0xff]
      %v211 = vld [vmem:[%s165 + $0x9] sm:$0xff]
      %v212 = vld [vmem:[%s165 + $0x11] sm:$0xff]
      %v213 = vld [vmem:[%s165 + $0x19] sm:$0xff]
      %v214 = vld [vmem:[%s165 + $0x21] sm:$0xff]
      %v215 = vld [vmem:[%s165 + $0x29] sm:$0xff]
      %v216 = vld [vmem:[%s165 + $0x31] sm:$0xff]
      %s217 = scalar_lea.vmem %s1, 256
      %v218 = vld [vmem:[%s217] sm:$0xff]
      %v219 = vld [vmem:[%s217 + $0x8] sm:$0xff]
      %v220 = vld [vmem:[%s217 + $0x10] sm:$0xff]
      %v221 = vld [vmem:[%s217 + $0x18] sm:$0xff]
      %v222 = vld [vmem:[%s217 + $0x20] sm:$0xff]
      %v223 = vld [vmem:[%s217 + $0x28] sm:$0xff]
      %v224 = vld [vmem:[%s217 + $0x30] sm:$0xff]
      %v225 = vld [vmem:[%s217 + $0x38] sm:$0xff]
      %v226 = vld [vmem:[%s217 + $0x40] sm:$0xff]
      %v227 = vld [vmem:[%s217 + $0x48] sm:$0xff]
      %v228 = vld [vmem:[%s217 + $0x50] sm:$0xff]
      %v229 = vld [vmem:[%s217 + $0x58] sm:$0xff]
      %v230 = vld [vmem:[%s217 + $0x60] sm:$0xff]
      %v231 = vld [vmem:[%s217 + $0x68] sm:$0xff]
      %v232 = vld [vmem:[%s217 + $0x70] sm:$0xff]
      %v233 = vld [vmem:[%s217 + $0x78] sm:$0xff]
      %v234 = vld [vmem:[%s217 + $0x80] sm:$0xff]
      %v235 = vld [vmem:[%s217 + $0x88] sm:$0xff]
      %v236 = vld [vmem:[%s217 + $0x90] sm:$0xff]
      %v237 = vld [vmem:[%s217 + $0x98] sm:$0xff]
      %v238 = vld [vmem:[%s217 + $0xa0] sm:$0xff]
      %v239 = vld [vmem:[%s217 + $0xa8] sm:$0xff]
      %v240 = vld [vmem:[%s217 + $0xb0] sm:$0xff]
      %v241 = vld [vmem:[%s217 + $0xb8] sm:$0xff]
      %v242 = vld [vmem:[%s217 + $0xc0] sm:$0xff]
      %v243 = vld [vmem:[%s217 + $0xc8] sm:$0xff]
      %v244 = vld [vmem:[%s217 + $0xd0] sm:$0xff]
      %v245 = vld [vmem:[%s217 + $0xd8] sm:$0xff]
      %v246 = vld [vmem:[%s217 + $0xe0] sm:$0xff]
      %v247 = vld [vmem:[%s217 + $0xe8] sm:$0xff]
      %v248 = vld [vmem:[%s217 + $0xf0] sm:$0xff]
      %v249 = vld [vmem:[%s217 + $0xf8] sm:$0xff]
      %250 = vmatpush.msra.mxu0 %v248
      %251 = vmatpush.msra.mxu0 %v246
      %252 = vmatpush.msra.mxu0 %v244
      %253 = vmatpush.msra.mxu0 %v242
      %254 = vmatpush.msra.mxu0 %v240
      %255 = vmatpush.msra.mxu0 %v238
      %256 = vmatpush.msra.mxu0 %v236
      %257 = vmatpush.msra.mxu0 %v234
      %258 = vmatpush.msra.mxu0 %v232
      %259 = vmatpush.msra.mxu0 %v230
      %260 = vmatpush.msra.mxu0 %v228
      %261 = vmatpush.msra.mxu0 %v226
      %262 = vmatpush.msra.mxu0 %v224
      %263 = vmatpush.msra.mxu0 %v222
      %264 = vmatpush.msra.mxu0 %v220
      %265 = vmatpush.msra.mxu0 %v218
      %266 = vmatmul.f32.gmra.mxu0 %v210
      %v267 = vpop.f32.mrf.mxu0
      %v268 = vadd.f32 0.0, %v267
      %269 = vmatmul.f32.gmra.mxu0 %v211
      %v270 = vpop.f32.mrf.mxu0
      %v271 = vadd.f32 0.0, %v270
      %272 = vmatmul.f32.gmra.mxu0 %v212
      %v273 = vpop.f32.mrf.mxu0
      %v274 = vadd.f32 0.0, %v273
      %275 = vmatmul.f32.gmra.mxu0 %v213
      %v276 = vpop.f32.mrf.mxu0
      %v277 = vadd.f32 0.0, %v276
      %278 = vmatmul.f32.gmra.mxu0 %v214
      %v279 = vpop.f32.mrf.mxu0
      %v280 = vadd.f32 0.0, %v279
      %281 = vmatmul.f32.gmra.mxu0 %v215
      %v282 = vpop.f32.mrf.mxu0
      %v283 = vadd.f32 0.0, %v282
      %284 = vmatmul.f32.gmra.mxu0 %v216
      %v285 = vpop.f32.mrf.mxu0
      %v286 = vadd.f32 0.0, %v285
      %287 = vdwg.mxu0
      %288 = vmatpush.msra.mxu0 %v249
      %289 = vmatpush.msra.mxu0 %v247
      %290 = vmatpush.msra.mxu0 %v245
      %291 = vmatpush.msra.mxu0 %v243
      %292 = vmatpush.msra.mxu0 %v241
      %293 = vmatpush.msra.mxu0 %v239
      %294 = vmatpush.msra.mxu0 %v237
      %295 = vmatpush.msra.mxu0 %v235
      %296 = vmatpush.msra.mxu0 %v233
      %297 = vmatpush.msra.mxu0 %v231
      %298 = vmatpush.msra.mxu0 %v229
      %299 = vmatpush.msra.mxu0 %v227
      %300 = vmatpush.msra.mxu0 %v225
      %301 = vmatpush.msra.mxu0 %v223
      %302 = vmatpush.msra.mxu0 %v221
      %303 = vmatpush.msra.mxu0 %v219
      %304 = vmatmul.f32.gmra.mxu0 %v210
      %v305 = vpop.f32.mrf.mxu0
      %v306 = vadd.f32 0.0, %v305
      %307 = vmatmul.f32.gmra.mxu0 %v211
      %v308 = vpop.f32.mrf.mxu0
      %v309 = vadd.f32 0.0, %v308
      %310 = vmatmul.f32.gmra.mxu0 %v212
      %v311 = vpop.f32.mrf.mxu0
      %v312 = vadd.f32 0.0, %v311
      %313 = vmatmul.f32.gmra.mxu0 %v213
      %v314 = vpop.f32.mrf.mxu0
      %v315 = vadd.f32 0.0, %v314
      %316 = vmatmul.f32.gmra.mxu0 %v214
      %v317 = vpop.f32.mrf.mxu0
      %v318 = vadd.f32 0.0, %v317
      %319 = vmatmul.f32.gmra.mxu0 %v215
      %v320 = vpop.f32.mrf.mxu0
      %v321 = vadd.f32 0.0, %v320
      %322 = vmatmul.f32.gmra.mxu0 %v216
      %v323 = vpop.f32.mrf.mxu0
      %v324 = vadd.f32 0.0, %v323
      %325 = vdwg.mxu0
      %326 = vmatpush.msra.mxu0 %v208
      %327 = vmatpush.msra.mxu0 %v206
      %328 = vmatpush.msra.mxu0 %v204
      %329 = vmatpush.msra.mxu0 %v202
      %330 = vmatpush.msra.mxu0 %v200
      %331 = vmatpush.msra.mxu0 %v198
      %332 = vmatpush.msra.mxu0 %v196
      %333 = vmatpush.msra.mxu0 %v194
      %334 = vmatpush.msra.mxu0 %v192
      %335 = vmatpush.msra.mxu0 %v190
      %336 = vmatpush.msra.mxu0 %v188
      %337 = vmatpush.msra.mxu0 %v186
      %338 = vmatpush.msra.mxu0 %v184
      %339 = vmatpush.msra.mxu0 %v182
      %340 = vmatpush.msra.mxu0 %v180
      %341 = vmatpush.msra.mxu0 %v178
      %342 = vmatmul.f32.gmra.mxu0 %v171
      %v343 = vpop.f32.mrf.mxu0
      %v344 = vadd.f32 %v268, %v343
      %345 = vmatmul.f32.gmra.mxu0 %v172
      %v346 = vpop.f32.mrf.mxu0
      %v347 = vadd.f32 %v271, %v346
      %348 = vmatmul.f32.gmra.mxu0 %v173
      %v349 = vpop.f32.mrf.mxu0
      %v350 = vadd.f32 %v274, %v349
      %351 = vmatmul.f32.gmra.mxu0 %v174
      %v352 = vpop.f32.mrf.mxu0
      %v353 = vadd.f32 %v277, %v352
      %354 = vmatmul.f32.gmra.mxu0 %v175
      %v355 = vpop.f32.mrf.mxu0
      %v356 = vadd.f32 %v280, %v355
      %357 = vmatmul.f32.gmra.mxu0 %v176
      %v358 = vpop.f32.mrf.mxu0
      %v359 = vadd.f32 %v283, %v358
      %360 = vmatmul.f32.gmra.mxu0 %v177
      %v361 = vpop.f32.mrf.mxu0
      %v362 = vadd.f32 %v286, %v361
      %363 = vdwg.mxu0
      %364 = vmatpush.msra.mxu0 %v209
      %365 = vmatpush.msra.mxu0 %v207
      %366 = vmatpush.msra.mxu0 %v205
      %367 = vmatpush.msra.mxu0 %v203
      %368 = vmatpush.msra.mxu0 %v201
      %369 = vmatpush.msra.mxu0 %v199
      %370 = vmatpush.msra.mxu0 %v197
      %371 = vmatpush.msra.mxu0 %v195
      %372 = vmatpush.msra.mxu0 %v193
      %373 = vmatpush.msra.mxu0 %v191
      %374 = vmatpush.msra.mxu0 %v189
      %375 = vmatpush.msra.mxu0 %v187
      %376 = vmatpush.msra.mxu0 %v185
      %377 = vmatpush.msra.mxu0 %v183
      %378 = vmatpush.msra.mxu0 %v181
      %379 = vmatpush.msra.mxu0 %v179
      %380 = vmatmul.f32.gmra.mxu0 %v171
      %v381 = vpop.f32.mrf.mxu0
      %v382 = vadd.f32 %v306, %v381
      %383 = vmatmul.f32.gmra.mxu0 %v172
      %v384 = vpop.f32.mrf.mxu0
      %v385 = vadd.f32 %v309, %v384
      %386 = vmatmul.f32.gmra.mxu0 %v173
      %v387 = vpop.f32.mrf.mxu0
      %v388 = vadd.f32 %v312, %v387
      %389 = vmatmul.f32.gmra.mxu0 %v174
      %v390 = vpop.f32.mrf.mxu0
      %v391 = vadd.f32 %v315, %v390
      %392 = vmatmul.f32.gmra.mxu0 %v175
      %v393 = vpop.f32.mrf.mxu0
      %v394 = vadd.f32 %v318, %v393
      %395 = vmatmul.f32.gmra.mxu0 %v176
      %v396 = vpop.f32.mrf.mxu0
      %v397 = vadd.f32 %v321, %v396
      %398 = vmatmul.f32.gmra.mxu0 %v177
      %v399 = vpop.f32.mrf.mxu0
      %v400 = vadd.f32 %v324, %v399
      %401 = vdwg.mxu0
      %v402 = vld [vmem:[%s165 + $0x8] sm:$0xff]
      %v403 = vld [vmem:[%s165 + $0x10] sm:$0xff]
      %v404 = vld [vmem:[%s165 + $0x18] sm:$0xff]
      %v405 = vld [vmem:[%s165 + $0x20] sm:$0xff]
      %v406 = vld [vmem:[%s165 + $0x28] sm:$0xff]
      %v407 = vld [vmem:[%s165 + $0x30] sm:$0xff]
      %v408 = vld [vmem:[%s165 + $0x38] sm:$0xff]
      %s409 = scalar_lea.vmem %s1, 512
      %v410 = vld [vmem:[%s409] sm:$0xff]
      %v411 = vld [vmem:[%s409 + $0x8] sm:$0xff]
      %v412 = vld [vmem:[%s409 + $0x10] sm:$0xff]
      %v413 = vld [vmem:[%s409 + $0x18] sm:$0xff]
      %v414 = vld [vmem:[%s409 + $0x20] sm:$0xff]
      %v415 = vld [vmem:[%s409 + $0x28] sm:$0xff]
      %v416 = vld [vmem:[%s409 + $0x30] sm:$0xff]
      %v417 = vld [vmem:[%s409 + $0x38] sm:$0xff]
      %v418 = vld [vmem:[%s409 + $0x40] sm:$0xff]
      %v419 = vld [vmem:[%s409 + $0x48] sm:$0xff]
      %v420 = vld [vmem:[%s409 + $0x50] sm:$0xff]
      %v421 = vld [vmem:[%s409 + $0x58] sm:$0xff]
      %v422 = vld [vmem:[%s409 + $0x60] sm:$0xff]
      %v423 = vld [vmem:[%s409 + $0x68] sm:$0xff]
      %v424 = vld [vmem:[%s409 + $0x70] sm:$0xff]
      %v425 = vld [vmem:[%s409 + $0x78] sm:$0xff]
      %v426 = vld [vmem:[%s409 + $0x80] sm:$0xff]
      %v427 = vld [vmem:[%s409 + $0x88] sm:$0xff]
      %v428 = vld [vmem:[%s409 + $0x90] sm:$0xff]
      %v429 = vld [vmem:[%s409 + $0x98] sm:$0xff]
      %v430 = vld [vmem:[%s409 + $0xa0] sm:$0xff]
      %v431 = vld [vmem:[%s409 + $0xa8] sm:$0xff]
      %v432 = vld [vmem:[%s409 + $0xb0] sm:$0xff]
      %v433 = vld [vmem:[%s409 + $0xb8] sm:$0xff]
      %v434 = vld [vmem:[%s409 + $0xc0] sm:$0xff]
      %v435 = vld [vmem:[%s409 + $0xc8] sm:$0xff]
      %v436 = vld [vmem:[%s409 + $0xd0] sm:$0xff]
      %v437 = vld [vmem:[%s409 + $0xd8] sm:$0xff]
      %v438 = vld [vmem:[%s409 + $0xe0] sm:$0xff]
      %v439 = vld [vmem:[%s409 + $0xe8] sm:$0xff]
      %v440 = vld [vmem:[%s409 + $0xf0] sm:$0xff]
      %v441 = vld [vmem:[%s409 + $0xf8] sm:$0xff]
      %442 = vmatpush.msra.mxu0 %v440
      %443 = vmatpush.msra.mxu0 %v438
      %444 = vmatpush.msra.mxu0 %v436
      %445 = vmatpush.msra.mxu0 %v434
      %446 = vmatpush.msra.mxu0 %v432
      %447 = vmatpush.msra.mxu0 %v430
      %448 = vmatpush.msra.mxu0 %v428
      %449 = vmatpush.msra.mxu0 %v426
      %450 = vmatpush.msra.mxu0 %v424
      %451 = vmatpush.msra.mxu0 %v422
      %452 = vmatpush.msra.mxu0 %v420
      %453 = vmatpush.msra.mxu0 %v418
      %454 = vmatpush.msra.mxu0 %v416
      %455 = vmatpush.msra.mxu0 %v414
      %456 = vmatpush.msra.mxu0 %v412
      %457 = vmatpush.msra.mxu0 %v410
      %458 = vmatmul.f32.gmra.mxu0 %v402
      %v459 = vpop.f32.mrf.mxu0
      %v460 = vadd.f32 0.0, %v459
      %461 = vmatmul.f32.gmra.mxu0 %v403
      %v462 = vpop.f32.mrf.mxu0
      %v463 = vadd.f32 0.0, %v462
      %464 = vmatmul.f32.gmra.mxu0 %v404
      %v465 = vpop.f32.mrf.mxu0
      %v466 = vadd.f32 0.0, %v465
      %467 = vmatmul.f32.gmra.mxu0 %v405
      %v468 = vpop.f32.mrf.mxu0
      %v469 = vadd.f32 0.0, %v468
      %470 = vmatmul.f32.gmra.mxu0 %v406
      %v471 = vpop.f32.mrf.mxu0
      %v472 = vadd.f32 0.0, %v471
      %473 = vmatmul.f32.gmra.mxu0 %v407
      %v474 = vpop.f32.mrf.mxu0
      %v475 = vadd.f32 0.0, %v474
      %476 = vmatmul.f32.gmra.mxu0 %v408
      %v477 = vpop.f32.mrf.mxu0
      %v478 = vadd.f32 0.0, %v477
      %479 = vdwg.mxu0
      %480 = vmatpush.msra.mxu0 %v441
      %481 = vmatpush.msra.mxu0 %v439
      %482 = vmatpush.msra.mxu0 %v437
      %483 = vmatpush.msra.mxu0 %v435
      %484 = vmatpush.msra.mxu0 %v433
      %485 = vmatpush.msra.mxu0 %v431
      %486 = vmatpush.msra.mxu0 %v429
      %487 = vmatpush.msra.mxu0 %v427
      %488 = vmatpush.msra.mxu0 %v425
      %489 = vmatpush.msra.mxu0 %v423
      %490 = vmatpush.msra.mxu0 %v421
      %491 = vmatpush.msra.mxu0 %v419
      %492 = vmatpush.msra.mxu0 %v417
      %493 = vmatpush.msra.mxu0 %v415
      %494 = vmatpush.msra.mxu0 %v413
      %495 = vmatpush.msra.mxu0 %v411
      %496 = vmatmul.f32.gmra.mxu0 %v402
      %v497 = vpop.f32.mrf.mxu0
      %v498 = vadd.f32 0.0, %v497
      %499 = vmatmul.f32.gmra.mxu0 %v403
      %v500 = vpop.f32.mrf.mxu0
      %v501 = vadd.f32 0.0, %v500
      %502 = vmatmul.f32.gmra.mxu0 %v404
      %v503 = vpop.f32.mrf.mxu0
      %v504 = vadd.f32 0.0, %v503
      %505 = vmatmul.f32.gmra.mxu0 %v405
      %v506 = vpop.f32.mrf.mxu0
      %v507 = vadd.f32 0.0, %v506
      %508 = vmatmul.f32.gmra.mxu0 %v406
      %v509 = vpop.f32.mrf.mxu0
      %v510 = vadd.f32 0.0, %v509
      %511 = vmatmul.f32.gmra.mxu0 %v407
      %v512 = vpop.f32.mrf.mxu0
      %v513 = vadd.f32 0.0, %v512
      %514 = vmatmul.f32.gmra.mxu0 %v408
      %v515 = vpop.f32.mrf.mxu0
      %v516 = vadd.f32 0.0, %v515
      %517 = vdwg.mxu0
      %v518 = vadd.f32 %v344, %v460
      %v519 = vadd.f32 %v382, %v498
      %v520 = vadd.f32 %v347, %v463
      %v521 = vadd.f32 %v385, %v501
      %v522 = vadd.f32 %v350, %v466
      %v523 = vadd.f32 %v388, %v504
      %v524 = vadd.f32 %v353, %v469
      %v525 = vadd.f32 %v391, %v507
      %v526 = vadd.f32 %v356, %v472
      %v527 = vadd.f32 %v394, %v510
      %v528 = vadd.f32 %v359, %v475
      %v529 = vadd.f32 %v397, %v513
      %v530 = vadd.f32 %v362, %v478
      %v531 = vadd.f32 %v400, %v516
      %v532 = vld [vmem:[%s165 + $0x9] sm:$0xff]
      %v533 = vld [vmem:[%s165 + $0x11] sm:$0xff]
      %v534 = vld [vmem:[%s165 + $0x19] sm:$0xff]
      %v535 = vld [vmem:[%s165 + $0x21] sm:$0xff]
      %v536 = vld [vmem:[%s165 + $0x29] sm:$0xff]
      %v537 = vld [vmem:[%s165 + $0x31] sm:$0xff]
      %v538 = vld [vmem:[%s165 + $0x39] sm:$0xff]
      %s539 = scalar_lea.vmem %s1, 768
      %v540 = vld [vmem:[%s539] sm:$0xff]
      %v541 = vld [vmem:[%s539 + $0x8] sm:$0xff]
      %v542 = vld [vmem:[%s539 + $0x10] sm:$0xff]
      %v543 = vld [vmem:[%s539 + $0x18] sm:$0xff]
      %v544 = vld [vmem:[%s539 + $0x20] sm:$0xff]
      %v545 = vld [vmem:[%s539 + $0x28] sm:$0xff]
      %v546 = vld [vmem:[%s539 + $0x30] sm:$0xff]
      %v547 = vld [vmem:[%s539 + $0x38] sm:$0xff]
      %v548 = vld [vmem:[%s539 + $0x40] sm:$0xff]
      %v549 = vld [vmem:[%s539 + $0x48] sm:$0xff]
      %v550 = vld [vmem:[%s539 + $0x50] sm:$0xff]
      %v551 = vld [vmem:[%s539 + $0x58] sm:$0xff]
      %v552 = vld [vmem:[%s539 + $0x60] sm:$0xff]
      %v553 = vld [vmem:[%s539 + $0x68] sm:$0xff]
      %v554 = vld [vmem:[%s539 + $0x70] sm:$0xff]
      %v555 = vld [vmem:[%s539 + $0x78] sm:$0xff]
      %v556 = vld [vmem:[%s539 + $0x80] sm:$0xff]
      %v557 = vld [vmem:[%s539 + $0x88] sm:$0xff]
      %v558 = vld [vmem:[%s539 + $0x90] sm:$0xff]
      %v559 = vld [vmem:[%s539 + $0x98] sm:$0xff]
      %v560 = vld [vmem:[%s539 + $0xa0] sm:$0xff]
      %v561 = vld [vmem:[%s539 + $0xa8] sm:$0xff]
      %v562 = vld [vmem:[%s539 + $0xb0] sm:$0xff]
      %v563 = vld [vmem:[%s539 + $0xb8] sm:$0xff]
      %v564 = vld [vmem:[%s539 + $0xc0] sm:$0xff]
      %v565 = vld [vmem:[%s539 + $0xc8] sm:$0xff]
      %v566 = vld [vmem:[%s539 + $0xd0] sm:$0xff]
      %v567 = vld [vmem:[%s539 + $0xd8] sm:$0xff]
      %v568 = vld [vmem:[%s539 + $0xe0] sm:$0xff]
      %v569 = vld [vmem:[%s539 + $0xe8] sm:$0xff]
      %v570 = vld [vmem:[%s539 + $0xf0] sm:$0xff]
      %v571 = vld [vmem:[%s539 + $0xf8] sm:$0xff]
      %572 = vmatpush.msra.mxu0 %v570
      %573 = vmatpush.msra.mxu0 %v568
      %574 = vmatpush.msra.mxu0 %v566
      %575 = vmatpush.msra.mxu0 %v564
      %576 = vmatpush.msra.mxu0 %v562
      %577 = vmatpush.msra.mxu0 %v560
      %578 = vmatpush.msra.mxu0 %v558
      %579 = vmatpush.msra.mxu0 %v556
      %580 = vmatpush.msra.mxu0 %v554
      %581 = vmatpush.msra.mxu0 %v552
      %582 = vmatpush.msra.mxu0 %v550
      %583 = vmatpush.msra.mxu0 %v548
      %584 = vmatpush.msra.mxu0 %v546
      %585 = vmatpush.msra.mxu0 %v544
      %586 = vmatpush.msra.mxu0 %v542
      %587 = vmatpush.msra.mxu0 %v540
      %588 = vmatmul.f32.gmra.mxu0 %v532
      %v589 = vpop.f32.mrf.mxu0
      %v590 = vadd.f32 0.0, %v589
      %591 = vmatmul.f32.gmra.mxu0 %v533
      %v592 = vpop.f32.mrf.mxu0
      %v593 = vadd.f32 0.0, %v592
      %594 = vmatmul.f32.gmra.mxu0 %v534
      %v595 = vpop.f32.mrf.mxu0
      %v596 = vadd.f32 0.0, %v595
      %597 = vmatmul.f32.gmra.mxu0 %v535
      %v598 = vpop.f32.mrf.mxu0
      %v599 = vadd.f32 0.0, %v598
      %600 = vmatmul.f32.gmra.mxu0 %v536
      %v601 = vpop.f32.mrf.mxu0
      %v602 = vadd.f32 0.0, %v601
      %603 = vmatmul.f32.gmra.mxu0 %v537
      %v604 = vpop.f32.mrf.mxu0
      %v605 = vadd.f32 0.0, %v604
      %606 = vmatmul.f32.gmra.mxu0 %v538
      %v607 = vpop.f32.mrf.mxu0
      %v608 = vadd.f32 0.0, %v607
      %609 = vdwg.mxu0
      %610 = vmatpush.msra.mxu0 %v571
      %611 = vmatpush.msra.mxu0 %v569
      %612 = vmatpush.msra.mxu0 %v567
      %613 = vmatpush.msra.mxu0 %v565
      %614 = vmatpush.msra.mxu0 %v563
      %615 = vmatpush.msra.mxu0 %v561
      %616 = vmatpush.msra.mxu0 %v559
      %617 = vmatpush.msra.mxu0 %v557
      %618 = vmatpush.msra.mxu0 %v555
      %619 = vmatpush.msra.mxu0 %v553
      %620 = vmatpush.msra.mxu0 %v551
      %621 = vmatpush.msra.mxu0 %v549
      %622 = vmatpush.msra.mxu0 %v547
      %623 = vmatpush.msra.mxu0 %v545
      %624 = vmatpush.msra.mxu0 %v543
      %625 = vmatpush.msra.mxu0 %v541
      %626 = vmatmul.f32.gmra.mxu0 %v532
      %v627 = vpop.f32.mrf.mxu0
      %v628 = vadd.f32 0.0, %v627
      %629 = vmatmul.f32.gmra.mxu0 %v533
      %v630 = vpop.f32.mrf.mxu0
      %v631 = vadd.f32 0.0, %v630
      %632 = vmatmul.f32.gmra.mxu0 %v534
      %v633 = vpop.f32.mrf.mxu0
      %v634 = vadd.f32 0.0, %v633
      %635 = vmatmul.f32.gmra.mxu0 %v535
      %v636 = vpop.f32.mrf.mxu0
      %v637 = vadd.f32 0.0, %v636
      %638 = vmatmul.f32.gmra.mxu0 %v536
      %v639 = vpop.f32.mrf.mxu0
      %v640 = vadd.f32 0.0, %v639
      %641 = vmatmul.f32.gmra.mxu0 %v537
      %v642 = vpop.f32.mrf.mxu0
      %v643 = vadd.f32 0.0, %v642
      %644 = vmatmul.f32.gmra.mxu0 %v538
      %v645 = vpop.f32.mrf.mxu0
      %v646 = vadd.f32 0.0, %v645
      %647 = vdwg.mxu0
      %v648 = vadd.f32 %v518, %v590
      %v649 = vadd.f32 %v519, %v628
      %v650 = vadd.f32 %v520, %v593
      %v651 = vadd.f32 %v521, %v631
      %v652 = vadd.f32 %v522, %v596
      %v653 = vadd.f32 %v523, %v634
      %v654 = vadd.f32 %v524, %v599
      %v655 = vadd.f32 %v525, %v637
      %v656 = vadd.f32 %v526, %v602
      %v657 = vadd.f32 %v527, %v640
      %v658 = vadd.f32 %v528, %v605
      %v659 = vadd.f32 %v529, %v643
      %v660 = vadd.f32 %v530, %v608
      %v661 = vadd.f32 %v531, %v646
      %669 = vrot.lane.b32.xlu0 %v648, 64
      %v670 = vpop.permute.xlu0 %669
      %671 = vrot.lane.b32.xlu0 %v650, 64
      %v672 = vpop.permute.xlu0 %671
      %673 = vrot.lane.b32.xlu0 %v652, 64
      %v674 = vpop.permute.xlu0 %673
      %675 = vrot.lane.b32.xlu0 %v654, 64
      %v676 = vpop.permute.xlu0 %675
      %677 = vrot.lane.b32.xlu0 %v656, 64
      %v678 = vpop.permute.xlu0 %677
      %679 = vrot.lane.b32.xlu0 %v658, 64
      %v680 = vpop.permute.xlu0 %679
      %681 = vrot.lane.b32.xlu0 %v660, 64
      %v682 = vpop.permute.xlu0 %681
      %v690 = vmax.f32 %v648, %v670
      %v691 = vmax.f32 %v650, %v672
      %v692 = vmax.f32 %v652, %v674
      %v693 = vmax.f32 %v654, %v676
      %v694 = vmax.f32 %v656, %v678
      %v695 = vmax.f32 %v658, %v680
      %v696 = vmax.f32 %v660, %v682
      %704 = vrot.lane.b32.xlu0 %v649, 64
      %v705 = vpop.permute.xlu0 %704
      %706 = vrot.lane.b32.xlu0 %v651, 64
      %v707 = vpop.permute.xlu0 %706
      %708 = vrot.lane.b32.xlu0 %v653, 64
      %v709 = vpop.permute.xlu0 %708
      %710 = vrot.lane.b32.xlu0 %v655, 64
      %v711 = vpop.permute.xlu0 %710
      %712 = vrot.lane.b32.xlu0 %v657, 64
      %v713 = vpop.permute.xlu0 %712
      %714 = vrot.lane.b32.xlu0 %v659, 64
      %v715 = vpop.permute.xlu0 %714
      %716 = vrot.lane.b32.xlu0 %v661, 64
      %v717 = vpop.permute.xlu0 %716
      %v725 = vmax.f32 %v649, %v705
      %v726 = vmax.f32 %v651, %v707
      %v727 = vmax.f32 %v653, %v709
      %v728 = vmax.f32 %v655, %v711
      %v729 = vmax.f32 %v657, %v713
      %v730 = vmax.f32 %v659, %v715
      %v731 = vmax.f32 %v661, %v717
      %v732 = vmax.f32 %v690, %v725
      %v733 = vmax.f32 %v691, %v726
      %v734 = vmax.f32 %v692, %v727
      %v735 = vmax.f32 %v693, %v728
      %v736 = vmax.f32 %v694, %v729
      %v737 = vmax.f32 %v695, %v730
      %v738 = vmax.f32 %v696, %v731
      %v739 = vld [vmem:[%s2] sm:$0x1]
      %v741 = vperm.slane %v739, 0
      %v743 = vadd.f32 %v732, %v741
      %v744 = vadd.f32 %v733, %v741
      %v745 = vadd.f32 %v734, %v741
      %v746 = vadd.f32 %v735, %v741
      %v747 = vadd.f32 %v736, %v741
      %v748 = vadd.f32 %v737, %v741
      %v749 = vadd.f32 %v738, %v741
      %v750 = vmax.f32 %v743, 0.0
      %v751 = vmax.f32 %v744, 0.0
      %v752 = vmax.f32 %v745, 0.0
      %v753 = vmax.f32 %v746, 0.0
      %v754 = vmax.f32 %v747, 0.0
      %v755 = vmax.f32 %v748, 0.0
      %v756 = vmax.f32 %v749, 0.0
      %vm757 = vcmask 523264
      %758 = vst.msk [vmem:[%s170] sm:$0xff] %vm757, %v750
      %759 = vst.msk [vmem:[%s170 + $0x8] sm:$0xff] %vm757, %v751
      %760 = vst.msk [vmem:[%s170 + $0x10] sm:$0xff] %vm757, %v752
      %761 = vst.msk [vmem:[%s170 + $0x18] sm:$0xff] %vm757, %v753
      %762 = vst.msk [vmem:[%s170 + $0x20] sm:$0xff] %vm757, %v754
      %763 = vst.msk [vmem:[%s170 + $0x28] sm:$0xff] %vm757, %v755
      %764 = vst.msk [vmem:[%s170 + $0x30] sm:$0xff] %vm757, %v756
      %p765 = scmp.lt.s32.totalorder %s14, 1
      %s766 = scalar_select %p765, %s14, 1
      %s767 = smul.addr %s766, 7
      %s768 = smul.addr %s767, 8
      %s769 = scalar_lea.vmem %s3, %s768
      // Predicated region
      $region33: #{cnn_forward.4} parent=31 // pred_check
        %p770 = pneg %p100
      $region34: #{cnn_forward.4} parent=31 // pred_check_branch
        %772 = sbr.rel (%p770) target = $region36
      $region35: #{cnn_forward.4} parent=31 // pred_region
        _
      $region36: #{cnn_forward.4} parent=31 // pred_fallthru
        _
    $region32: #{cnn_forward.4} parent=5 // pred_fallthru
      _
    %p773 = scmp.le.s32.totalorder 2, %s9
    // Predicated region
    $region37: #{cnn_forward.4} parent=5 // pred_check
      %p774 = pneg %p773
    $region38: #{cnn_forward.4} parent=5 // pred_check_branch
      %776 = sbr.rel (%p774) target = $region40
    $region39: #{cnn_forward.4} parent=5 // pred_region
      %s777 = ssub.s32 %s9, 2
      // Predicated region
      $region41: #{cnn_forward.4} parent=39 // pred_check
        %p778 = pneg %p106
      $region42: #{cnn_forward.4} parent=39 // pred_check_branch
        %780 = sbr.rel (%p778) target = $region44
      $region43: #{cnn_forward.4} parent=39 // pred_region
        %p781 = scmp.lt.s32.totalorder %s15, 1
        %s782 = scalar_select %p781, %s15, 1
        %s783 = smul.addr %s782, 7
        %s784 = smul.addr %s783, 8
        %s785 = scalar_lea.vmem %s3, %s784
      $region44: #{cnn_forward.4} parent=39 // pred_fallthru
        _
    $region40: #{cnn_forward.4} parent=5 // pred_fallthru
      _
  $region6: #{cnn_forward.4} parent=0 // loop_footer
    %s13 = sadd.s32 1, %s9
  $region7: #{cnn_forward.4} parent=0 // loop_footer_branch
    %8 = sbr.rel target = $region3
  $region8: #{cnn_forward.4} parent=0 // loop_exit
    _

// kernel: cnn_forward.3
$region0: #{cnn_forward.3}
  #allocation0 [shape = 'u32[]', space=smem, size = 0x4, offset = 0x4, fixed_abs, tag = 'smem constant byte address 0x4 - core index']
  #allocation1 [shape = 'u32[72,128]{1,0:T(1,128)}', space=vmem, size = 0x9000, scoped, tag = 'internal scratch']
  %s0 = inlined_call_operand.vmem [shape: f32[2,248,4], index: 0, kind: input, shape index: {}]
  %s1 = inlined_call_operand.vmem [shape: f32[4,4,128], index: 1, kind: input, shape index: {}]
  %s2 = inlined_call_operand.vmem [shape: f32[1,32], index: 2, kind: input, shape index: {}]
  %s3 = inlined_call_operand.vmem [shape: f32[2,224,32], index: 3, kind: output, shape index: {}]
  %s4 = sld [smem:[#allocation0]]
  $region45: #{cnn_forward.3} parent=0
    _
  %s6 = ssub.s32 1, %s4
  %s7 = scalar_select 0, %s6, %s4
  loop: start=0, step=1, limit=4
  $region2: #{cnn_forward.3} parent=0 // loop_pre_header
    _
  $region3: #{cnn_forward.3} parent=0 // loop_header
    %s9 = sphi 0, %s13
    %p10 = scmp.ge.s32.totalorder %s9, 4
    %s19 = sphi 0, %s21
    %s22 = sphi 0, %s19
    %s23 = sphi 0, %s22
    %s39 = sphi 0, %s23
    %s43 = sphi 0, %s43
    %s45 = sphi 0, %s43
    %s46 = sphi 0, %s45
    %s60 = sphi 0, %s46
    %s64 = sphi 0, %s64
    %s66 = sphi 0, %s64
    %s67 = sphi 0, %s66
    %s81 = sphi 0, %s67
    %s87 = sphi 0, %s89
    %s90 = sphi 0, %s87
    %s91 = sphi 0, %s90
    %s107 = sphi 0, %s91
  $region4: #{cnn_forward.3} parent=0 // loop_header_branch
    %12 = sbr.rel (%p10) target = $region8
  $region5: #{cnn_forward.3} parent=0 // loop_body
    %s14 = ssub.s32 %s9, 1
    %s15 = ssub.s32 %s9, 2
    %s16 = sadd.s32 %s9, 1
    %s17 = ssub.s32 %s9, %s16
    %p18 = scmp.eq.s32.totalorder %s17, 0
    %s20 = sadd.s32 %s19, 1
    %s21 = scalar_select %p18, %s19, %s20
    %p24 = pneg %p18
    %p25 = scmp.eq.s32.totalorder %s9, 1
    %p26 = por %p24, %p25
    %p27 = scmp.ne.s32.totalorder %s19, %s22
    %p28 = scmp.eq.s32.totalorder %s9, 0
    %p29 = por %p27, %p28
    %p30 = scmp.ne.s32.totalorder %s19, %s22
    %p31 = scmp.eq.s32.totalorder %s14, 1
    %p32 = por %p30, %p31
    %p33 = scmp.ne.s32.totalorder %s22, %s23
    %p34 = scmp.eq.s32.totalorder %s14, 0
    %p35 = por %p33, %p34
    %p36 = scmp.ne.s32.totalorder %s22, %s23
    %p37 = scmp.eq.s32.totalorder %s15, 1
    %p38 = por %p36, %p37
    %p40 = scmp.ne.s32.totalorder %s23, %s39
    %p41 = scmp.eq.s32.totalorder %s15, 0
    %p42 = por %p40, %p41
    %s44 = sadd.s32 %s43, 1
    %p47 = scmp.eq.s32.totalorder %s9, 1
    %p48 = scmp.ne.s32.totalorder %s43, %s45
    %p49 = scmp.eq.s32.totalorder %s9, 0
    %p50 = por %p48, %p49
    %p51 = scmp.ne.s32.totalorder %s43, %s45
    %p52 = scmp.eq.s32.totalorder %s14, 1
    %p53 = por %p51, %p52
    %p54 = scmp.ne.s32.totalorder %s45, %s46
    %p55 = scmp.eq.s32.totalorder %s14, 0
    %p56 = por %p54, %p55
    %p57 = scmp.ne.s32.totalorder %s45, %s46
    %p58 = scmp.eq.s32.totalorder %s15, 1
    %p59 = por %p57, %p58
    %p61 = scmp.ne.s32.totalorder %s46, %s60
    %p62 = scmp.eq.s32.totalorder %s15, 0
    %p63 = por %p61, %p62
    %s65 = sadd.s32 %s64, 1
    %p68 = scmp.eq.s32.totalorder %s9, 1
    %p69 = scmp.ne.s32.totalorder %s64, %s66
    %p70 = scmp.eq.s32.totalorder %s9, 0
    %p71 = por %p69, %p70
    %p72 = scmp.ne.s32.totalorder %s64, %s66
    %p73 = scmp.eq.s32.totalorder %s14, 1
    %p74 = por %p72, %p73
    %p75 = scmp.ne.s32.totalorder %s66, %s67
    %p76 = scmp.eq.s32.totalorder %s14, 0
    %p77 = por %p75, %p76
    %p78 = scmp.ne.s32.totalorder %s66, %s67
    %p79 = scmp.eq.s32.totalorder %s15, 1
    %p80 = por %p78, %p79
    %p82 = scmp.ne.s32.totalorder %s67, %s81
    %p83 = scmp.eq.s32.totalorder %s15, 0
    %p84 = por %p82, %p83
    %s85 = ssub.s32 %s9, %s16
    %p86 = scmp.eq.s32.totalorder %s85, 0
    %s88 = sadd.s32 %s87, 1
    %s89 = scalar_select %p86, %s87, %s88
    %p92 = pneg %p86
    %p93 = scmp.eq.s32.totalorder %s9, 1
    %p94 = por %p92, %p93
    %p95 = scmp.ne.s32.totalorder %s87, %s90
    %p96 = scmp.eq.s32.totalorder %s9, 0
    %p97 = por %p95, %p96
    %p98 = scmp.ne.s32.totalorder %s87, %s90
    %p99 = scmp.eq.s32.totalorder %s14, 1
    %p100 = por %p98, %p99
    %p101 = scmp.ne.s32.totalorder %s90, %s91
    %p102 = scmp.eq.s32.totalorder %s14, 0
    %p103 = por %p101, %p102
    %p104 = scmp.ne.s32.totalorder %s90, %s91
    %p105 = scmp.eq.s32.totalorder %s15, 1
    %p106 = por %p104, %p105
    %p108 = scmp.ne.s32.totalorder %s91, %s107
    %p109 = scmp.eq.s32.totalorder %s15, 0
    %p110 = por %p108, %p109
    %p111 = scmp.le.s32.totalorder 1, %s9
    %p112 = scmp.lt.s32.totalorder %s9, 3
    %p113 = pnand %p111, %p112
    %p114 = pneg %p113
    // Predicated region
    $region9: #{cnn_forward.3} parent=5 // pred_check
      _
    $region10: #{cnn_forward.3} parent=5 // pred_check_branch
      %116 = sbr.rel (%p113) target = $region12
    $region11: #{cnn_forward.3} parent=5 // pred_region
      %s117 = ssub.s32 %s9, 1
      // Predicated region
      $region13: #{cnn_forward.3} parent=11 // pred_check
        %p118 = pneg %p56
      $region14: #{cnn_forward.3} parent=11 // pred_check_branch
        %120 = sbr.rel (%p118) target = $region16
      $region15: #{cnn_forward.3} parent=11 // pred_region
        _
      $region16: #{cnn_forward.3} parent=11 // pred_fallthru
        _
      // Predicated region
      $region17: #{cnn_forward.3} parent=11 // pred_check
        %p121 = pneg %p77
      $region18: #{cnn_forward.3} parent=11 // pred_check_branch
        %123 = sbr.rel (%p121) target = $region20
      $region19: #{cnn_forward.3} parent=11 // pred_region
        _
      $region20: #{cnn_forward.3} parent=11 // pred_fallthru
        _
    $region12: #{cnn_forward.3} parent=5 // pred_fallthru
      _
    %p124 = scmp.lt.s32.totalorder %s9, 2
    // Predicated region
    $region21: #{cnn_forward.3} parent=5 // pred_check
      %p125 = pneg %p124
    $region22: #{cnn_forward.3} parent=5 // pred_check_branch
      %127 = sbr.rel (%p125) target = $region24
    $region23: #{cnn_forward.3} parent=5 // pred_region
      // Predicated region
      $region25: #{cnn_forward.3} parent=23 // pred_check
        %p128 = pneg %p29
      $region26: #{cnn_forward.3} parent=23 // pred_check_branch
        %130 = sbr.rel (%p128) target = $region28
      $region27: #{cnn_forward.3} parent=23 // pred_region
        %p131 = scmp.lt.s32.totalorder %s9, 1
        %s132 = scalar_select %p131, %s9, 1
        %s133 = smul.addr %s132, 31
        %s134 = smul.addr %s133, 8
        %s135 = scalar_lea.vmem %s0, %s134
      $region28: #{cnn_forward.3} parent=23 // pred_fallthru
        _
    $region24: #{cnn_forward.3} parent=5 // pred_fallthru
      _
    %p136 = scmp.le.s32.totalorder 1, %s9
    %p137 = scmp.lt.s32.totalorder %s9, 3
    %p138 = pnand %p136, %p137
    %p139 = pneg %p138
    // Predicated region
    $region29: #{cnn_forward.3} parent=5 // pred_check
      _
    $region30: #{cnn_forward.3} parent=5 // pred_check_branch
      %141 = sbr.rel (%p138) target = $region32
    $region31: #{cnn_forward.3} parent=5 // pred_region
      %s142 = ssub.s32 %s9, 1
      %p143 = scmp.lt.s32.totalorder %s14, 1
      %s144 = scalar_select %p143, %s14, 1
      %s145 = smul.addr %s144, 31
      %s146 = smul.addr %s145, 8
      %s147 = scalar_lea.vmem %s0, %s146
      %p148 = pneg %p35
      %p149 = pneg %p32
      %p150 = pneg %p56
      %p151 = pneg %p53
      %p152 = pneg %p77
      %p153 = pneg %p74
      %p154 = pneg %p103
      %p155 = pneg %p100
      %p156 = scmp.lt.s32.totalorder %s14, 1
      %s157 = scalar_select %p156, %s14, 1
      %s158 = smul.addr %s157, 28
      %s159 = smul.addr %s158, 8
      %s160 = scalar_lea.vmem %s3, %s159
      %p161 = scmp.lt.s32.totalorder %s14, 1
      %s162 = scalar_select %p161, %s14, 1
      %s163 = smul.addr %s162, 31
      %s164 = smul.addr %s163, 8
      %s165 = scalar_lea.vmem %s0, %s164
      %p166 = scmp.lt.s32.totalorder %s14, 1
      %s167 = scalar_select %p166, %s14, 1
      %s168 = smul.addr %s167, 28
      %s169 = smul.addr %s168, 8
      %s170 = scalar_lea.vmem %s3, %s169
      %v171 = vld [vmem:[%s165] sm:$0xff]
      %v172 = vld [vmem:[%s165 + $0x8] sm:$0xff]
      %v173 = vld [vmem:[%s165 + $0x10] sm:$0xff]
      %v174 = vld [vmem:[%s165 + $0x18] sm:$0xff]
      %v175 = vld [vmem:[%s165 + $0x20] sm:$0xff]
      %v176 = vld [vmem:[%s165 + $0x28] sm:$0xff]
      %v177 = vld [vmem:[%s165 + $0x30] sm:$0xff]
      %v178 = vld [vmem:[%s165 + $0x38] sm:$0xff]
      %v179 = vld [vmem:[%s165 + $0x40] sm:$0xff]
      %v180 = vld [vmem:[%s165 + $0x48] sm:$0xff]
      %v181 = vld [vmem:[%s165 + $0x50] sm:$0xff]
      %v182 = vld [vmem:[%s165 + $0x58] sm:$0xff]
      %v183 = vld [vmem:[%s165 + $0x60] sm:$0xff]
      %v184 = vld [vmem:[%s165 + $0x68] sm:$0xff]
      %v185 = vld [vmem:[%s165 + $0x70] sm:$0xff]
      %v186 = vld [vmem:[%s165 + $0x78] sm:$0xff]
      %v187 = vld [vmem:[%s165 + $0x80] sm:$0xff]
      %v188 = vld [vmem:[%s165 + $0x88] sm:$0xff]
      %v189 = vld [vmem:[%s165 + $0x90] sm:$0xff]
      %v190 = vld [vmem:[%s165 + $0x98] sm:$0xff]
      %v191 = vld [vmem:[%s165 + $0xa0] sm:$0xff]
      %v192 = vld [vmem:[%s165 + $0xa8] sm:$0xff]
      %v193 = vld [vmem:[%s165 + $0xb0] sm:$0xff]
      %v194 = vld [vmem:[%s165 + $0xb8] sm:$0xff]
      %v195 = vld [vmem:[%s165 + $0xc0] sm:$0xff]
      %v196 = vld [vmem:[%s165 + $0xc8] sm:$0xff]
      %v197 = vld [vmem:[%s165 + $0xd0] sm:$0xff]
      %v198 = vld [vmem:[%s165 + $0xd8] sm:$0xff]
      %v199 = vld [vmem:[%s1] sm:$0xf]
      %v200 = vld [vmem:[%s165 + $0x1] sm:$0xff]
      %v201 = vld [vmem:[%s165 + $0x9] sm:$0xff]
      %v202 = vld [vmem:[%s165 + $0x11] sm:$0xff]
      %v203 = vld [vmem:[%s165 + $0x19] sm:$0xff]
      %v204 = vld [vmem:[%s165 + $0x21] sm:$0xff]
      %v205 = vld [vmem:[%s165 + $0x29] sm:$0xff]
      %v206 = vld [vmem:[%s165 + $0x31] sm:$0xff]
      %v207 = vld [vmem:[%s165 + $0x39] sm:$0xff]
      %v208 = vld [vmem:[%s165 + $0x41] sm:$0xff]
      %v209 = vld [vmem:[%s165 + $0x49] sm:$0xff]
      %v210 = vld [vmem:[%s165 + $0x51] sm:$0xff]
      %v211 = vld [vmem:[%s165 + $0x59] sm:$0xff]
      %v212 = vld [vmem:[%s165 + $0x61] sm:$0xff]
      %v213 = vld [vmem:[%s165 + $0x69] sm:$0xff]
      %v214 = vld [vmem:[%s165 + $0x71] sm:$0xff]
      %v215 = vld [vmem:[%s165 + $0x79] sm:$0xff]
      %v216 = vld [vmem:[%s165 + $0x81] sm:$0xff]
      %v217 = vld [vmem:[%s165 + $0x89] sm:$0xff]
      %v218 = vld [vmem:[%s165 + $0x91] sm:$0xff]
      %v219 = vld [vmem:[%s165 + $0x99] sm:$0xff]
      %v220 = vld [vmem:[%s165 + $0xa1] sm:$0xff]
      %v221 = vld [vmem:[%s165 + $0xa9] sm:$0xff]
      %v222 = vld [vmem:[%s165 + $0xb1] sm:$0xff]
      %v223 = vld [vmem:[%s165 + $0xb9] sm:$0xff]
      %v224 = vld [vmem:[%s165 + $0xc1] sm:$0xff]
      %v225 = vld [vmem:[%s165 + $0xc9] sm:$0xff]
      %v226 = vld [vmem:[%s165 + $0xd1] sm:$0xff]
      %v227 = vld [vmem:[%s165 + $0xd9] sm:$0xff]
      %s228 = scalar_lea.vmem %s1, 4
      %v229 = vld [vmem:[%s228] sm:$0xf]
      %vm230 = vcmask 31744
      %v232 = vsel %vm230, %v200, 0
      %v235 = vsel %vm230, %v201, 0
      %v238 = vsel %vm230, %v202, 0
      %v241 = vsel %vm230, %v203, 0
      %v244 = vsel %vm230, %v204, 0
      %v247 = vsel %vm230, %v205, 0
      %v250 = vsel %vm230, %v206, 0
      %v253 = vsel %vm230, %v207, 0
      %v256 = vsel %vm230, %v208, 0
      %v259 = vsel %vm230, %v209, 0
      %v262 = vsel %vm230, %v210, 0
      %v265 = vsel %vm230, %v211, 0
      %v268 = vsel %vm230, %v212, 0
      %v271 = vsel %vm230, %v213, 0
      %v274 = vsel %vm230, %v214, 0
      %v277 = vsel %vm230, %v215, 0
      %v280 = vsel %vm230, %v216, 0
      %v283 = vsel %vm230, %v217, 0
      %v286 = vsel %vm230, %v218, 0
      %v289 = vsel %vm230, %v219, 0
      %v292 = vsel %vm230, %v220, 0
      %v295 = vsel %vm230, %v221, 0
      %v298 = vsel %vm230, %v222, 0
      %v301 = vsel %vm230, %v223, 0
      %v304 = vsel %vm230, %v224, 0
      %v307 = vsel %vm230, %v225, 0
      %v310 = vsel %vm230, %v226, 0
      %v313 = vsel %vm230, %v227, 0
      %vm315 = vcmask 1043456
      %v317 = vsel %vm315, %v229, 0
      %319 = vmatpush.msra.mxu0 0.0
      %320 = vmatpush.msra.mxu0 0.0
      %321 = vmatpush.msra.mxu0 0.0
      %322 = vmatpush.msra.mxu0 0.0
      %323 = vmatpush.msra.mxu0 0.0
      %324 = vmatpush.msra.mxu0 0.0
      %325 = vmatpush.msra.mxu0 0.0
      %326 = vmatpush.msra.mxu0 0.0
      %327 = vmatpush.msra.mxu0 0.0
      %328 = vmatpush.msra.mxu0 0.0
      %329 = vmatpush.msra.mxu0 0.0
      %330 = vmatpush.msra.mxu0 0.0
      %331 = vmatpush.msra.mxu0 0.0
      %332 = vmatpush.msra.mxu0 0.0
      %333 = vmatpush.msra.mxu0 0.0
      %334 = vmatpush.msra.mxu0 %v317
      %335 = vmatmul.f32.gmra.mxu0 %v232
      %v336 = vpop.f32.mrf.mxu0
      %v337 = vadd.f32 0.0, %v336
      %338 = vmatmul.f32.gmra.mxu0 %v235
      %v339 = vpop.f32.mrf.mxu0
      %v340 = vadd.f32 0.0, %v339
      %341 = vmatmul.f32.gmra.mxu0 %v238
      %v342 = vpop.f32.mrf.mxu0
      %v343 = vadd.f32 0.0, %v342
      %344 = vmatmul.f32.gmra.mxu0 %v241
      %v345 = vpop.f32.mrf.mxu0
      %v346 = vadd.f32 0.0, %v345
      %347 = vmatmul.f32.gmra.mxu0 %v244
      %v348 = vpop.f32.mrf.mxu0
      %v349 = vadd.f32 0.0, %v348
      %350 = vmatmul.f32.gmra.mxu0 %v247
      %v351 = vpop.f32.mrf.mxu0
      %v352 = vadd.f32 0.0, %v351
      %353 = vmatmul.f32.gmra.mxu0 %v250
      %v354 = vpop.f32.mrf.mxu0
      %v355 = vadd.f32 0.0, %v354
      %356 = vmatmul.f32.gmra.mxu0 %v253
      %v357 = vpop.f32.mrf.mxu0
      %v358 = vadd.f32 0.0, %v357
      %359 = vmatmul.f32.gmra.mxu0 %v256
      %v360 = vpop.f32.mrf.mxu0
      %v361 = vadd.f32 0.0, %v360
      %362 = vmatmul.f32.gmra.mxu0 %v259
      %v363 = vpop.f32.mrf.mxu0
      %v364 = vadd.f32 0.0, %v363
      %365 = vmatmul.f32.gmra.mxu0 %v262
      %v366 = vpop.f32.mrf.mxu0
      %v367 = vadd.f32 0.0, %v366
      %368 = vmatmul.f32.gmra.mxu0 %v265
      %v369 = vpop.f32.mrf.mxu0
      %v370 = vadd.f32 0.0, %v369
      %371 = vmatmul.f32.gmra.mxu0 %v268
      %v372 = vpop.f32.mrf.mxu0
      %v373 = vadd.f32 0.0, %v372
      %374 = vmatmul.f32.gmra.mxu0 %v271
      %v375 = vpop.f32.mrf.mxu0
      %v376 = vadd.f32 0.0, %v375
      %377 = vmatmul.f32.gmra.mxu0 %v274
      %v378 = vpop.f32.mrf.mxu0
      %v379 = vadd.f32 0.0, %v378
      %380 = vmatmul.f32.gmra.mxu0 %v277
      %v381 = vpop.f32.mrf.mxu0
      %v382 = vadd.f32 0.0, %v381
      %383 = vmatmul.f32.gmra.mxu0 %v280
      %v384 = vpop.f32.mrf.mxu0
      %v385 = vadd.f32 0.0, %v384
      %386 = vmatmul.f32.gmra.mxu0 %v283
      %v387 = vpop.f32.mrf.mxu0
      %v388 = vadd.f32 0.0, %v387
      %389 = vmatmul.f32.gmra.mxu0 %v286
      %v390 = vpop.f32.mrf.mxu0
      %v391 = vadd.f32 0.0, %v390
      %392 = vmatmul.f32.gmra.mxu0 %v289
      %v393 = vpop.f32.mrf.mxu0
      %v394 = vadd.f32 0.0, %v393
      %395 = vmatmul.f32.gmra.mxu0 %v292
      %v396 = vpop.f32.mrf.mxu0
      %v397 = vadd.f32 0.0, %v396
      %398 = vmatmul.f32.gmra.mxu0 %v295
      %v399 = vpop.f32.mrf.mxu0
      %v400 = vadd.f32 0.0, %v399
      %401 = vmatmul.f32.gmra.mxu0 %v298
      %v402 = vpop.f32.mrf.mxu0
      %v403 = vadd.f32 0.0, %v402
      %404 = vmatmul.f32.gmra.mxu0 %v301
      %v405 = vpop.f32.mrf.mxu0
      %v406 = vadd.f32 0.0, %v405
      %407 = vmatmul.f32.gmra.mxu0 %v304
      %v408 = vpop.f32.mrf.mxu0
      %v409 = vadd.f32 0.0, %v408
      %410 = vmatmul.f32.gmra.mxu0 %v307
      %v411 = vpop.f32.mrf.mxu0
      %v412 = vadd.f32 0.0, %v411
      %413 = vmatmul.f32.gmra.mxu0 %v310
      %v414 = vpop.f32.mrf.mxu0
      %v415 = vadd.f32 0.0, %v414
      %416 = vmatmul.f32.gmra.mxu0 %v313
      %v417 = vpop.f32.mrf.mxu0
      %v418 = vadd.f32 0.0, %v417
      %419 = vdwg.mxu0
      %v421 = vsel %vm230, %v171, 0
      %v424 = vsel %vm230, %v172, 0
      %v427 = vsel %vm230, %v173, 0
      %v430 = vsel %vm230, %v174, 0
      %v433 = vsel %vm230, %v175, 0
      %v436 = vsel %vm230, %v176, 0
      %v439 = vsel %vm230, %v177, 0
      %v442 = vsel %vm230, %v178, 0
      %v445 = vsel %vm230, %v179, 0
      %v448 = vsel %vm230, %v180, 0
      %v451 = vsel %vm230, %v181, 0
      %v454 = vsel %vm230, %v182, 0
      %v457 = vsel %vm230, %v183, 0
      %v460 = vsel %vm230, %v184, 0
      %v463 = vsel %vm230, %v185, 0
      %v466 = vsel %vm230, %v186, 0
      %v469 = vsel %vm230, %v187, 0
      %v472 = vsel %vm230, %v188, 0
      %v475 = vsel %vm230, %v189, 0
      %v478 = vsel %vm230, %v190, 0
      %v481 = vsel %vm230, %v191, 0
      %v484 = vsel %vm230, %v192, 0
      %v487 = vsel %vm230, %v193, 0
      %v490 = vsel %vm230, %v194, 0
      %v493 = vsel %vm230, %v195, 0
      %v496 = vsel %vm230, %v196, 0
      %v499 = vsel %vm230, %v197, 0
      %v502 = vsel %vm230, %v198, 0
      %v505 = vsel %vm315, %v199, 0
      %507 = vmatpush.msra.mxu0 0.0
      %508 = vmatpush.msra.mxu0 0.0
      %509 = vmatpush.msra.mxu0 0.0
      %510 = vmatpush.msra.mxu0 0.0
      %511 = vmatpush.msra.mxu0 0.0
      %512 = vmatpush.msra.mxu0 0.0
      %513 = vmatpush.msra.mxu0 0.0
      %514 = vmatpush.msra.mxu0 0.0
      %515 = vmatpush.msra.mxu0 0.0
      %516 = vmatpush.msra.mxu0 0.0
      %517 = vmatpush.msra.mxu0 0.0
      %518 = vmatpush.msra.mxu0 0.0
      %519 = vmatpush.msra.mxu0 0.0
      %520 = vmatpush.msra.mxu0 0.0
      %521 = vmatpush.msra.mxu0 0.0
      %522 = vmatpush.msra.mxu0 %v505
      %523 = vmatmul.f32.gmra.mxu0 %v421
      %v524 = vpop.f32.mrf.mxu0
      %v525 = vadd.f32 %v337, %v524
      %526 = vmatmul.f32.gmra.mxu0 %v424
      %v527 = vpop.f32.mrf.mxu0
      %v528 = vadd.f32 %v340, %v527
      %529 = vmatmul.f32.gmra.mxu0 %v427
      %v530 = vpop.f32.mrf.mxu0
      %v531 = vadd.f32 %v343, %v530
      %532 = vmatmul.f32.gmra.mxu0 %v430
      %v533 = vpop.f32.mrf.mxu0
      %v534 = vadd.f32 %v346, %v533
      %535 = vmatmul.f32.gmra.mxu0 %v433
      %v536 = vpop.f32.mrf.mxu0
      %v537 = vadd.f32 %v349, %v536
      %538 = vmatmul.f32.gmra.mxu0 %v436
      %v539 = vpop.f32.mrf.mxu0
      %v540 = vadd.f32 %v352, %v539
      %541 = vmatmul.f32.gmra.mxu0 %v439
      %v542 = vpop.f32.mrf.mxu0
      %v543 = vadd.f32 %v355, %v542
      %544 = vmatmul.f32.gmra.mxu0 %v442
      %v545 = vpop.f32.mrf.mxu0
      %v546 = vadd.f32 %v358, %v545
      %547 = vmatmul.f32.gmra.mxu0 %v445
      %v548 = vpop.f32.mrf.mxu0
      %v549 = vadd.f32 %v361, %v548
      %550 = vmatmul.f32.gmra.mxu0 %v448
      %v551 = vpop.f32.mrf.mxu0
      %v552 = vadd.f32 %v364, %v551
      %553 = vmatmul.f32.gmra.mxu0 %v451
      %v554 = vpop.f32.mrf.mxu0
      %v555 = vadd.f32 %v367, %v554
      %556 = vmatmul.f32.gmra.mxu0 %v454
      %v557 = vpop.f32.mrf.mxu0
      %v558 = vadd.f32 %v370, %v557
      %559 = vmatmul.f32.gmra.mxu0 %v457
      %v560 = vpop.f32.mrf.mxu0
      %v561 = vadd.f32 %v373, %v560
      %562 = vmatmul.f32.gmra.mxu0 %v460
      %v563 = vpop.f32.mrf.mxu0
      %v564 = vadd.f32 %v376, %v563
      %565 = vmatmul.f32.gmra.mxu0 %v463
      %v566 = vpop.f32.mrf.mxu0
      %v567 = vadd.f32 %v379, %v566
      %568 = vmatmul.f32.gmra.mxu0 %v466
      %v569 = vpop.f32.mrf.mxu0
      %v570 = vadd.f32 %v382, %v569
      %571 = vmatmul.f32.gmra.mxu0 %v469
      %v572 = vpop.f32.mrf.mxu0
      %v573 = vadd.f32 %v385, %v572
      %574 = vmatmul.f32.gmra.mxu0 %v472
      %v575 = vpop.f32.mrf.mxu0
      %v576 = vadd.f32 %v388, %v575
      %577 = vmatmul.f32.gmra.mxu0 %v475
      %v578 = vpop.f32.mrf.mxu0
      %v579 = vadd.f32 %v391, %v578
      %580 = vmatmul.f32.gmra.mxu0 %v478
      %v581 = vpop.f32.mrf.mxu0
      %v582 = vadd.f32 %v394, %v581
      %583 = vmatmul.f32.gmra.mxu0 %v481
      %v584 = vpop.f32.mrf.mxu0
      %v585 = vadd.f32 %v397, %v584
      %586 = vmatmul.f32.gmra.mxu0 %v484
      %v587 = vpop.f32.mrf.mxu0
      %v588 = vadd.f32 %v400, %v587
      %589 = vmatmul.f32.gmra.mxu0 %v487
      %v590 = vpop.f32.mrf.mxu0
      %v591 = vadd.f32 %v403, %v590
      %592 = vmatmul.f32.gmra.mxu0 %v490
      %v593 = vpop.f32.mrf.mxu0
      %v594 = vadd.f32 %v406, %v593
      %595 = vmatmul.f32.gmra.mxu0 %v493
      %v596 = vpop.f32.mrf.mxu0
      %v597 = vadd.f32 %v409, %v596
      %598 = vmatmul.f32.gmra.mxu0 %v496
      %v599 = vpop.f32.mrf.mxu0
      %v600 = vadd.f32 %v412, %v599
      %601 = vmatmul.f32.gmra.mxu0 %v499
      %v602 = vpop.f32.mrf.mxu0
      %v603 = vadd.f32 %v415, %v602
      %604 = vmatmul.f32.gmra.mxu0 %v502
      %v605 = vpop.f32.mrf.mxu0
      %v606 = vadd.f32 %v418, %v605
      %607 = vdwg.mxu0
      %v608 = vld [vmem:[%s165 + $0x10] sm:$0xff]
      %v609 = vld [vmem:[%s165 + $0x18] sm:$0xff]
      %v610 = vld [vmem:[%s165 + $0x20] sm:$0xff]
      %v611 = vld [vmem:[%s165 + $0x28] sm:$0xff]
      %v612 = vld [vmem:[%s165 + $0x30] sm:$0xff]
      %v613 = vld [vmem:[%s165 + $0x38] sm:$0xff]
      %v614 = vld [vmem:[%s165 + $0x40] sm:$0xff]
      %v615 = vld [vmem:[%s165 + $0x48] sm:$0xff]
      %v616 = vld [vmem:[%s165 + $0x50] sm:$0xff]
      %v617 = vld [vmem:[%s165 + $0x58] sm:$0xff]
      %v618 = vld [vmem:[%s165 + $0x60] sm:$0xff]
      %v619 = vld [vmem:[%s165 + $0x68] sm:$0xff]
      %v620 = vld [vmem:[%s165 + $0x70] sm:$0xff]
      %v621 = vld [vmem:[%s165 + $0x78] sm:$0xff]
      %v622 = vld [vmem:[%s165 + $0x80] sm:$0xff]
      %v623 = vld [vmem:[%s165 + $0x88] sm:$0xff]
      %v624 = vld [vmem:[%s165 + $0x90] sm:$0xff]
      %v625 = vld [vmem:[%s165 + $0x98] sm:$0xff]
      %v626 = vld [vmem:[%s165 + $0xa0] sm:$0xff]
      %v627 = vld [vmem:[%s165 + $0xa8] sm:$0xff]
      %v628 = vld [vmem:[%s165 + $0xb0] sm:$0xff]
      %v629 = vld [vmem:[%s165 + $0xb8] sm:$0xff]
      %v630 = vld [vmem:[%s165 + $0xc0] sm:$0xff]
      %v631 = vld [vmem:[%s165 + $0xc8] sm:$0xff]
      %v632 = vld [vmem:[%s165 + $0xd0] sm:$0xff]
      %v633 = vld [vmem:[%s165 + $0xd8] sm:$0xff]
      %v634 = vld [vmem:[%s165 + $0xe0] sm:$0xff]
      %v635 = vld [vmem:[%s165 + $0xe8] sm:$0xff]
      %s636 = scalar_lea.vmem %s1, 8
      %v637 = vld [vmem:[%s636] sm:$0xf]
      %v639 = vsel %vm230, %v608, 0
      %v642 = vsel %vm230, %v609, 0
      %v645 = vsel %vm230, %v610, 0
      %v648 = vsel %vm230, %v611, 0
      %v651 = vsel %vm230, %v612, 0
      %v654 = vsel %vm230, %v613, 0
      %v657 = vsel %vm230, %v614, 0
      %v660 = vsel %vm230, %v615, 0
      %v663 = vsel %vm230, %v616, 0
      %v666 = vsel %vm230, %v617, 0
      %v669 = vsel %vm230, %v618, 0
      %v672 = vsel %vm230, %v619, 0
      %v675 = vsel %vm230, %v620, 0
      %v678 = vsel %vm230, %v621, 0
      %v681 = vsel %vm230, %v622, 0
      %v684 = vsel %vm230, %v623, 0
      %v687 = vsel %vm230, %v624, 0
      %v690 = vsel %vm230, %v625, 0
      %v693 = vsel %vm230, %v626, 0
      %v696 = vsel %vm230, %v627, 0
      %v699 = vsel %vm230, %v628, 0
      %v702 = vsel %vm230, %v629, 0
      %v705 = vsel %vm230, %v630, 0
      %v708 = vsel %vm230, %v631, 0
      %v711 = vsel %vm230, %v632, 0
      %v714 = vsel %vm230, %v633, 0
      %v717 = vsel %vm230, %v634, 0
      %v720 = vsel %vm230, %v635, 0
      %v723 = vsel %vm315, %v637, 0
      %725 = vmatpush.msra.mxu0 0.0
      %726 = vmatpush.msra.mxu0 0.0
      %727 = vmatpush.msra.mxu0 0.0
      %728 = vmatpush.msra.mxu0 0.0
      %729 = vmatpush.msra.mxu0 0.0
      %730 = vmatpush.msra.mxu0 0.0
      %731 = vmatpush.msra.mxu0 0.0
      %732 = vmatpush.msra.mxu0 0.0
      %733 = vmatpush.msra.mxu0 0.0
      %734 = vmatpush.msra.mxu0 0.0
      %735 = vmatpush.msra.mxu0 0.0
      %736 = vmatpush.msra.mxu0 0.0
      %737 = vmatpush.msra.mxu0 0.0
      %738 = vmatpush.msra.mxu0 0.0
      %739 = vmatpush.msra.mxu0 0.0
      %740 = vmatpush.msra.mxu0 %v723
      %741 = vmatmul.f32.gmra.mxu0 %v639
      %v742 = vpop.f32.mrf.mxu0
      %v743 = vadd.f32 0.0, %v742
      %744 = vmatmul.f32.gmra.mxu0 %v642
      %v745 = vpop.f32.mrf.mxu0
      %v746 = vadd.f32 0.0, %v745
      %747 = vmatmul.f32.gmra.mxu0 %v645
      %v748 = vpop.f32.mrf.mxu0
      %v749 = vadd.f32 0.0, %v748
      %750 = vmatmul.f32.gmra.mxu0 %v648
      %v751 = vpop.f32.mrf.mxu0
      %v752 = vadd.f32 0.0, %v751
      %753 = vmatmul.f32.gmra.mxu0 %v651
      %v754 = vpop.f32.mrf.mxu0
      %v755 = vadd.f32 0.0, %v754
      %756 = vmatmul.f32.gmra.mxu0 %v654
      %v757 = vpop.f32.mrf.mxu0
      %v758 = vadd.f32 0.0, %v757
      %759 = vmatmul.f32.gmra.mxu0 %v657
      %v760 = vpop.f32.mrf.mxu0
      %v761 = vadd.f32 0.0, %v760
      %762 = vmatmul.f32.gmra.mxu0 %v660
      %v763 = vpop.f32.mrf.mxu0
      %v764 = vadd.f32 0.0, %v763
      %765 = vmatmul.f32.gmra.mxu0 %v663
      %v766 = vpop.f32.mrf.mxu0
      %v767 = vadd.f32 0.0, %v766
      %768 = vmatmul.f32.gmra.mxu0 %v666
      %v769 = vpop.f32.mrf.mxu0
      %v770 = vadd.f32 0.0, %v769
      %771 = vmatmul.f32.gmra.mxu0 %v669
      %v772 = vpop.f32.mrf.mxu0
      %v773 = vadd.f32 0.0, %v772
      %774 = vmatmul.f32.gmra.mxu0 %v672
      %v775 = vpop.f32.mrf.mxu0
      %v776 = vadd.f32 0.0, %v775
      %777 = vmatmul.f32.gmra.mxu0 %v675
      %v778 = vpop.f32.mrf.mxu0
      %v779 = vadd.f32 0.0, %v778
      %780 = vmatmul.f32.gmra.mxu0 %v678
      %v781 = vpop.f32.mrf.mxu0
      %v782 = vadd.f32 0.0, %v781
      %783 = vmatmul.f32.gmra.mxu0 %v681
      %v784 = vpop.f32.mrf.mxu0
      %v785 = vadd.f32 0.0, %v784
      %786 = vmatmul.f32.gmra.mxu0 %v684
      %v787 = vpop.f32.mrf.mxu0
      %v788 = vadd.f32 0.0, %v787
      %789 = vmatmul.f32.gmra.mxu0 %v687
      %v790 = vpop.f32.mrf.mxu0
      %v791 = vadd.f32 0.0, %v790
      %792 = vmatmul.f32.gmra.mxu0 %v690
      %v793 = vpop.f32.mrf.mxu0
      %v794 = vadd.f32 0.0, %v793
      %795 = vmatmul.f32.gmra.mxu0 %v693
      %v796 = vpop.f32.mrf.mxu0
      %v797 = vadd.f32 0.0, %v796
      %798 = vmatmul.f32.gmra.mxu0 %v696
      %v799 = vpop.f32.mrf.mxu0
      %v800 = vadd.f32 0.0, %v799
      %801 = vmatmul.f32.gmra.mxu0 %v699
      %v802 = vpop.f32.mrf.mxu0
      %v803 = vadd.f32 0.0, %v802
      %804 = vmatmul.f32.gmra.mxu0 %v702
      %v805 = vpop.f32.mrf.mxu0
      %v806 = vadd.f32 0.0, %v805
      %807 = vmatmul.f32.gmra.mxu0 %v705
      %v808 = vpop.f32.mrf.mxu0
      %v809 = vadd.f32 0.0, %v808
      %810 = vmatmul.f32.gmra.mxu0 %v708
      %v811 = vpop.f32.mrf.mxu0
      %v812 = vadd.f32 0.0, %v811
      %813 = vmatmul.f32.gmra.mxu0 %v711
      %v814 = vpop.f32.mrf.mxu0
      %v815 = vadd.f32 0.0, %v814
      %816 = vmatmul.f32.gmra.mxu0 %v714
      %v817 = vpop.f32.mrf.mxu0
      %v818 = vadd.f32 0.0, %v817
      %819 = vmatmul.f32.gmra.mxu0 %v717
      %v820 = vpop.f32.mrf.mxu0
      %v821 = vadd.f32 0.0, %v820
      %822 = vmatmul.f32.gmra.mxu0 %v720
      %v823 = vpop.f32.mrf.mxu0
      %v824 = vadd.f32 0.0, %v823
      %825 = vdwg.mxu0
      %v826 = vadd.f32 %v525, %v743
      %v827 = vadd.f32 %v528, %v746
      %v828 = vadd.f32 %v531, %v749
      %v829 = vadd.f32 %v534, %v752
      %v830 = vadd.f32 %v537, %v755
      %v831 = vadd.f32 %v540, %v758
      %v832 = vadd.f32 %v543, %v761
      %v833 = vadd.f32 %v546, %v764
      %v834 = vadd.f32 %v549, %v767
      %v835 = vadd.f32 %v552, %v770
      %v836 = vadd.f32 %v555, %v773
      %v837 = vadd.f32 %v558, %v776
      %v838 = vadd.f32 %v561, %v779
      %v839 = vadd.f32 %v564, %v782
      %v840 = vadd.f32 %v567, %v785
      %v841 = vadd.f32 %v570, %v788
      %v842 = vadd.f32 %v573, %v791
      %v843 = vadd.f32 %v576, %v794
      %v844 = vadd.f32 %v579, %v797
      %v845 = vadd.f32 %v582, %v800
      %v846 = vadd.f32 %v585, %v803
      %v847 = vadd.f32 %v588, %v806
      %v848 = vadd.f32 %v591, %v809
      %v849 = vadd.f32 %v594, %v812
      %v850 = vadd.f32 %v597, %v815
      %v851 = vadd.f32 %v600, %v818
      %v852 = vadd.f32 %v603, %v821
      %v853 = vadd.f32 %v606, %v824
      %v854 = vld [vmem:[%s165 + $0x11] sm:$0xff]
      %v855 = vld [vmem:[%s165 + $0x19] sm:$0xff]
      %v856 = vld [vmem:[%s165 + $0x21] sm:$0xff]
      %v857 = vld [vmem:[%s165 + $0x29] sm:$0xff]
      %v858 = vld [vmem:[%s165 + $0x31] sm:$0xff]
      %v859 = vld [vmem:[%s165 + $0x39] sm:$0xff]
      %v860 = vld [vmem:[%s165 + $0x41] sm:$0xff]
      %v861 = vld [vmem:[%s165 + $0x49] sm:$0xff]
      %v862 = vld [vmem:[%s165 + $0x51] sm:$0xff]
      %v863 = vld [vmem:[%s165 + $0x59] sm:$0xff]
      %v864 = vld [vmem:[%s165 + $0x61] sm:$0xff]
      %v865 = vld [vmem:[%s165 + $0x69] sm:$0xff]
      %v866 = vld [vmem:[%s165 + $0x71] sm:$0xff]
      %v867 = vld [vmem:[%s165 + $0x79] sm:$0xff]
      %v868 = vld [vmem:[%s165 + $0x81] sm:$0xff]
      %v869 = vld [vmem:[%s165 + $0x89] sm:$0xff]
      %v870 = vld [vmem:[%s165 + $0x91] sm:$0xff]
      %v871 = vld [vmem:[%s165 + $0x99] sm:$0xff]
      %v872 = vld [vmem:[%s165 + $0xa1] sm:$0xff]
      %v873 = vld [vmem:[%s165 + $0xa9] sm:$0xff]
      %v874 = vld [vmem:[%s165 + $0xb1] sm:$0xff]
      %v875 = vld [vmem:[%s165 + $0xb9] sm:$0xff]
      %v876 = vld [vmem:[%s165 + $0xc1] sm:$0xff]
      %v877 = vld [vmem:[%s165 + $0xc9] sm:$0xff]
      %v878 = vld [vmem:[%s165 + $0xd1] sm:$0xff]
      %v879 = vld [vmem:[%s165 + $0xd9] sm:$0xff]
      %v880 = vld [vmem:[%s165 + $0xe1] sm:$0xff]
      %v881 = vld [vmem:[%s165 + $0xe9] sm:$0xff]
      %s882 = scalar_lea.vmem %s1, 12
      %v883 = vld [vmem:[%s882] sm:$0xf]
      %v885 = vsel %vm230, %v854, 0
      %v888 = vsel %vm230, %v855, 0
      %v891 = vsel %vm230, %v856, 0
      %v894 = vsel %vm230, %v857, 0
      %v897 = vsel %vm230, %v858, 0
      %v900 = vsel %vm230, %v859, 0
      %v903 = vsel %vm230, %v860, 0
      %v906 = vsel %vm230, %v861, 0
      %v909 = vsel %vm230, %v862, 0
      %v912 = vsel %vm230, %v863, 0
      %v915 = vsel %vm230, %v864, 0
      %v918 = vsel %vm230, %v865, 0
      %v921 = vsel %vm230, %v866, 0
      %v924 = vsel %vm230, %v867, 0
      %v927 = vsel %vm230, %v868, 0
      %v930 = vsel %vm230, %v869, 0
      %v933 = vsel %vm230, %v870, 0
      %v936 = vsel %vm230, %v871, 0
      %v939 = vsel %vm230, %v872, 0
      %v942 = vsel %vm230, %v873, 0
      %v945 = vsel %vm230, %v874, 0
      %v948 = vsel %vm230, %v875, 0
      %v951 = vsel %vm230, %v876, 0
      %v954 = vsel %vm230, %v877, 0
      %v957 = vsel %vm230, %v878, 0
      %v960 = vsel %vm230, %v879, 0
      %v963 = vsel %vm230, %v880, 0
      %v966 = vsel %vm230, %v881, 0
      %v969 = vsel %vm315, %v883, 0
      %971 = vmatpush.msra.mxu0 0.0
      %972 = vmatpush.msra.mxu0 0.0
      %973 = vmatpush.msra.mxu0 0.0
      %974 = vmatpush.msra.mxu0 0.0
      %975 = vmatpush.msra.mxu0 0.0
      %976 = vmatpush.msra.mxu0 0.0
      %977 = vmatpush.msra.mxu0 0.0
      %978 = vmatpush.msra.mxu0 0.0
      %979 = vmatpush.msra.mxu0 0.0
      %980 = vmatpush.msra.mxu0 0.0
      %981 = vmatpush.msra.mxu0 0.0
      %982 = vmatpush.msra.mxu0 0.0
      %983 = vmatpush.msra.mxu0 0.0
      %984 = vmatpush.msra.mxu0 0.0
      %985 = vmatpush.msra.mxu0 0.0
      %986 = vmatpush.msra.mxu0 %v969
      %987 = vmatmul.f32.gmra.mxu0 %v885
      %v988 = vpop.f32.mrf.mxu0
      %v989 = vadd.f32 0.0, %v988
      %990 = vmatmul.f32.gmra.mxu0 %v888
      %v991 = vpop.f32.mrf.mxu0
      %v992 = vadd.f32 0.0, %v991
      %993 = vmatmul.f32.gmra.mxu0 %v891
      %v994 = vpop.f32.mrf.mxu0
      %v995 = vadd.f32 0.0, %v994
      %996 = vmatmul.f32.gmra.mxu0 %v894
      %v997 = vpop.f32.mrf.mxu0
      %v998 = vadd.f32 0.0, %v997
      %999 = vmatmul.f32.gmra.mxu0 %v897
      %v1000 = vpop.f32.mrf.mxu0
      %v1001 = vadd.f32 0.0, %v1000
      %1002 = vmatmul.f32.gmra.mxu0 %v900
      %v1003 = vpop.f32.mrf.mxu0
      %v1004 = vadd.f32 0.0, %v1003
      %1005 = vmatmul.f32.gmra.mxu0 %v903
      %v1006 = vpop.f32.mrf.mxu0
      %v1007 = vadd.f32 0.0, %v1006
      %1008 = vmatmul.f32.gmra.mxu0 %v906
      %v1009 = vpop.f32.mrf.mxu0
      %v1010 = vadd.f32 0.0, %v1009
      %1011 = vmatmul.f32.gmra.mxu0 %v909
      %v1012 = vpop.f32.mrf.mxu0
      %v1013 = vadd.f32 0.0, %v1012
      %1014 = vmatmul.f32.gmra.mxu0 %v912
      %v1015 = vpop.f32.mrf.mxu0
      %v1016 = vadd.f32 0.0, %v1015
      %1017 = vmatmul.f32.gmra.mxu0 %v915
      %v1018 = vpop.f32.mrf.mxu0
      %v1019 = vadd.f32 0.0, %v1018
      %1020 = vmatmul.f32.gmra.mxu0 %v918
      %v1021 = vpop.f32.mrf.mxu0
      %v1022 = vadd.f32 0.0, %v1021
      %1023 = vmatmul.f32.gmra.mxu0 %v921
      %v1024 = vpop.f32.mrf.mxu0
      %v1025 = vadd.f32 0.0, %v1024
      %1026 = vmatmul.f32.gmra.mxu0 %v924
      %v1027 = vpop.f32.mrf.mxu0
      %v1028 = vadd.f32 0.0, %v1027
      %1029 = vmatmul.f32.gmra.mxu0 %v927
      %v1030 = vpop.f32.mrf.mxu0
      %v1031 = vadd.f32 0.0, %v1030
      %1032 = vmatmul.f32.gmra.mxu0 %v930
      %v1033 = vpop.f32.mrf.mxu0
      %v1034 = vadd.f32 0.0, %v1033
      %1035 = vmatmul.f32.gmra.mxu0 %v933
      %v1036 = vpop.f32.mrf.mxu0
      %v1037 = vadd.f32 0.0, %v1036
      %1038 = vmatmul.f32.gmra.mxu0 %v936
      %v1039 = vpop.f32.mrf.mxu0
      %v1040 = vadd.f32 0.0, %v1039
      %1041 = vmatmul.f32.gmra.mxu0 %v939
      %v1042 = vpop.f32.mrf.mxu0
      %v1043 = vadd.f32 0.0, %v1042
      %1044 = vmatmul.f32.gmra.mxu0 %v942
      %v1045 = vpop.f32.mrf.mxu0
      %v1046 = vadd.f32 0.0, %v1045
      %1047 = vmatmul.f32.gmra.mxu0 %v945
      %v1048 = vpop.f32.mrf.mxu0
      %v1049 = vadd.f32 0.0, %v1048
      %1050 = vmatmul.f32.gmra.mxu0 %v948
      %v1051 = vpop.f32.mrf.mxu0
      %v1052 = vadd.f32 0.0, %v1051
      %1053 = vmatmul.f32.gmra.mxu0 %v951
      %v1054 = vpop.f32.mrf.mxu0
      %v1055 = vadd.f32 0.0, %v1054
      %1056 = vmatmul.f32.gmra.mxu0 %v954
      %v1057 = vpop.f32.mrf.mxu0
      %v1058 = vadd.f32 0.0, %v1057
      %1059 = vmatmul.f32.gmra.mxu0 %v957
      %v1060 = vpop.f32.mrf.mxu0
      %v1061 = vadd.f32 0.0, %v1060
      %1062 = vmatmul.f32.gmra.mxu0 %v960
      %v1063 = vpop.f32.mrf.mxu0
      %v1064 = vadd.f32 0.0, %v1063
      %1065 = vmatmul.f32.gmra.mxu0 %v963
      %v1066 = vpop.f32.mrf.mxu0
      %v1067 = vadd.f32 0.0, %v1066
      %1068 = vmatmul.f32.gmra.mxu0 %v966
      %v1069 = vpop.f32.mrf.mxu0
      %v1070 = vadd.f32 0.0, %v1069
      %1071 = vdwg.mxu0
      %v1072 = vadd.f32 %v826, %v989
      %v1073 = vadd.f32 %v827, %v992
      %v1074 = vadd.f32 %v828, %v995
      %v1075 = vadd.f32 %v829, %v998
      %v1076 = vadd.f32 %v830, %v1001
      %v1077 = vadd.f32 %v831, %v1004
      %v1078 = vadd.f32 %v832, %v1007
      %v1079 = vadd.f32 %v833, %v1010
      %v1080 = vadd.f32 %v834, %v1013
      %v1081 = vadd.f32 %v835, %v1016
      %v1082 = vadd.f32 %v836, %v1019
      %v1083 = vadd.f32 %v837, %v1022
      %v1084 = vadd.f32 %v838, %v1025
      %v1085 = vadd.f32 %v839, %v1028
      %v1086 = vadd.f32 %v840, %v1031
      %v1087 = vadd.f32 %v841, %v1034
      %v1088 = vadd.f32 %v842, %v1037
      %v1089 = vadd.f32 %v843, %v1040
      %v1090 = vadd.f32 %v844, %v1043
      %v1091 = vadd.f32 %v845, %v1046
      %v1092 = vadd.f32 %v846, %v1049
      %v1093 = vadd.f32 %v847, %v1052
      %v1094 = vadd.f32 %v848, %v1055
      %v1095 = vadd.f32 %v849, %v1058
      %v1096 = vadd.f32 %v850, %v1061
      %v1097 = vadd.f32 %v851, %v1064
      %v1098 = vadd.f32 %v852, %v1067
      %v1099 = vadd.f32 %v853, %v1070
      %1128 = vrot.lane.b32.xlu0 %v1072, 96
      %v1129 = vpop.permute.xlu0 %1128
      %1130 = vrot.lane.b32.xlu0 %v1073, 96
      %v1131 = vpop.permute.xlu0 %1130
      %1132 = vrot.lane.b32.xlu0 %v1074, 96
      %v1133 = vpop.permute.xlu0 %1132
      %1134 = vrot.lane.b32.xlu0 %v1075, 96
      %v1135 = vpop.permute.xlu0 %1134
      %1136 = vrot.lane.b32.xlu0 %v1076, 96
      %v1137 = vpop.permute.xlu0 %1136
      %1138 = vrot.lane.b32.xlu0 %v1077, 96
      %v1139 = vpop.permute.xlu0 %1138
      %1140 = vrot.lane.b32.xlu0 %v1078, 96
      %v1141 = vpop.permute.xlu0 %1140
      %1142 = vrot.lane.b32.xlu0 %v1079, 96
      %v1143 = vpop.permute.xlu0 %1142
      %1144 = vrot.lane.b32.xlu0 %v1080, 96
      %v1145 = vpop.permute.xlu0 %1144
      %1146 = vrot.lane.b32.xlu0 %v1081, 96
      %v1147 = vpop.permute.xlu0 %1146
      %1148 = vrot.lane.b32.xlu0 %v1082, 96
      %v1149 = vpop.permute.xlu0 %1148
      %1150 = vrot.lane.b32.xlu0 %v1083, 96
      %v1151 = vpop.permute.xlu0 %1150
      %1152 = vrot.lane.b32.xlu0 %v1084, 96
      %v1153 = vpop.permute.xlu0 %1152
      %1154 = vrot.lane.b32.xlu0 %v1085, 96
      %v1155 = vpop.permute.xlu0 %1154
      %1156 = vrot.lane.b32.xlu0 %v1086, 96
      %v1157 = vpop.permute.xlu0 %1156
      %1158 = vrot.lane.b32.xlu0 %v1087, 96
      %v1159 = vpop.permute.xlu0 %1158
      %1160 = vrot.lane.b32.xlu0 %v1088, 96
      %v1161 = vpop.permute.xlu0 %1160
      %1162 = vrot.lane.b32.xlu0 %v1089, 96
      %v1163 = vpop.permute.xlu0 %1162
      %1164 = vrot.lane.b32.xlu0 %v1090, 96
      %v1165 = vpop.permute.xlu0 %1164
      %1166 = vrot.lane.b32.xlu0 %v1091, 96
      %v1167 = vpop.permute.xlu0 %1166
      %1168 = vrot.lane.b32.xlu0 %v1092, 96
      %v1169 = vpop.permute.xlu0 %1168
      %1170 = vrot.lane.b32.xlu0 %v1093, 96
      %v1171 = vpop.permute.xlu0 %1170
      %1172 = vrot.lane.b32.xlu0 %v1094, 96
      %v1173 = vpop.permute.xlu0 %1172
      %1174 = vrot.lane.b32.xlu0 %v1095, 96
      %v1175 = vpop.permute.xlu0 %1174
      %1176 = vrot.lane.b32.xlu0 %v1096, 96
      %v1177 = vpop.permute.xlu0 %1176
      %1178 = vrot.lane.b32.xlu0 %v1097, 96
      %v1179 = vpop.permute.xlu0 %1178
      %1180 = vrot.lane.b32.xlu0 %v1098, 96
      %v1181 = vpop.permute.xlu0 %1180
      %1182 = vrot.lane.b32.xlu0 %v1099, 96
      %v1183 = vpop.permute.xlu0 %1182
      %v1212 = vmax.f32 %v1072, %v1129
      %v1213 = vmax.f32 %v1073, %v1131
      %v1214 = vmax.f32 %v1074, %v1133
      %v1215 = vmax.f32 %v1075, %v1135
      %v1216 = vmax.f32 %v1076, %v1137
      %v1217 = vmax.f32 %v1077, %v1139
      %v1218 = vmax.f32 %v1078, %v1141
      %v1219 = vmax.f32 %v1079, %v1143
      %v1220 = vmax.f32 %v1080, %v1145
      %v1221 = vmax.f32 %v1081, %v1147
      %v1222 = vmax.f32 %v1082, %v1149
      %v1223 = vmax.f32 %v1083, %v1151
      %v1224 = vmax.f32 %v1084, %v1153
      %v1225 = vmax.f32 %v1085, %v1155
      %v1226 = vmax.f32 %v1086, %v1157
      %v1227 = vmax.f32 %v1087, %v1159
      %v1228 = vmax.f32 %v1088, %v1161
      %v1229 = vmax.f32 %v1089, %v1163
      %v1230 = vmax.f32 %v1090, %v1165
      %v1231 = vmax.f32 %v1091, %v1167
      %v1232 = vmax.f32 %v1092, %v1169
      %v1233 = vmax.f32 %v1093, %v1171
      %v1234 = vmax.f32 %v1094, %v1173
      %v1235 = vmax.f32 %v1095, %v1175
      %v1236 = vmax.f32 %v1096, %v1177
      %v1237 = vmax.f32 %v1097, %v1179
      %v1238 = vmax.f32 %v1098, %v1181
      %v1239 = vmax.f32 %v1099, %v1183
      %1268 = vrot.lane.b32.xlu0 %v1212, 64
      %v1269 = vpop.permute.xlu0 %1268
      %1270 = vrot.lane.b32.xlu0 %v1213, 64
      %v1271 = vpop.permute.xlu0 %1270
      %1272 = vrot.lane.b32.xlu0 %v1214, 64
      %v1273 = vpop.permute.xlu0 %1272
      %1274 = vrot.lane.b32.xlu0 %v1215, 64
      %v1275 = vpop.permute.xlu0 %1274
      %1276 = vrot.lane.b32.xlu0 %v1216, 64
      %v1277 = vpop.permute.xlu0 %1276
      %1278 = vrot.lane.b32.xlu0 %v1217, 64
      %v1279 = vpop.permute.xlu0 %1278
      %1280 = vrot.lane.b32.xlu0 %v1218, 64
      %v1281 = vpop.permute.xlu0 %1280
      %1282 = vrot.lane.b32.xlu0 %v1219, 64
      %v1283 = vpop.permute.xlu0 %1282
      %1284 = vrot.lane.b32.xlu0 %v1220, 64
      %v1285 = vpop.permute.xlu0 %1284
      %1286 = vrot.lane.b32.xlu0 %v1221, 64
      %v1287 = vpop.permute.xlu0 %1286
      %1288 = vrot.lane.b32.xlu0 %v1222, 64
      %v1289 = vpop.permute.xlu0 %1288
      %1290 = vrot.lane.b32.xlu0 %v1223, 64
      %v1291 = vpop.permute.xlu0 %1290
      %1292 = vrot.lane.b32.xlu0 %v1224, 64
      %v1293 = vpop.permute.xlu0 %1292
      %1294 = vrot.lane.b32.xlu0 %v1225, 64
      %v1295 = vpop.permute.xlu0 %1294
      %1296 = vrot.lane.b32.xlu0 %v1226, 64
      %v1297 = vpop.permute.xlu0 %1296
      %1298 = vrot.lane.b32.xlu0 %v1227, 64
      %v1299 = vpop.permute.xlu0 %1298
      %1300 = vrot.lane.b32.xlu0 %v1228, 64
      %v1301 = vpop.permute.xlu0 %1300
      %1302 = vrot.lane.b32.xlu0 %v1229, 64
      %v1303 = vpop.permute.xlu0 %1302
      %1304 = vrot.lane.b32.xlu0 %v1230, 64
      %v1305 = vpop.permute.xlu0 %1304
      %1306 = vrot.lane.b32.xlu0 %v1231, 64
      %v1307 = vpop.permute.xlu0 %1306
      %1308 = vrot.lane.b32.xlu0 %v1232, 64
      %v1309 = vpop.permute.xlu0 %1308
      %1310 = vrot.lane.b32.xlu0 %v1233, 64
      %v1311 = vpop.permute.xlu0 %1310
      %1312 = vrot.lane.b32.xlu0 %v1234, 64
      %v1313 = vpop.permute.xlu0 %1312
      %1314 = vrot.lane.b32.xlu0 %v1235, 64
      %v1315 = vpop.permute.xlu0 %1314
      %1316 = vrot.lane.b32.xlu0 %v1236, 64
      %v1317 = vpop.permute.xlu0 %1316
      %1318 = vrot.lane.b32.xlu0 %v1237, 64
      %v1319 = vpop.permute.xlu0 %1318
      %1320 = vrot.lane.b32.xlu0 %v1238, 64
      %v1321 = vpop.permute.xlu0 %1320
      %1322 = vrot.lane.b32.xlu0 %v1239, 64
      %v1323 = vpop.permute.xlu0 %1322
      %v1352 = vmax.f32 %v1212, %v1269
      %v1353 = vmax.f32 %v1213, %v1271
      %v1354 = vmax.f32 %v1214, %v1273
      %v1355 = vmax.f32 %v1215, %v1275
      %v1356 = vmax.f32 %v1216, %v1277
      %v1357 = vmax.f32 %v1217, %v1279
      %v1358 = vmax.f32 %v1218, %v1281
      %v1359 = vmax.f32 %v1219, %v1283
      %v1360 = vmax.f32 %v1220, %v1285
      %v1361 = vmax.f32 %v1221, %v1287
      %v1362 = vmax.f32 %v1222, %v1289
      %v1363 = vmax.f32 %v1223, %v1291
      %v1364 = vmax.f32 %v1224, %v1293
      %v1365 = vmax.f32 %v1225, %v1295
      %v1366 = vmax.f32 %v1226, %v1297
      %v1367 = vmax.f32 %v1227, %v1299
      %v1368 = vmax.f32 %v1228, %v1301
      %v1369 = vmax.f32 %v1229, %v1303
      %v1370 = vmax.f32 %v1230, %v1305
      %v1371 = vmax.f32 %v1231, %v1307
      %v1372 = vmax.f32 %v1232, %v1309
      %v1373 = vmax.f32 %v1233, %v1311
      %v1374 = vmax.f32 %v1234, %v1313
      %v1375 = vmax.f32 %v1235, %v1315
      %v1376 = vmax.f32 %v1236, %v1317
      %v1377 = vmax.f32 %v1237, %v1319
      %v1378 = vmax.f32 %v1238, %v1321
      %v1379 = vmax.f32 %v1239, %v1323
      %v1380 = vld [vmem:[%s2] sm:$0x1]
      %v1382 = vperm.slane %v1380, 0
      %v1384 = vadd.f32 %v1352, %v1382
      %v1385 = vadd.f32 %v1353, %v1382
      %v1386 = vadd.f32 %v1354, %v1382
      %v1387 = vadd.f32 %v1355, %v1382
      %v1388 = vadd.f32 %v1356, %v1382
      %v1389 = vadd.f32 %v1357, %v1382
      %v1390 = vadd.f32 %v1358, %v1382
      %v1391 = vadd.f32 %v1359, %v1382
      %v1392 = vadd.f32 %v1360, %v1382
      %v1393 = vadd.f32 %v1361, %v1382
      %v1394 = vadd.f32 %v1362, %v1382
      %v1395 = vadd.f32 %v1363, %v1382
      %v1396 = vadd.f32 %v1364, %v1382
      %v1397 = vadd.f32 %v1365, %v1382
      %v1398 = vadd.f32 %v1366, %v1382
      %v1399 = vadd.f32 %v1367, %v1382
      %v1400 = vadd.f32 %v1368, %v1382
      %v1401 = vadd.f32 %v1369, %v1382
      %v1402 = vadd.f32 %v1370, %v1382
      %v1403 = vadd.f32 %v1371, %v1382
      %v1404 = vadd.f32 %v1372, %v1382
      %v1405 = vadd.f32 %v1373, %v1382
      %v1406 = vadd.f32 %v1374, %v1382
      %v1407 = vadd.f32 %v1375, %v1382
      %v1408 = vadd.f32 %v1376, %v1382
      %v1409 = vadd.f32 %v1377, %v1382
      %v1410 = vadd.f32 %v1378, %v1382
      %v1411 = vadd.f32 %v1379, %v1382
      %v1412 = vmax.f32 %v1384, 0.0
      %v1413 = vmax.f32 %v1385, 0.0
      %v1414 = vmax.f32 %v1386, 0.0
      %v1415 = vmax.f32 %v1387, 0.0
      %v1416 = vmax.f32 %v1388, 0.0
      %v1417 = vmax.f32 %v1389, 0.0
      %v1418 = vmax.f32 %v1390, 0.0
      %v1419 = vmax.f32 %v1391, 0.0
      %v1420 = vmax.f32 %v1392, 0.0
      %v1421 = vmax.f32 %v1393, 0.0
      %v1422 = vmax.f32 %v1394, 0.0
      %v1423 = vmax.f32 %v1395, 0.0
      %v1424 = vmax.f32 %v1396, 0.0
      %v1425 = vmax.f32 %v1397, 0.0
      %v1426 = vmax.f32 %v1398, 0.0
      %v1427 = vmax.f32 %v1399, 0.0
      %v1428 = vmax.f32 %v1400, 0.0
      %v1429 = vmax.f32 %v1401, 0.0
      %v1430 = vmax.f32 %v1402, 0.0
      %v1431 = vmax.f32 %v1403, 0.0
      %v1432 = vmax.f32 %v1404, 0.0
      %v1433 = vmax.f32 %v1405, 0.0
      %v1434 = vmax.f32 %v1406, 0.0
      %v1435 = vmax.f32 %v1407, 0.0
      %v1436 = vmax.f32 %v1408, 0.0
      %v1437 = vmax.f32 %v1409, 0.0
      %v1438 = vmax.f32 %v1410, 0.0
      %v1439 = vmax.f32 %v1411, 0.0
      %vm1440 = vcmask 261120
      %1441 = vst.msk [vmem:[%s170] sm:$0xff] %vm1440, %v1412
      %1442 = vst.msk [vmem:[%s170 + $0x8] sm:$0xff] %vm1440, %v1413
      %1443 = vst.msk [vmem:[%s170 + $0x10] sm:$0xff] %vm1440, %v1414
      %1444 = vst.msk [vmem:[%s170 + $0x18] sm:$0xff] %vm1440, %v1415
      %1445 = vst.msk [vmem:[%s170 + $0x20] sm:$0xff] %vm1440, %v1416
      %1446 = vst.msk [vmem:[%s170 + $0x28] sm:$0xff] %vm1440, %v1417
      %1447 = vst.msk [vmem:[%s170 + $0x30] sm:$0xff] %vm1440, %v1418
      %1448 = vst.msk [vmem:[%s170 + $0x38] sm:$0xff] %vm1440, %v1419
      %1449 = vst.msk [vmem:[%s170 + $0x40] sm:$0xff] %vm1440, %v1420
      %1450 = vst.msk [vmem:[%s170 + $0x48] sm:$0xff] %vm1440, %v1421
      %1451 = vst.msk [vmem:[%s170 + $0x50] sm:$0xff] %vm1440, %v1422
      %1452 = vst.msk [vmem:[%s170 + $0x58] sm:$0xff] %vm1440, %v1423
      %1453 = vst.msk [vmem:[%s170 + $0x60] sm:$0xff] %vm1440, %v1424
      %1454 = vst.msk [vmem:[%s170 + $0x68] sm:$0xff] %vm1440, %v1425
      %1455 = vst.msk [vmem:[%s170 + $0x70] sm:$0xff] %vm1440, %v1426
      %1456 = vst.msk [vmem:[%s170 + $0x78] sm:$0xff] %vm1440, %v1427
      %1457 = vst.msk [vmem:[%s170 + $0x80] sm:$0xff] %vm1440, %v1428
      %1458 = vst.msk [vmem:[%s170 + $0x88] sm:$0xff] %vm1440, %v1429
      %1459 = vst.msk [vmem:[%s170 + $0x90] sm:$0xff] %vm1440, %v1430
      %1460 = vst.msk [vmem:[%s170 + $0x98] sm:$0xff] %vm1440, %v1431
      %1461 = vst.msk [vmem:[%s170 + $0xa0] sm:$0xff] %vm1440, %v1432
      %1462 = vst.msk [vmem:[%s170 + $0xa8] sm:$0xff] %vm1440, %v1433
      %1463 = vst.msk [vmem:[%s170 + $0xb0] sm:$0xff] %vm1440, %v1434
      %1464 = vst.msk [vmem:[%s170 + $0xb8] sm:$0xff] %vm1440, %v1435
      %1465 = vst.msk [vmem:[%s170 + $0xc0] sm:$0xff] %vm1440, %v1436
      %1466 = vst.msk [vmem:[%s170 + $0xc8] sm:$0xff] %vm1440, %v1437
      %1467 = vst.msk [vmem:[%s170 + $0xd0] sm:$0xff] %vm1440, %v1438
      %1468 = vst.msk [vmem:[%s170 + $0xd8] sm:$0xff] %vm1440, %v1439
      %p1469 = scmp.lt.s32.totalorder %s14, 1
      %s1470 = scalar_select %p1469, %s14, 1
      %s1471 = smul.addr %s1470, 28
      %s1472 = smul.addr %s1471, 8
      %s1473 = scalar_lea.vmem %s3, %s1472
      // Predicated region
      $region33: #{cnn_forward.3} parent=31 // pred_check
        %p1474 = pneg %p100
      $region34: #{cnn_forward.3} parent=31 // pred_check_branch
        %1476 = sbr.rel (%p1474) target = $region36
      $region35: #{cnn_forward.3} parent=31 // pred_region
        _
      $region36: #{cnn_forward.3} parent=31 // pred_fallthru
        _
    $region32: #{cnn_forward.3} parent=5 // pred_fallthru
      _
    %p1477 = scmp.le.s32.totalorder 2, %s9
    // Predicated region
    $region37: #{cnn_forward.3} parent=5 // pred_check
      %p1478 = pneg %p1477
    $region38: #{cnn_forward.3} parent=5 // pred_check_branch
      %1480 = sbr.rel (%p1478) target = $region40
    $region39: #{cnn_forward.3} parent=5 // pred_region
      %s1481 = ssub.s32 %s9, 2
      // Predicated region
      $region41: #{cnn_forward.3} parent=39 // pred_check
        %p1482 = pneg %p106
      $region42: #{cnn_forward.3} parent=39 // pred_check_branch
        %1484 = sbr.rel (%p1482) target = $region44
      $region43: #{cnn_forward.3} parent=39 // pred_region
        %p1485 = scmp.lt.s32.totalorder %s15, 1
        %s1486 = scalar_select %p1485, %s15, 1
        %s1487 = smul.addr %s1486, 28
        %s1488 = smul.addr %s1487, 8
        %s1489 = scalar_lea.vmem %s3, %s1488
      $region44: #{cnn_forward.3} parent=39 // pred_fallthru
        _
    $region40: #{cnn_forward.3} parent=5 // pred_fallthru
      _
  $region6: #{cnn_forward.3} parent=0 // loop_footer
    %s13 = sadd.s32 1, %s9
  $region7: #{cnn_forward.3} parent=0 // loop_footer_branch
    %8 = sbr.rel target = $region3
  $region8: #{cnn_forward.3} parent=0 // loop_exit
    _

// kernel: cnn_forward.5
$region0: #{cnn_forward.5}
  #allocation0 [shape = 'u32[]', space=smem, size = 0x4, offset = 0x4, fixed_abs, tag = 'smem constant byte address 0x4 - core index']
  #allocation1 [shape = 'u32[72,128]{1,0:T(1,128)}', space=vmem, size = 0x9000, scoped, tag = 'internal scratch']
  %s0 = inlined_call_operand.vmem [shape: f32[2,3584], index: 0, kind: input, shape index: {}]
  %s1 = inlined_call_operand.vmem [shape: f32[3584,128], index: 1, kind: input, shape index: {}]
  %s2 = inlined_call_operand.vmem [shape: f32[1,128], index: 2, kind: input, shape index: {}]
  %s3 = inlined_call_operand.vmem [shape: f32[128,10], index: 3, kind: input, shape index: {}]
  %s4 = inlined_call_operand.vmem [shape: f32[1,10], index: 4, kind: input, shape index: {}]
  %s5 = inlined_call_operand.hbm [shape: f32[2,10], index: 5, kind: output, shape index: {}]
  %s6 = sld [smem:[#allocation0]]
  $region30: #{cnn_forward.5} parent=0
    _
  %s8 = ssub.s32 1, %s6
  %s9 = scalar_select 0, %s8, %s6
  $region1: #{cnn_forward.5} parent=0
    #allocation2 [shape = 'u8[1024]{0}', space=vmem, size = 0x400, scoped, tag = 'output window, operand 0, single buffered']
    #allocation3 [shape = 's32[1]{0}', space=sflag, size = 0x4, scoped, tag = 'scoped memory for cnn_forward.5']
    %10 = vsyncpa [#allocation3], 0
    // Predicated region
    $region2: #{cnn_forward.5} parent=1 // pred_check
      _
    $region3: #{cnn_forward.5} parent=1 // pred_check_branch
      %12 = sbr.rel (0) target = $region5
    $region4: #{cnn_forward.5} parent=1 // pred_region
      _
    $region5: #{cnn_forward.5} parent=1 // pred_fallthru
      _
    // Predicated region
    $region6: #{cnn_forward.5} parent=1 // pred_check
      _
    $region7: #{cnn_forward.5} parent=1 // pred_check_branch
      %14 = sbr.rel (0) target = $region9
    $region8: #{cnn_forward.5} parent=1 // pred_region
      _
    $region9: #{cnn_forward.5} parent=1 // pred_fallthru
      _
    // Predicated region
    $region10: #{cnn_forward.5} parent=1 // pred_check
      _
    $region11: #{cnn_forward.5} parent=1 // pred_check_branch
      %16 = sbr.rel (0) target = $region13
    $region12: #{cnn_forward.5} parent=1 // pred_region
      _
    $region13: #{cnn_forward.5} parent=1 // pred_fallthru
      _
    // Predicated region
    $region14: #{cnn_forward.5} parent=1 // pred_check
      _
    $region15: #{cnn_forward.5} parent=1 // pred_check_branch
      %18 = sbr.rel (0) target = $region17
    $region16: #{cnn_forward.5} parent=1 // pred_region
      _
    $region17: #{cnn_forward.5} parent=1 // pred_fallthru
      _
    // Predicated region
    $region18: #{cnn_forward.5} parent=1 // pred_check
      _
    $region19: #{cnn_forward.5} parent=1 // pred_check_branch
      %20 = sbr.rel (0) target = $region21
    $region20: #{cnn_forward.5} parent=1 // pred_region
      _
    $region21: #{cnn_forward.5} parent=1 // pred_fallthru
      _
    %v21 = vld [vmem:[%s0] sm:$0xff]
    %v22 = vld [vmem:[%s0 + $0x8] sm:$0xff]
    %v23 = vld [vmem:[%s0 + $0x10] sm:$0xff]
    %v24 = vld [vmem:[%s0 + $0x18] sm:$0xff]
    %v25 = vld [vmem:[%s0 + $0x20] sm:$0xff]
    %v26 = vld [vmem:[%s0 + $0x28] sm:$0xff]
    %v27 = vld [vmem:[%s0 + $0x30] sm:$0xff]
    %v28 = vld [vmem:[%s1] sm:$0xff]
    %v29 = vld [vmem:[%s1 + $0x8] sm:$0xff]
    %v30 = vld [vmem:[%s1 + $0x10] sm:$0xff]
    %v31 = vld [vmem:[%s1 + $0x18] sm:$0xff]
    %v32 = vld [vmem:[%s1 + $0x20] sm:$0xff]
    %v33 = vld [vmem:[%s1 + $0x28] sm:$0xff]
    %v34 = vld [vmem:[%s1 + $0x30] sm:$0xff]
    %v35 = vld [vmem:[%s1 + $0x38] sm:$0xff]
    %v36 = vld [vmem:[%s1 + $0x40] sm:$0xff]
    %v37 = vld [vmem:[%s1 + $0x48] sm:$0xff]
    %v38 = vld [vmem:[%s1 + $0x50] sm:$0xff]
    %v39 = vld [vmem:[%s1 + $0x58] sm:$0xff]
    %v40 = vld [vmem:[%s1 + $0x60] sm:$0xff]
    %v41 = vld [vmem:[%s1 + $0x68] sm:$0xff]
    %v42 = vld [vmem:[%s1 + $0x70] sm:$0xff]
    %v43 = vld [vmem:[%s1 + $0x78] sm:$0xff]
    %v44 = vld [vmem:[%s1 + $0x80] sm:$0xff]
    %v45 = vld [vmem:[%s1 + $0x88] sm:$0xff]
    %v46 = vld [vmem:[%s1 + $0x90] sm:$0xff]
    %v47 = vld [vmem:[%s1 + $0x98] sm:$0xff]
    %v48 = vld [vmem:[%s1 + $0xa0] sm:$0xff]
    %v49 = vld [vmem:[%s1 + $0xa8] sm:$0xff]
    %v50 = vld [vmem:[%s1 + $0xb0] sm:$0xff]
    %v51 = vld [vmem:[%s1 + $0xb8] sm:$0xff]
    %v52 = vld [vmem:[%s1 + $0xc0] sm:$0xff]
    %v53 = vld [vmem:[%s1 + $0xc8] sm:$0xff]
    %v54 = vld [vmem:[%s1 + $0xd0] sm:$0xff]
    %v55 = vld [vmem:[%s1 + $0xd8] sm:$0xff]
    %v56 = vld [vmem:[%s1 + $0xe0] sm:$0xff]
    %v57 = vld [vmem:[%s1 + $0xe8] sm:$0xff]
    %v58 = vld [vmem:[%s1 + $0xf0] sm:$0xff]
    %v59 = vld [vmem:[%s1 + $0xf8] sm:$0xff]
    %v60 = vld [vmem:[%s1 + $0x100] sm:$0xff]
    %v61 = vld [vmem:[%s1 + $0x108] sm:$0xff]
    %v62 = vld [vmem:[%s1 + $0x110] sm:$0xff]
    %v63 = vld [vmem:[%s1 + $0x118] sm:$0xff]
    %v64 = vld [vmem:[%s1 + $0x120] sm:$0xff]
    %v65 = vld [vmem:[%s1 + $0x128] sm:$0xff]
    %v66 = vld [vmem:[%s1 + $0x130] sm:$0xff]
    %v67 = vld [vmem:[%s1 + $0x138] sm:$0xff]
    %v68 = vld [vmem:[%s1 + $0x140] sm:$0xff]
    %v69 = vld [vmem:[%s1 + $0x148] sm:$0xff]
    %v70 = vld [vmem:[%s1 + $0x150] sm:$0xff]
    %v71 = vld [vmem:[%s1 + $0x158] sm:$0xff]
    %v72 = vld [vmem:[%s1 + $0x160] sm:$0xff]
    %v73 = vld [vmem:[%s1 + $0x168] sm:$0xff]
    %v74 = vld [vmem:[%s1 + $0x170] sm:$0xff]
    %v75 = vld [vmem:[%s1 + $0x178] sm:$0xff]
    %v76 = vld [vmem:[%s1 + $0x180] sm:$0xff]
    %v77 = vld [vmem:[%s1 + $0x188] sm:$0xff]
    %v78 = vld [vmem:[%s1 + $0x190] sm:$0xff]
    %v79 = vld [vmem:[%s1 + $0x198] sm:$0xff]
    %v80 = vld [vmem:[%s1 + $0x1a0] sm:$0xff]
    %v81 = vld [vmem:[%s1 + $0x1a8] sm:$0xff]
    %v82 = vld [vmem:[%s1 + $0x1b0] sm:$0xff]
    %v83 = vld [vmem:[%s1 + $0x1b8] sm:$0xff]
    %v84 = vld [vmem:[%s1 + $0x1c0] sm:$0xff]
    %v85 = vld [vmem:[%s1 + $0x1c8] sm:$0xff]
    %v86 = vld [vmem:[%s1 + $0x1d0] sm:$0xff]
    %v87 = vld [vmem:[%s1 + $0x1d8] sm:$0xff]
    %v88 = vld [vmem:[%s1 + $0x1e0] sm:$0xff]
    %v89 = vld [vmem:[%s1 + $0x1e8] sm:$0xff]
    %v90 = vld [vmem:[%s1 + $0x1f0] sm:$0xff]
    %v91 = vld [vmem:[%s1 + $0x1f8] sm:$0xff]
    %v92 = vld [vmem:[%s1 + $0x200] sm:$0xff]
    %v93 = vld [vmem:[%s1 + $0x208] sm:$0xff]
    %v94 = vld [vmem:[%s1 + $0x210] sm:$0xff]
    %v95 = vld [vmem:[%s1 + $0x218] sm:$0xff]
    %v96 = vld [vmem:[%s1 + $0x220] sm:$0xff]
    %v97 = vld [vmem:[%s1 + $0x228] sm:$0xff]
    %v98 = vld [vmem:[%s1 + $0x230] sm:$0xff]
    %v99 = vld [vmem:[%s1 + $0x238] sm:$0xff]
    %v100 = vld [vmem:[%s1 + $0x240] sm:$0xff]
    %v101 = vld [vmem:[%s1 + $0x248] sm:$0xff]
    %v102 = vld [vmem:[%s1 + $0x250] sm:$0xff]
    %v103 = vld [vmem:[%s1 + $0x258] sm:$0xff]
    %v104 = vld [vmem:[%s1 + $0x260] sm:$0xff]
    %v105 = vld [vmem:[%s1 + $0x268] sm:$0xff]
    %v106 = vld [vmem:[%s1 + $0x270] sm:$0xff]
    %v107 = vld [vmem:[%s1 + $0x278] sm:$0xff]
    %v108 = vld [vmem:[%s1 + $0x280] sm:$0xff]
    %v109 = vld [vmem:[%s1 + $0x288] sm:$0xff]
    %v110 = vld [vmem:[%s1 + $0x290] sm:$0xff]
    %v111 = vld [vmem:[%s1 + $0x298] sm:$0xff]
    %v112 = vld [vmem:[%s1 + $0x2a0] sm:$0xff]
    %v113 = vld [vmem:[%s1 + $0x2a8] sm:$0xff]
    %v114 = vld [vmem:[%s1 + $0x2b0] sm:$0xff]
    %v115 = vld [vmem:[%s1 + $0x2b8] sm:$0xff]
    %v116 = vld [vmem:[%s1 + $0x2c0] sm:$0xff]
    %v117 = vld [vmem:[%s1 + $0x2c8] sm:$0xff]
    %v118 = vld [vmem:[%s1 + $0x2d0] sm:$0xff]
    %v119 = vld [vmem:[%s1 + $0x2d8] sm:$0xff]
    %v120 = vld [vmem:[%s1 + $0x2e0] sm:$0xff]
    %v121 = vld [vmem:[%s1 + $0x2e8] sm:$0xff]
    %v122 = vld [vmem:[%s1 + $0x2f0] sm:$0xff]
    %v123 = vld [vmem:[%s1 + $0x2f8] sm:$0xff]
    %v124 = vld [vmem:[%s1 + $0x300] sm:$0xff]
    %v125 = vld [vmem:[%s1 + $0x308] sm:$0xff]
    %v126 = vld [vmem:[%s1 + $0x310] sm:$0xff]
    %v127 = vld [vmem:[%s1 + $0x318] sm:$0xff]
    %v128 = vld [vmem:[%s1 + $0x320] sm:$0xff]
    %v129 = vld [vmem:[%s1 + $0x328] sm:$0xff]
    %v130 = vld [vmem:[%s1 + $0x330] sm:$0xff]
    %v131 = vld [vmem:[%s1 + $0x338] sm:$0xff]
    %v132 = vld [vmem:[%s1 + $0x340] sm:$0xff]
    %v133 = vld [vmem:[%s1 + $0x348] sm:$0xff]
    %v134 = vld [vmem:[%s1 + $0x350] sm:$0xff]
    %v135 = vld [vmem:[%s1 + $0x358] sm:$0xff]
    %v136 = vld [vmem:[%s1 + $0x360] sm:$0xff]
    %v137 = vld [vmem:[%s1 + $0x368] sm:$0xff]
    %v138 = vld [vmem:[%s1 + $0x370] sm:$0xff]
    %v139 = vld [vmem:[%s1 + $0x378] sm:$0xff]
    %v140 = vld [vmem:[%s1 + $0x380] sm:$0xff]
    %v141 = vld [vmem:[%s1 + $0x388] sm:$0xff]
    %v142 = vld [vmem:[%s1 + $0x390] sm:$0xff]
    %v143 = vld [vmem:[%s1 + $0x398] sm:$0xff]
    %v144 = vld [vmem:[%s1 + $0x3a0] sm:$0xff]
    %v145 = vld [vmem:[%s1 + $0x3a8] sm:$0xff]
    %v146 = vld [vmem:[%s1 + $0x3b0] sm:$0xff]
    %v147 = vld [vmem:[%s1 + $0x3b8] sm:$0xff]
    %v148 = vld [vmem:[%s1 + $0x3c0] sm:$0xff]
    %v149 = vld [vmem:[%s1 + $0x3c8] sm:$0xff]
    %v150 = vld [vmem:[%s1 + $0x3d0] sm:$0xff]
    %v151 = vld [vmem:[%s1 + $0x3d8] sm:$0xff]
    %v152 = vld [vmem:[%s1 + $0x3e0] sm:$0xff]
    %v153 = vld [vmem:[%s1 + $0x3e8] sm:$0xff]
    %v154 = vld [vmem:[%s1 + $0x3f0] sm:$0xff]
    %v155 = vld [vmem:[%s1 + $0x3f8] sm:$0xff]
    %v156 = vld [vmem:[%s1 + $0x400] sm:$0xff]
    %v157 = vld [vmem:[%s1 + $0x408] sm:$0xff]
    %v158 = vld [vmem:[%s1 + $0x410] sm:$0xff]
    %v159 = vld [vmem:[%s1 + $0x418] sm:$0xff]
    %v160 = vld [vmem:[%s1 + $0x420] sm:$0xff]
    %v161 = vld [vmem:[%s1 + $0x428] sm:$0xff]
    %v162 = vld [vmem:[%s1 + $0x430] sm:$0xff]
    %v163 = vld [vmem:[%s1 + $0x438] sm:$0xff]
    %v164 = vld [vmem:[%s1 + $0x440] sm:$0xff]
    %v165 = vld [vmem:[%s1 + $0x448] sm:$0xff]
    %v166 = vld [vmem:[%s1 + $0x450] sm:$0xff]
    %v167 = vld [vmem:[%s1 + $0x458] sm:$0xff]
    %v168 = vld [vmem:[%s1 + $0x460] sm:$0xff]
    %v169 = vld [vmem:[%s1 + $0x468] sm:$0xff]
    %v170 = vld [vmem:[%s1 + $0x470] sm:$0xff]
    %v171 = vld [vmem:[%s1 + $0x478] sm:$0xff]
    %v172 = vld [vmem:[%s1 + $0x480] sm:$0xff]
    %v173 = vld [vmem:[%s1 + $0x488] sm:$0xff]
    %v174 = vld [vmem:[%s1 + $0x490] sm:$0xff]
    %v175 = vld [vmem:[%s1 + $0x498] sm:$0xff]
    %v176 = vld [vmem:[%s1 + $0x4a0] sm:$0xff]
    %v177 = vld [vmem:[%s1 + $0x4a8] sm:$0xff]
    %v178 = vld [vmem:[%s1 + $0x4b0] sm:$0xff]
    %v179 = vld [vmem:[%s1 + $0x4b8] sm:$0xff]
    %v180 = vld [vmem:[%s1 + $0x4c0] sm:$0xff]
    %v181 = vld [vmem:[%s1 + $0x4c8] sm:$0xff]
    %v182 = vld [vmem:[%s1 + $0x4d0] sm:$0xff]
    %v183 = vld [vmem:[%s1 + $0x4d8] sm:$0xff]
    %v184 = vld [vmem:[%s1 + $0x4e0] sm:$0xff]
    %v185 = vld [vmem:[%s1 + $0x4e8] sm:$0xff]
    %v186 = vld [vmem:[%s1 + $0x4f0] sm:$0xff]
    %v187 = vld [vmem:[%s1 + $0x4f8] sm:$0xff]
    %v188 = vld [vmem:[%s1 + $0x500] sm:$0xff]
    %v189 = vld [vmem:[%s1 + $0x508] sm:$0xff]
    %v190 = vld [vmem:[%s1 + $0x510] sm:$0xff]
    %v191 = vld [vmem:[%s1 + $0x518] sm:$0xff]
    %v192 = vld [vmem:[%s1 + $0x520] sm:$0xff]
    %v193 = vld [vmem:[%s1 + $0x528] sm:$0xff]
    %v194 = vld [vmem:[%s1 + $0x530] sm:$0xff]
    %v195 = vld [vmem:[%s1 + $0x538] sm:$0xff]
    %v196 = vld [vmem:[%s1 + $0x540] sm:$0xff]
    %v197 = vld [vmem:[%s1 + $0x548] sm:$0xff]
    %v198 = vld [vmem:[%s1 + $0x550] sm:$0xff]
    %v199 = vld [vmem:[%s1 + $0x558] sm:$0xff]
    %v200 = vld [vmem:[%s1 + $0x560] sm:$0xff]
    %v201 = vld [vmem:[%s1 + $0x568] sm:$0xff]
    %v202 = vld [vmem:[%s1 + $0x570] sm:$0xff]
    %v203 = vld [vmem:[%s1 + $0x578] sm:$0xff]
    %v204 = vld [vmem:[%s1 + $0x580] sm:$0xff]
    %v205 = vld [vmem:[%s1 + $0x588] sm:$0xff]
    %v206 = vld [vmem:[%s1 + $0x590] sm:$0xff]
    %v207 = vld [vmem:[%s1 + $0x598] sm:$0xff]
    %v208 = vld [vmem:[%s1 + $0x5a0] sm:$0xff]
    %v209 = vld [vmem:[%s1 + $0x5a8] sm:$0xff]
    %v210 = vld [vmem:[%s1 + $0x5b0] sm:$0xff]
    %v211 = vld [vmem:[%s1 + $0x5b8] sm:$0xff]
    %v212 = vld [vmem:[%s1 + $0x5c0] sm:$0xff]
    %v213 = vld [vmem:[%s1 + $0x5c8] sm:$0xff]
    %v214 = vld [vmem:[%s1 + $0x5d0] sm:$0xff]
    %v215 = vld [vmem:[%s1 + $0x5d8] sm:$0xff]
    %v216 = vld [vmem:[%s1 + $0x5e0] sm:$0xff]
    %v217 = vld [vmem:[%s1 + $0x5e8] sm:$0xff]
    %v218 = vld [vmem:[%s1 + $0x5f0] sm:$0xff]
    %v219 = vld [vmem:[%s1 + $0x5f8] sm:$0xff]
    %v220 = vld [vmem:[%s1 + $0x600] sm:$0xff]
    %v221 = vld [vmem:[%s1 + $0x608] sm:$0xff]
    %v222 = vld [vmem:[%s1 + $0x610] sm:$0xff]
    %v223 = vld [vmem:[%s1 + $0x618] sm:$0xff]
    %v224 = vld [vmem:[%s1 + $0x620] sm:$0xff]
    %v225 = vld [vmem:[%s1 + $0x628] sm:$0xff]
    %v226 = vld [vmem:[%s1 + $0x630] sm:$0xff]
    %v227 = vld [vmem:[%s1 + $0x638] sm:$0xff]
    %v228 = vld [vmem:[%s1 + $0x640] sm:$0xff]
    %v229 = vld [vmem:[%s1 + $0x648] sm:$0xff]
    %v230 = vld [vmem:[%s1 + $0x650] sm:$0xff]
    %v231 = vld [vmem:[%s1 + $0x658] sm:$0xff]
    %v232 = vld [vmem:[%s1 + $0x660] sm:$0xff]
    %v233 = vld [vmem:[%s1 + $0x668] sm:$0xff]
    %v234 = vld [vmem:[%s1 + $0x670] sm:$0xff]
    %v235 = vld [vmem:[%s1 + $0x678] sm:$0xff]
    %v236 = vld [vmem:[%s1 + $0x680] sm:$0xff]
    %v237 = vld [vmem:[%s1 + $0x688] sm:$0xff]
    %v238 = vld [vmem:[%s1 + $0x690] sm:$0xff]
    %v239 = vld [vmem:[%s1 + $0x698] sm:$0xff]
    %v240 = vld [vmem:[%s1 + $0x6a0] sm:$0xff]
    %v241 = vld [vmem:[%s1 + $0x6a8] sm:$0xff]
    %v242 = vld [vmem:[%s1 + $0x6b0] sm:$0xff]
    %v243 = vld [vmem:[%s1 + $0x6b8] sm:$0xff]
    %v244 = vld [vmem:[%s1 + $0x6c0] sm:$0xff]
    %v245 = vld [vmem:[%s1 + $0x6c8] sm:$0xff]
    %v246 = vld [vmem:[%s1 + $0x6d0] sm:$0xff]
    %v247 = vld [vmem:[%s1 + $0x6d8] sm:$0xff]
    %v248 = vld [vmem:[%s1 + $0x6e0] sm:$0xff]
    %v249 = vld [vmem:[%s1 + $0x6e8] sm:$0xff]
    %v250 = vld [vmem:[%s1 + $0x6f0] sm:$0xff]
    %v251 = vld [vmem:[%s1 + $0x6f8] sm:$0xff]
    %v252 = vld [vmem:[%s1 + $0x700] sm:$0xff]
    %v253 = vld [vmem:[%s1 + $0x708] sm:$0xff]
    %v254 = vld [vmem:[%s1 + $0x710] sm:$0xff]
    %v255 = vld [vmem:[%s1 + $0x718] sm:$0xff]
    %v256 = vld [vmem:[%s1 + $0x720] sm:$0xff]
    %v257 = vld [vmem:[%s1 + $0x728] sm:$0xff]
    %v258 = vld [vmem:[%s1 + $0x730] sm:$0xff]
    %v259 = vld [vmem:[%s1 + $0x738] sm:$0xff]
    %v260 = vld [vmem:[%s1 + $0x740] sm:$0xff]
    %v261 = vld [vmem:[%s1 + $0x748] sm:$0xff]
    %v262 = vld [vmem:[%s1 + $0x750] sm:$0xff]
    %v263 = vld [vmem:[%s1 + $0x758] sm:$0xff]
    %v264 = vld [vmem:[%s1 + $0x760] sm:$0xff]
    %v265 = vld [vmem:[%s1 + $0x768] sm:$0xff]
    %v266 = vld [vmem:[%s1 + $0x770] sm:$0xff]
    %v267 = vld [vmem:[%s1 + $0x778] sm:$0xff]
    %v268 = vld [vmem:[%s1 + $0x780] sm:$0xff]
    %v269 = vld [vmem:[%s1 + $0x788] sm:$0xff]
    %v270 = vld [vmem:[%s1 + $0x790] sm:$0xff]
    %v271 = vld [vmem:[%s1 + $0x798] sm:$0xff]
    %v272 = vld [vmem:[%s1 + $0x7a0] sm:$0xff]
    %v273 = vld [vmem:[%s1 + $0x7a8] sm:$0xff]
    %v274 = vld [vmem:[%s1 + $0x7b0] sm:$0xff]
    %v275 = vld [vmem:[%s1 + $0x7b8] sm:$0xff]
    %v276 = vld [vmem:[%s1 + $0x7c0] sm:$0xff]
    %v277 = vld [vmem:[%s1 + $0x7c8] sm:$0xff]
    %v278 = vld [vmem:[%s1 + $0x7d0] sm:$0xff]
    %v279 = vld [vmem:[%s1 + $0x7d8] sm:$0xff]
    %v280 = vld [vmem:[%s1 + $0x7e0] sm:$0xff]
    %v281 = vld [vmem:[%s1 + $0x7e8] sm:$0xff]
    %v282 = vld [vmem:[%s1 + $0x7f0] sm:$0xff]
    %v283 = vld [vmem:[%s1 + $0x7f8] sm:$0xff]
    %v284 = vld [vmem:[%s1 + $0x800] sm:$0xff]
    %v285 = vld [vmem:[%s1 + $0x808] sm:$0xff]
    %v286 = vld [vmem:[%s1 + $0x810] sm:$0xff]
    %v287 = vld [vmem:[%s1 + $0x818] sm:$0xff]
    %v288 = vld [vmem:[%s1 + $0x820] sm:$0xff]
    %v289 = vld [vmem:[%s1 + $0x828] sm:$0xff]
    %v290 = vld [vmem:[%s1 + $0x830] sm:$0xff]
    %v291 = vld [vmem:[%s1 + $0x838] sm:$0xff]
    %v292 = vld [vmem:[%s1 + $0x840] sm:$0xff]
    %v293 = vld [vmem:[%s1 + $0x848] sm:$0xff]
    %v294 = vld [vmem:[%s1 + $0x850] sm:$0xff]
    %v295 = vld [vmem:[%s1 + $0x858] sm:$0xff]
    %v296 = vld [vmem:[%s1 + $0x860] sm:$0xff]
    %v297 = vld [vmem:[%s1 + $0x868] sm:$0xff]
    %v298 = vld [vmem:[%s1 + $0x870] sm:$0xff]
    %v299 = vld [vmem:[%s1 + $0x878] sm:$0xff]
    %v300 = vld [vmem:[%s1 + $0x880] sm:$0xff]
    %v301 = vld [vmem:[%s1 + $0x888] sm:$0xff]
    %v302 = vld [vmem:[%s1 + $0x890] sm:$0xff]
    %v303 = vld [vmem:[%s1 + $0x898] sm:$0xff]
    %v304 = vld [vmem:[%s1 + $0x8a0] sm:$0xff]
    %v305 = vld [vmem:[%s1 + $0x8a8] sm:$0xff]
    %v306 = vld [vmem:[%s1 + $0x8b0] sm:$0xff]
    %v307 = vld [vmem:[%s1 + $0x8b8] sm:$0xff]
    %v308 = vld [vmem:[%s1 + $0x8c0] sm:$0xff]
    %v309 = vld [vmem:[%s1 + $0x8c8] sm:$0xff]
    %v310 = vld [vmem:[%s1 + $0x8d0] sm:$0xff]
    %v311 = vld [vmem:[%s1 + $0x8d8] sm:$0xff]
    %v312 = vld [vmem:[%s1 + $0x8e0] sm:$0xff]
    %v313 = vld [vmem:[%s1 + $0x8e8] sm:$0xff]
    %v314 = vld [vmem:[%s1 + $0x8f0] sm:$0xff]
    %v315 = vld [vmem:[%s1 + $0x8f8] sm:$0xff]
    %v316 = vld [vmem:[%s1 + $0x900] sm:$0xff]
    %v317 = vld [vmem:[%s1 + $0x908] sm:$0xff]
    %v318 = vld [vmem:[%s1 + $0x910] sm:$0xff]
    %v319 = vld [vmem:[%s1 + $0x918] sm:$0xff]
    %v320 = vld [vmem:[%s1 + $0x920] sm:$0xff]
    %v321 = vld [vmem:[%s1 + $0x928] sm:$0xff]
    %v322 = vld [vmem:[%s1 + $0x930] sm:$0xff]
    %v323 = vld [vmem:[%s1 + $0x938] sm:$0xff]
    %v324 = vld [vmem:[%s1 + $0x940] sm:$0xff]
    %v325 = vld [vmem:[%s1 + $0x948] sm:$0xff]
    %v326 = vld [vmem:[%s1 + $0x950] sm:$0xff]
    %v327 = vld [vmem:[%s1 + $0x958] sm:$0xff]
    %v328 = vld [vmem:[%s1 + $0x960] sm:$0xff]
    %v329 = vld [vmem:[%s1 + $0x968] sm:$0xff]
    %v330 = vld [vmem:[%s1 + $0x970] sm:$0xff]
    %v331 = vld [vmem:[%s1 + $0x978] sm:$0xff]
    %v332 = vld [vmem:[%s1 + $0x980] sm:$0xff]
    %v333 = vld [vmem:[%s1 + $0x988] sm:$0xff]
    %v334 = vld [vmem:[%s1 + $0x990] sm:$0xff]
    %v335 = vld [vmem:[%s1 + $0x998] sm:$0xff]
    %v336 = vld [vmem:[%s1 + $0x9a0] sm:$0xff]
    %v337 = vld [vmem:[%s1 + $0x9a8] sm:$0xff]
    %v338 = vld [vmem:[%s1 + $0x9b0] sm:$0xff]
    %v339 = vld [vmem:[%s1 + $0x9b8] sm:$0xff]
    %v340 = vld [vmem:[%s1 + $0x9c0] sm:$0xff]
    %v341 = vld [vmem:[%s1 + $0x9c8] sm:$0xff]
    %v342 = vld [vmem:[%s1 + $0x9d0] sm:$0xff]
    %v343 = vld [vmem:[%s1 + $0x9d8] sm:$0xff]
    %v344 = vld [vmem:[%s1 + $0x9e0] sm:$0xff]
    %v345 = vld [vmem:[%s1 + $0x9e8] sm:$0xff]
    %v346 = vld [vmem:[%s1 + $0x9f0] sm:$0xff]
    %v347 = vld [vmem:[%s1 + $0x9f8] sm:$0xff]
    %v348 = vld [vmem:[%s1 + $0xa00] sm:$0xff]
    %v349 = vld [vmem:[%s1 + $0xa08] sm:$0xff]
    %v350 = vld [vmem:[%s1 + $0xa10] sm:$0xff]
    %v351 = vld [vmem:[%s1 + $0xa18] sm:$0xff]
    %v352 = vld [vmem:[%s1 + $0xa20] sm:$0xff]
    %v353 = vld [vmem:[%s1 + $0xa28] sm:$0xff]
    %v354 = vld [vmem:[%s1 + $0xa30] sm:$0xff]
    %v355 = vld [vmem:[%s1 + $0xa38] sm:$0xff]
    %v356 = vld [vmem:[%s1 + $0xa40] sm:$0xff]
    %v357 = vld [vmem:[%s1 + $0xa48] sm:$0xff]
    %v358 = vld [vmem:[%s1 + $0xa50] sm:$0xff]
    %v359 = vld [vmem:[%s1 + $0xa58] sm:$0xff]
    %v360 = vld [vmem:[%s1 + $0xa60] sm:$0xff]
    %v361 = vld [vmem:[%s1 + $0xa68] sm:$0xff]
    %v362 = vld [vmem:[%s1 + $0xa70] sm:$0xff]
    %v363 = vld [vmem:[%s1 + $0xa78] sm:$0xff]
    %v364 = vld [vmem:[%s1 + $0xa80] sm:$0xff]
    %v365 = vld [vmem:[%s1 + $0xa88] sm:$0xff]
    %v366 = vld [vmem:[%s1 + $0xa90] sm:$0xff]
    %v367 = vld [vmem:[%s1 + $0xa98] sm:$0xff]
    %v368 = vld [vmem:[%s1 + $0xaa0] sm:$0xff]
    %v369 = vld [vmem:[%s1 + $0xaa8] sm:$0xff]
    %v370 = vld [vmem:[%s1 + $0xab0] sm:$0xff]
    %v371 = vld [vmem:[%s1 + $0xab8] sm:$0xff]
    %v372 = vld [vmem:[%s1 + $0xac0] sm:$0xff]
    %v373 = vld [vmem:[%s1 + $0xac8] sm:$0xff]
    %v374 = vld [vmem:[%s1 + $0xad0] sm:$0xff]
    %v375 = vld [vmem:[%s1 + $0xad8] sm:$0xff]
    %v376 = vld [vmem:[%s1 + $0xae0] sm:$0xff]
    %v377 = vld [vmem:[%s1 + $0xae8] sm:$0xff]
    %v378 = vld [vmem:[%s1 + $0xaf0] sm:$0xff]
    %v379 = vld [vmem:[%s1 + $0xaf8] sm:$0xff]
    %v380 = vld [vmem:[%s1 + $0xb00] sm:$0xff]
    %v381 = vld [vmem:[%s1 + $0xb08] sm:$0xff]
    %v382 = vld [vmem:[%s1 + $0xb10] sm:$0xff]
    %v383 = vld [vmem:[%s1 + $0xb18] sm:$0xff]
    %v384 = vld [vmem:[%s1 + $0xb20] sm:$0xff]
    %v385 = vld [vmem:[%s1 + $0xb28] sm:$0xff]
    %v386 = vld [vmem:[%s1 + $0xb30] sm:$0xff]
    %v387 = vld [vmem:[%s1 + $0xb38] sm:$0xff]
    %v388 = vld [vmem:[%s1 + $0xb40] sm:$0xff]
    %v389 = vld [vmem:[%s1 + $0xb48] sm:$0xff]
    %v390 = vld [vmem:[%s1 + $0xb50] sm:$0xff]
    %v391 = vld [vmem:[%s1 + $0xb58] sm:$0xff]
    %v392 = vld [vmem:[%s1 + $0xb60] sm:$0xff]
    %v393 = vld [vmem:[%s1 + $0xb68] sm:$0xff]
    %v394 = vld [vmem:[%s1 + $0xb70] sm:$0xff]
    %v395 = vld [vmem:[%s1 + $0xb78] sm:$0xff]
    %v396 = vld [vmem:[%s1 + $0xb80] sm:$0xff]
    %v397 = vld [vmem:[%s1 + $0xb88] sm:$0xff]
    %v398 = vld [vmem:[%s1 + $0xb90] sm:$0xff]
    %v399 = vld [vmem:[%s1 + $0xb98] sm:$0xff]
    %v400 = vld [vmem:[%s1 + $0xba0] sm:$0xff]
    %v401 = vld [vmem:[%s1 + $0xba8] sm:$0xff]
    %v402 = vld [vmem:[%s1 + $0xbb0] sm:$0xff]
    %v403 = vld [vmem:[%s1 + $0xbb8] sm:$0xff]
    %v404 = vld [vmem:[%s1 + $0xbc0] sm:$0xff]
    %v405 = vld [vmem:[%s1 + $0xbc8] sm:$0xff]
    %v406 = vld [vmem:[%s1 + $0xbd0] sm:$0xff]
    %v407 = vld [vmem:[%s1 + $0xbd8] sm:$0xff]
    %v408 = vld [vmem:[%s1 + $0xbe0] sm:$0xff]
    %v409 = vld [vmem:[%s1 + $0xbe8] sm:$0xff]
    %v410 = vld [vmem:[%s1 + $0xbf0] sm:$0xff]
    %v411 = vld [vmem:[%s1 + $0xbf8] sm:$0xff]
    %v412 = vld [vmem:[%s1 + $0xc00] sm:$0xff]
    %v413 = vld [vmem:[%s1 + $0xc08] sm:$0xff]
    %v414 = vld [vmem:[%s1 + $0xc10] sm:$0xff]
    %v415 = vld [vmem:[%s1 + $0xc18] sm:$0xff]
    %v416 = vld [vmem:[%s1 + $0xc20] sm:$0xff]
    %v417 = vld [vmem:[%s1 + $0xc28] sm:$0xff]
    %v418 = vld [vmem:[%s1 + $0xc30] sm:$0xff]
    %v419 = vld [vmem:[%s1 + $0xc38] sm:$0xff]
    %v420 = vld [vmem:[%s1 + $0xc40] sm:$0xff]
    %v421 = vld [vmem:[%s1 + $0xc48] sm:$0xff]
    %v422 = vld [vmem:[%s1 + $0xc50] sm:$0xff]
    %v423 = vld [vmem:[%s1 + $0xc58] sm:$0xff]
    %v424 = vld [vmem:[%s1 + $0xc60] sm:$0xff]
    %v425 = vld [vmem:[%s1 + $0xc68] sm:$0xff]
    %v426 = vld [vmem:[%s1 + $0xc70] sm:$0xff]
    %v427 = vld [vmem:[%s1 + $0xc78] sm:$0xff]
    %v428 = vld [vmem:[%s1 + $0xc80] sm:$0xff]
    %v429 = vld [vmem:[%s1 + $0xc88] sm:$0xff]
    %v430 = vld [vmem:[%s1 + $0xc90] sm:$0xff]
    %v431 = vld [vmem:[%s1 + $0xc98] sm:$0xff]
    %v432 = vld [vmem:[%s1 + $0xca0] sm:$0xff]
    %v433 = vld [vmem:[%s1 + $0xca8] sm:$0xff]
    %v434 = vld [vmem:[%s1 + $0xcb0] sm:$0xff]
    %v435 = vld [vmem:[%s1 + $0xcb8] sm:$0xff]
    %v436 = vld [vmem:[%s1 + $0xcc0] sm:$0xff]
    %v437 = vld [vmem:[%s1 + $0xcc8] sm:$0xff]
    %v438 = vld [vmem:[%s1 + $0xcd0] sm:$0xff]
    %v439 = vld [vmem:[%s1 + $0xcd8] sm:$0xff]
    %v440 = vld [vmem:[%s1 + $0xce0] sm:$0xff]
    %v441 = vld [vmem:[%s1 + $0xce8] sm:$0xff]
    %v442 = vld [vmem:[%s1 + $0xcf0] sm:$0xff]
    %v443 = vld [vmem:[%s1 + $0xcf8] sm:$0xff]
    %v444 = vld [vmem:[%s1 + $0xd00] sm:$0xff]
    %v445 = vld [vmem:[%s1 + $0xd08] sm:$0xff]
    %v446 = vld [vmem:[%s1 + $0xd10] sm:$0xff]
    %v447 = vld [vmem:[%s1 + $0xd18] sm:$0xff]
    %v448 = vld [vmem:[%s1 + $0xd20] sm:$0xff]
    %v449 = vld [vmem:[%s1 + $0xd28] sm:$0xff]
    %v450 = vld [vmem:[%s1 + $0xd30] sm:$0xff]
    %v451 = vld [vmem:[%s1 + $0xd38] sm:$0xff]
    %v452 = vld [vmem:[%s1 + $0xd40] sm:$0xff]
    %v453 = vld [vmem:[%s1 + $0xd48] sm:$0xff]
    %v454 = vld [vmem:[%s1 + $0xd50] sm:$0xff]
    %v455 = vld [vmem:[%s1 + $0xd58] sm:$0xff]
    %v456 = vld [vmem:[%s1 + $0xd60] sm:$0xff]
    %v457 = vld [vmem:[%s1 + $0xd68] sm:$0xff]
    %v458 = vld [vmem:[%s1 + $0xd70] sm:$0xff]
    %v459 = vld [vmem:[%s1 + $0xd78] sm:$0xff]
    %v460 = vld [vmem:[%s1 + $0xd80] sm:$0xff]
    %v461 = vld [vmem:[%s1 + $0xd88] sm:$0xff]
    %v462 = vld [vmem:[%s1 + $0xd90] sm:$0xff]
    %v463 = vld [vmem:[%s1 + $0xd98] sm:$0xff]
    %v464 = vld [vmem:[%s1 + $0xda0] sm:$0xff]
    %v465 = vld [vmem:[%s1 + $0xda8] sm:$0xff]
    %v466 = vld [vmem:[%s1 + $0xdb0] sm:$0xff]
    %v467 = vld [vmem:[%s1 + $0xdb8] sm:$0xff]
    %v468 = vld [vmem:[%s1 + $0xdc0] sm:$0xff]
    %v469 = vld [vmem:[%s1 + $0xdc8] sm:$0xff]
    %v470 = vld [vmem:[%s1 + $0xdd0] sm:$0xff]
    %v471 = vld [vmem:[%s1 + $0xdd8] sm:$0xff]
    %v472 = vld [vmem:[%s1 + $0xde0] sm:$0xff]
    %v473 = vld [vmem:[%s1 + $0xde8] sm:$0xff]
    %v474 = vld [vmem:[%s1 + $0xdf0] sm:$0xff]
    %v475 = vld [vmem:[%s1 + $0xdf8] sm:$0xff]
    %v476 = vld [vmem:[%s2] sm:$0x1]
    %v478 = vperm.slane %v476, 0
    %487 = vst [vmem:[#allocation1] ss:$4 sm:$0xff] %v21
    %s488 = scalar_lea.vmem [#allocation1], 32
    %489 = vst [vmem:[%s488] ss:$4 sm:$0xff] %v22
    %v490 = vld.sshfl [vmem:[#allocation1] sm:$0xff pattern:$0x73625140]
    %v491 = vld.sshfl [vmem:[#allocation1 + $0x8] sm:$0xff pattern:$0x73625140]
    %v492 = vld.sshfl [vmem:[#allocation1 + $0x10] sm:$0xff pattern:$0x73625140]
    %v493 = vld.sshfl [vmem:[#allocation1 + $0x18] sm:$0xff pattern:$0x73625140]
    %v494 = vld.sshfl [vmem:[#allocation1 + $0x20] sm:$0xff pattern:$0x73625140]
    %v495 = vld.sshfl [vmem:[#allocation1 + $0x28] sm:$0xff pattern:$0x73625140]
    %v496 = vld.sshfl [vmem:[#allocation1 + $0x30] sm:$0xff pattern:$0x73625140]
    %v497 = vld.sshfl [vmem:[#allocation1 + $0x38] sm:$0xff pattern:$0x73625140]
    %498 = vst [vmem:[#allocation1] ss:$4 sm:$0xff] %v23
    %499 = vst [vmem:[%s488] ss:$4 sm:$0xff] %v24
    %v500 = vld.sshfl [vmem:[#allocation1] sm:$0xff pattern:$0x73625140]
    %v501 = vld.sshfl [vmem:[#allocation1 + $0x8] sm:$0xff pattern:$0x73625140]
    %v502 = vld.sshfl [vmem:[#allocation1 + $0x10] sm:$0xff pattern:$0x73625140]
    %v503 = vld.sshfl [vmem:[#allocation1 + $0x18] sm:$0xff pattern:$0x73625140]
    %v504 = vld.sshfl [vmem:[#allocation1 + $0x20] sm:$0xff pattern:$0x73625140]
    %v505 = vld.sshfl [vmem:[#allocation1 + $0x28] sm:$0xff pattern:$0x73625140]
    %v506 = vld.sshfl [vmem:[#allocation1 + $0x30] sm:$0xff pattern:$0x73625140]
    %v507 = vld.sshfl [vmem:[#allocation1 + $0x38] sm:$0xff pattern:$0x73625140]
    %508 = vst [vmem:[#allocation1] ss:$4 sm:$0xff] %v25
    %509 = vst [vmem:[%s488] ss:$4 sm:$0xff] %v26
    %v510 = vld.sshfl [vmem:[#allocation1] sm:$0xff pattern:$0x73625140]
    %v511 = vld.sshfl [vmem:[#allocation1 + $0x8] sm:$0xff pattern:$0x73625140]
    %v512 = vld.sshfl [vmem:[#allocation1 + $0x10] sm:$0xff pattern:$0x73625140]
    %v513 = vld.sshfl [vmem:[#allocation1 + $0x18] sm:$0xff pattern:$0x73625140]
    %v514 = vld.sshfl [vmem:[#allocation1 + $0x20] sm:$0xff pattern:$0x73625140]
    %v515 = vld.sshfl [vmem:[#allocation1 + $0x28] sm:$0xff pattern:$0x73625140]
    %v516 = vld.sshfl [vmem:[#allocation1 + $0x30] sm:$0xff pattern:$0x73625140]
    %v517 = vld.sshfl [vmem:[#allocation1 + $0x38] sm:$0xff pattern:$0x73625140]
    %518 = vst [vmem:[#allocation1] ss:$4 sm:$0xff] %v27
    %v519 = vld.sshfl [vmem:[#allocation1] sm:$0xff pattern:$0x73625140]
    %v520 = vld.sshfl [vmem:[#allocation1 + $0x8] sm:$0xff pattern:$0x73625140]
    %v521 = vld.sshfl [vmem:[#allocation1 + $0x10] sm:$0xff pattern:$0x73625140]
    %v522 = vld.sshfl [vmem:[#allocation1 + $0x18] sm:$0xff pattern:$0x73625140]
    %551 = vmatpush.msra.mxu0 %v43
    %552 = vmatpush.msra.mxu0 %v42
    %553 = vmatpush.msra.mxu0 %v41
    %554 = vmatpush.msra.mxu0 %v40
    %555 = vmatpush.msra.mxu0 %v39
    %556 = vmatpush.msra.mxu0 %v38
    %557 = vmatpush.msra.mxu0 %v37
    %558 = vmatpush.msra.mxu0 %v36
    %559 = vmatpush.msra.mxu0 %v35
    %560 = vmatpush.msra.mxu0 %v34
    %561 = vmatpush.msra.mxu0 %v33
    %562 = vmatpush.msra.mxu0 %v32
    %563 = vmatpush.msra.mxu0 %v31
    %564 = vmatpush.msra.mxu0 %v30
    %565 = vmatpush.msra.mxu0 %v29
    %566 = vmatpush.msra.mxu0 %v28
    %567 = vmatmul.f32.gmra.mxu0 %v490
    %v568 = vpop.f32.mrf.mxu0
    %v569 = vadd.f32 %v478, %v568
    %570 = vdwg.mxu0
    %571 = vmatpush.msra.mxu0 %v59
    %572 = vmatpush.msra.mxu0 %v58
    %573 = vmatpush.msra.mxu0 %v57
    %574 = vmatpush.msra.mxu0 %v56
    %575 = vmatpush.msra.mxu0 %v55
    %576 = vmatpush.msra.mxu0 %v54
    %577 = vmatpush.msra.mxu0 %v53
    %578 = vmatpush.msra.mxu0 %v52
    %579 = vmatpush.msra.mxu0 %v51
    %580 = vmatpush.msra.mxu0 %v50
    %581 = vmatpush.msra.mxu0 %v49
    %582 = vmatpush.msra.mxu0 %v48
    %583 = vmatpush.msra.mxu0 %v47
    %584 = vmatpush.msra.mxu0 %v46
    %585 = vmatpush.msra.mxu0 %v45
    %586 = vmatpush.msra.mxu0 %v44
    %587 = vmatmul.f32.gmra.mxu0 %v491
    %v588 = vpop.f32.mrf.mxu0
    %v589 = vadd.f32 %v569, %v588
    %590 = vdwg.mxu0
    %591 = vmatpush.msra.mxu0 %v75
    %592 = vmatpush.msra.mxu0 %v74
    %593 = vmatpush.msra.mxu0 %v73
    %594 = vmatpush.msra.mxu0 %v72
    %595 = vmatpush.msra.mxu0 %v71
    %596 = vmatpush.msra.mxu0 %v70
    %597 = vmatpush.msra.mxu0 %v69
    %598 = vmatpush.msra.mxu0 %v68
    %599 = vmatpush.msra.mxu0 %v67
    %600 = vmatpush.msra.mxu0 %v66
    %601 = vmatpush.msra.mxu0 %v65
    %602 = vmatpush.msra.mxu0 %v64
    %603 = vmatpush.msra.mxu0 %v63
    %604 = vmatpush.msra.mxu0 %v62
    %605 = vmatpush.msra.mxu0 %v61
    %606 = vmatpush.msra.mxu0 %v60
    %607 = vmatmul.f32.gmra.mxu0 %v492
    %v608 = vpop.f32.mrf.mxu0
    %v609 = vadd.f32 %v589, %v608
    %610 = vdwg.mxu0
    %611 = vmatpush.msra.mxu0 %v91
    %612 = vmatpush.msra.mxu0 %v90
    %613 = vmatpush.msra.mxu0 %v89
    %614 = vmatpush.msra.mxu0 %v88
    %615 = vmatpush.msra.mxu0 %v87
    %616 = vmatpush.msra.mxu0 %v86
    %617 = vmatpush.msra.mxu0 %v85
    %618 = vmatpush.msra.mxu0 %v84
    %619 = vmatpush.msra.mxu0 %v83
    %620 = vmatpush.msra.mxu0 %v82
    %621 = vmatpush.msra.mxu0 %v81
    %622 = vmatpush.msra.mxu0 %v80
    %623 = vmatpush.msra.mxu0 %v79
    %624 = vmatpush.msra.mxu0 %v78
    %625 = vmatpush.msra.mxu0 %v77
    %626 = vmatpush.msra.mxu0 %v76
    %627 = vmatmul.f32.gmra.mxu0 %v493
    %v628 = vpop.f32.mrf.mxu0
    %v629 = vadd.f32 %v609, %v628
    %630 = vdwg.mxu0
    %631 = vmatpush.msra.mxu0 %v107
    %632 = vmatpush.msra.mxu0 %v106
    %633 = vmatpush.msra.mxu0 %v105
    %634 = vmatpush.msra.mxu0 %v104
    %635 = vmatpush.msra.mxu0 %v103
    %636 = vmatpush.msra.mxu0 %v102
    %637 = vmatpush.msra.mxu0 %v101
    %638 = vmatpush.msra.mxu0 %v100
    %639 = vmatpush.msra.mxu0 %v99
    %640 = vmatpush.msra.mxu0 %v98
    %641 = vmatpush.msra.mxu0 %v97
    %642 = vmatpush.msra.mxu0 %v96
    %643 = vmatpush.msra.mxu0 %v95
    %644 = vmatpush.msra.mxu0 %v94
    %645 = vmatpush.msra.mxu0 %v93
    %646 = vmatpush.msra.mxu0 %v92
    %647 = vmatmul.f32.gmra.mxu0 %v494
    %v648 = vpop.f32.mrf.mxu0
    %v649 = vadd.f32 %v629, %v648
    %650 = vdwg.mxu0
    %651 = vmatpush.msra.mxu0 %v123
    %652 = vmatpush.msra.mxu0 %v122
    %653 = vmatpush.msra.mxu0 %v121
    %654 = vmatpush.msra.mxu0 %v120
    %655 = vmatpush.msra.mxu0 %v119
    %656 = vmatpush.msra.mxu0 %v118
    %657 = vmatpush.msra.mxu0 %v117
    %658 = vmatpush.msra.mxu0 %v116
    %659 = vmatpush.msra.mxu0 %v115
    %660 = vmatpush.msra.mxu0 %v114
    %661 = vmatpush.msra.mxu0 %v113
    %662 = vmatpush.msra.mxu0 %v112
    %663 = vmatpush.msra.mxu0 %v111
    %664 = vmatpush.msra.mxu0 %v110
    %665 = vmatpush.msra.mxu0 %v109
    %666 = vmatpush.msra.mxu0 %v108
    %667 = vmatmul.f32.gmra.mxu0 %v495
    %v668 = vpop.f32.mrf.mxu0
    %v669 = vadd.f32 %v649, %v668
    %670 = vdwg.mxu0
    %671 = vmatpush.msra.mxu0 %v139
    %672 = vmatpush.msra.mxu0 %v138
    %673 = vmatpush.msra.mxu0 %v137
    %674 = vmatpush.msra.mxu0 %v136
    %675 = vmatpush.msra.mxu0 %v135
    %676 = vmatpush.msra.mxu0 %v134
    %677 = vmatpush.msra.mxu0 %v133
    %678 = vmatpush.msra.mxu0 %v132
    %679 = vmatpush.msra.mxu0 %v131
    %680 = vmatpush.msra.mxu0 %v130
    %681 = vmatpush.msra.mxu0 %v129
    %682 = vmatpush.msra.mxu0 %v128
    %683 = vmatpush.msra.mxu0 %v127
    %684 = vmatpush.msra.mxu0 %v126
    %685 = vmatpush.msra.mxu0 %v125
    %686 = vmatpush.msra.mxu0 %v124
    %687 = vmatmul.f32.gmra.mxu0 %v496
    %v688 = vpop.f32.mrf.mxu0
    %v689 = vadd.f32 %v669, %v688
    %690 = vdwg.mxu0
    %691 = vmatpush.msra.mxu0 %v155
    %692 = vmatpush.msra.mxu0 %v154
    %693 = vmatpush.msra.mxu0 %v153
    %694 = vmatpush.msra.mxu0 %v152
    %695 = vmatpush.msra.mxu0 %v151
    %696 = vmatpush.msra.mxu0 %v150
    %697 = vmatpush.msra.mxu0 %v149
    %698 = vmatpush.msra.mxu0 %v148
    %699 = vmatpush.msra.mxu0 %v147
    %700 = vmatpush.msra.mxu0 %v146
    %701 = vmatpush.msra.mxu0 %v145
    %702 = vmatpush.msra.mxu0 %v144
    %703 = vmatpush.msra.mxu0 %v143
    %704 = vmatpush.msra.mxu0 %v142
    %705 = vmatpush.msra.mxu0 %v141
    %706 = vmatpush.msra.mxu0 %v140
    %707 = vmatmul.f32.gmra.mxu0 %v497
    %v708 = vpop.f32.mrf.mxu0
    %v709 = vadd.f32 %v689, %v708
    %710 = vdwg.mxu0
    %711 = vmatpush.msra.mxu0 %v171
    %712 = vmatpush.msra.mxu0 %v170
    %713 = vmatpush.msra.mxu0 %v169
    %714 = vmatpush.msra.mxu0 %v168
    %715 = vmatpush.msra.mxu0 %v167
    %716 = vmatpush.msra.mxu0 %v166
    %717 = vmatpush.msra.mxu0 %v165
    %718 = vmatpush.msra.mxu0 %v164
    %719 = vmatpush.msra.mxu0 %v163
    %720 = vmatpush.msra.mxu0 %v162
    %721 = vmatpush.msra.mxu0 %v161
    %722 = vmatpush.msra.mxu0 %v160
    %723 = vmatpush.msra.mxu0 %v159
    %724 = vmatpush.msra.mxu0 %v158
    %725 = vmatpush.msra.mxu0 %v157
    %726 = vmatpush.msra.mxu0 %v156
    %727 = vmatmul.f32.gmra.mxu0 %v500
    %v728 = vpop.f32.mrf.mxu0
    %v729 = vadd.f32 %v709, %v728
    %730 = vdwg.mxu0
    %731 = vmatpush.msra.mxu0 %v187
    %732 = vmatpush.msra.mxu0 %v186
    %733 = vmatpush.msra.mxu0 %v185
    %734 = vmatpush.msra.mxu0 %v184
    %735 = vmatpush.msra.mxu0 %v183
    %736 = vmatpush.msra.mxu0 %v182
    %737 = vmatpush.msra.mxu0 %v181
    %738 = vmatpush.msra.mxu0 %v180
    %739 = vmatpush.msra.mxu0 %v179
    %740 = vmatpush.msra.mxu0 %v178
    %741 = vmatpush.msra.mxu0 %v177
    %742 = vmatpush.msra.mxu0 %v176
    %743 = vmatpush.msra.mxu0 %v175
    %744 = vmatpush.msra.mxu0 %v174
    %745 = vmatpush.msra.mxu0 %v173
    %746 = vmatpush.msra.mxu0 %v172
    %747 = vmatmul.f32.gmra.mxu0 %v501
    %v748 = vpop.f32.mrf.mxu0
    %v749 = vadd.f32 %v729, %v748
    %750 = vdwg.mxu0
    %751 = vmatpush.msra.mxu0 %v203
    %752 = vmatpush.msra.mxu0 %v202
    %753 = vmatpush.msra.mxu0 %v201
    %754 = vmatpush.msra.mxu0 %v200
    %755 = vmatpush.msra.mxu0 %v199
    %756 = vmatpush.msra.mxu0 %v198
    %757 = vmatpush.msra.mxu0 %v197
    %758 = vmatpush.msra.mxu0 %v196
    %759 = vmatpush.msra.mxu0 %v195
    %760 = vmatpush.msra.mxu0 %v194
    %761 = vmatpush.msra.mxu0 %v193
    %762 = vmatpush.msra.mxu0 %v192
    %763 = vmatpush.msra.mxu0 %v191
    %764 = vmatpush.msra.mxu0 %v190
    %765 = vmatpush.msra.mxu0 %v189
    %766 = vmatpush.msra.mxu0 %v188
    %767 = vmatmul.f32.gmra.mxu0 %v502
    %v768 = vpop.f32.mrf.mxu0
    %v769 = vadd.f32 %v749, %v768
    %770 = vdwg.mxu0
    %771 = vmatpush.msra.mxu0 %v219
    %772 = vmatpush.msra.mxu0 %v218
    %773 = vmatpush.msra.mxu0 %v217
    %774 = vmatpush.msra.mxu0 %v216
    %775 = vmatpush.msra.mxu0 %v215
    %776 = vmatpush.msra.mxu0 %v214
    %777 = vmatpush.msra.mxu0 %v213
    %778 = vmatpush.msra.mxu0 %v212
    %779 = vmatpush.msra.mxu0 %v211
    %780 = vmatpush.msra.mxu0 %v210
    %781 = vmatpush.msra.mxu0 %v209
    %782 = vmatpush.msra.mxu0 %v208
    %783 = vmatpush.msra.mxu0 %v207
    %784 = vmatpush.msra.mxu0 %v206
    %785 = vmatpush.msra.mxu0 %v205
    %786 = vmatpush.msra.mxu0 %v204
    %787 = vmatmul.f32.gmra.mxu0 %v503
    %v788 = vpop.f32.mrf.mxu0
    %v789 = vadd.f32 %v769, %v788
    %790 = vdwg.mxu0
    %791 = vmatpush.msra.mxu0 %v235
    %792 = vmatpush.msra.mxu0 %v234
    %793 = vmatpush.msra.mxu0 %v233
    %794 = vmatpush.msra.mxu0 %v232
    %795 = vmatpush.msra.mxu0 %v231
    %796 = vmatpush.msra.mxu0 %v230
    %797 = vmatpush.msra.mxu0 %v229
    %798 = vmatpush.msra.mxu0 %v228
    %799 = vmatpush.msra.mxu0 %v227
    %800 = vmatpush.msra.mxu0 %v226
    %801 = vmatpush.msra.mxu0 %v225
    %802 = vmatpush.msra.mxu0 %v224
    %803 = vmatpush.msra.mxu0 %v223
    %804 = vmatpush.msra.mxu0 %v222
    %805 = vmatpush.msra.mxu0 %v221
    %806 = vmatpush.msra.mxu0 %v220
    %807 = vmatmul.f32.gmra.mxu0 %v504
    %v808 = vpop.f32.mrf.mxu0
    %v809 = vadd.f32 %v789, %v808
    %810 = vdwg.mxu0
    %811 = vmatpush.msra.mxu0 %v251
    %812 = vmatpush.msra.mxu0 %v250
    %813 = vmatpush.msra.mxu0 %v249
    %814 = vmatpush.msra.mxu0 %v248
    %815 = vmatpush.msra.mxu0 %v247
    %816 = vmatpush.msra.mxu0 %v246
    %817 = vmatpush.msra.mxu0 %v245
    %818 = vmatpush.msra.mxu0 %v244
    %819 = vmatpush.msra.mxu0 %v243
    %820 = vmatpush.msra.mxu0 %v242
    %821 = vmatpush.msra.mxu0 %v241
    %822 = vmatpush.msra.mxu0 %v240
    %823 = vmatpush.msra.mxu0 %v239
    %824 = vmatpush.msra.mxu0 %v238
    %825 = vmatpush.msra.mxu0 %v237
    %826 = vmatpush.msra.mxu0 %v236
    %827 = vmatmul.f32.gmra.mxu0 %v505
    %v828 = vpop.f32.mrf.mxu0
    %v829 = vadd.f32 %v809, %v828
    %830 = vdwg.mxu0
    %831 = vmatpush.msra.mxu0 %v267
    %832 = vmatpush.msra.mxu0 %v266
    %833 = vmatpush.msra.mxu0 %v265
    %834 = vmatpush.msra.mxu0 %v264
    %835 = vmatpush.msra.mxu0 %v263
    %836 = vmatpush.msra.mxu0 %v262
    %837 = vmatpush.msra.mxu0 %v261
    %838 = vmatpush.msra.mxu0 %v260
    %839 = vmatpush.msra.mxu0 %v259
    %840 = vmatpush.msra.mxu0 %v258
    %841 = vmatpush.msra.mxu0 %v257
    %842 = vmatpush.msra.mxu0 %v256
    %843 = vmatpush.msra.mxu0 %v255
    %844 = vmatpush.msra.mxu0 %v254
    %845 = vmatpush.msra.mxu0 %v253
    %846 = vmatpush.msra.mxu0 %v252
    %847 = vmatmul.f32.gmra.mxu0 %v506
    %v848 = vpop.f32.mrf.mxu0
    %v849 = vadd.f32 %v829, %v848
    %850 = vdwg.mxu0
    %851 = vmatpush.msra.mxu0 %v283
    %852 = vmatpush.msra.mxu0 %v282
    %853 = vmatpush.msra.mxu0 %v281
    %854 = vmatpush.msra.mxu0 %v280
    %855 = vmatpush.msra.mxu0 %v279
    %856 = vmatpush.msra.mxu0 %v278
    %857 = vmatpush.msra.mxu0 %v277
    %858 = vmatpush.msra.mxu0 %v276
    %859 = vmatpush.msra.mxu0 %v275
    %860 = vmatpush.msra.mxu0 %v274
    %861 = vmatpush.msra.mxu0 %v273
    %862 = vmatpush.msra.mxu0 %v272
    %863 = vmatpush.msra.mxu0 %v271
    %864 = vmatpush.msra.mxu0 %v270
    %865 = vmatpush.msra.mxu0 %v269
    %866 = vmatpush.msra.mxu0 %v268
    %867 = vmatmul.f32.gmra.mxu0 %v507
    %v868 = vpop.f32.mrf.mxu0
    %v869 = vadd.f32 %v849, %v868
    %870 = vdwg.mxu0
    %871 = vmatpush.msra.mxu0 %v299
    %872 = vmatpush.msra.mxu0 %v298
    %873 = vmatpush.msra.mxu0 %v297
    %874 = vmatpush.msra.mxu0 %v296
    %875 = vmatpush.msra.mxu0 %v295
    %876 = vmatpush.msra.mxu0 %v294
    %877 = vmatpush.msra.mxu0 %v293
    %878 = vmatpush.msra.mxu0 %v292
    %879 = vmatpush.msra.mxu0 %v291
    %880 = vmatpush.msra.mxu0 %v290
    %881 = vmatpush.msra.mxu0 %v289
    %882 = vmatpush.msra.mxu0 %v288
    %883 = vmatpush.msra.mxu0 %v287
    %884 = vmatpush.msra.mxu0 %v286
    %885 = vmatpush.msra.mxu0 %v285
    %886 = vmatpush.msra.mxu0 %v284
    %887 = vmatmul.f32.gmra.mxu0 %v510
    %v888 = vpop.f32.mrf.mxu0
    %v889 = vadd.f32 %v869, %v888
    %890 = vdwg.mxu0
    %891 = vmatpush.msra.mxu0 %v315
    %892 = vmatpush.msra.mxu0 %v314
    %893 = vmatpush.msra.mxu0 %v313
    %894 = vmatpush.msra.mxu0 %v312
    %895 = vmatpush.msra.mxu0 %v311
    %896 = vmatpush.msra.mxu0 %v310
    %897 = vmatpush.msra.mxu0 %v309
    %898 = vmatpush.msra.mxu0 %v308
    %899 = vmatpush.msra.mxu0 %v307
    %900 = vmatpush.msra.mxu0 %v306
    %901 = vmatpush.msra.mxu0 %v305
    %902 = vmatpush.msra.mxu0 %v304
    %903 = vmatpush.msra.mxu0 %v303
    %904 = vmatpush.msra.mxu0 %v302
    %905 = vmatpush.msra.mxu0 %v301
    %906 = vmatpush.msra.mxu0 %v300
    %907 = vmatmul.f32.gmra.mxu0 %v511
    %v908 = vpop.f32.mrf.mxu0
    %v909 = vadd.f32 %v889, %v908
    %910 = vdwg.mxu0
    %911 = vmatpush.msra.mxu0 %v331
    %912 = vmatpush.msra.mxu0 %v330
    %913 = vmatpush.msra.mxu0 %v329
    %914 = vmatpush.msra.mxu0 %v328
    %915 = vmatpush.msra.mxu0 %v327
    %916 = vmatpush.msra.mxu0 %v326
    %917 = vmatpush.msra.mxu0 %v325
    %918 = vmatpush.msra.mxu0 %v324
    %919 = vmatpush.msra.mxu0 %v323
    %920 = vmatpush.msra.mxu0 %v322
    %921 = vmatpush.msra.mxu0 %v321
    %922 = vmatpush.msra.mxu0 %v320
    %923 = vmatpush.msra.mxu0 %v319
    %924 = vmatpush.msra.mxu0 %v318
    %925 = vmatpush.msra.mxu0 %v317
    %926 = vmatpush.msra.mxu0 %v316
    %927 = vmatmul.f32.gmra.mxu0 %v512
    %v928 = vpop.f32.mrf.mxu0
    %v929 = vadd.f32 %v909, %v928
    %930 = vdwg.mxu0
    %931 = vmatpush.msra.mxu0 %v347
    %932 = vmatpush.msra.mxu0 %v346
    %933 = vmatpush.msra.mxu0 %v345
    %934 = vmatpush.msra.mxu0 %v344
    %935 = vmatpush.msra.mxu0 %v343
    %936 = vmatpush.msra.mxu0 %v342
    %937 = vmatpush.msra.mxu0 %v341
    %938 = vmatpush.msra.mxu0 %v340
    %939 = vmatpush.msra.mxu0 %v339
    %940 = vmatpush.msra.mxu0 %v338
    %941 = vmatpush.msra.mxu0 %v337
    %942 = vmatpush.msra.mxu0 %v336
    %943 = vmatpush.msra.mxu0 %v335
    %944 = vmatpush.msra.mxu0 %v334
    %945 = vmatpush.msra.mxu0 %v333
    %946 = vmatpush.msra.mxu0 %v332
    %947 = vmatmul.f32.gmra.mxu0 %v513
    %v948 = vpop.f32.mrf.mxu0
    %v949 = vadd.f32 %v929, %v948
    %950 = vdwg.mxu0
    %951 = vmatpush.msra.mxu0 %v363
    %952 = vmatpush.msra.mxu0 %v362
    %953 = vmatpush.msra.mxu0 %v361
    %954 = vmatpush.msra.mxu0 %v360
    %955 = vmatpush.msra.mxu0 %v359
    %956 = vmatpush.msra.mxu0 %v358
    %957 = vmatpush.msra.mxu0 %v357
    %958 = vmatpush.msra.mxu0 %v356
    %959 = vmatpush.msra.mxu0 %v355
    %960 = vmatpush.msra.mxu0 %v354
    %961 = vmatpush.msra.mxu0 %v353
    %962 = vmatpush.msra.mxu0 %v352
    %963 = vmatpush.msra.mxu0 %v351
    %964 = vmatpush.msra.mxu0 %v350
    %965 = vmatpush.msra.mxu0 %v349
    %966 = vmatpush.msra.mxu0 %v348
    %967 = vmatmul.f32.gmra.mxu0 %v514
    %v968 = vpop.f32.mrf.mxu0
    %v969 = vadd.f32 %v949, %v968
    %970 = vdwg.mxu0
    %971 = vmatpush.msra.mxu0 %v379
    %972 = vmatpush.msra.mxu0 %v378
    %973 = vmatpush.msra.mxu0 %v377
    %974 = vmatpush.msra.mxu0 %v376
    %975 = vmatpush.msra.mxu0 %v375
    %976 = vmatpush.msra.mxu0 %v374
    %977 = vmatpush.msra.mxu0 %v373
    %978 = vmatpush.msra.mxu0 %v372
    %979 = vmatpush.msra.mxu0 %v371
    %980 = vmatpush.msra.mxu0 %v370
    %981 = vmatpush.msra.mxu0 %v369
    %982 = vmatpush.msra.mxu0 %v368
    %983 = vmatpush.msra.mxu0 %v367
    %984 = vmatpush.msra.mxu0 %v366
    %985 = vmatpush.msra.mxu0 %v365
    %986 = vmatpush.msra.mxu0 %v364
    %987 = vmatmul.f32.gmra.mxu0 %v515
    %v988 = vpop.f32.mrf.mxu0
    %v989 = vadd.f32 %v969, %v988
    %990 = vdwg.mxu0
    %991 = vmatpush.msra.mxu0 %v395
    %992 = vmatpush.msra.mxu0 %v394
    %993 = vmatpush.msra.mxu0 %v393
    %994 = vmatpush.msra.mxu0 %v392
    %995 = vmatpush.msra.mxu0 %v391
    %996 = vmatpush.msra.mxu0 %v390
    %997 = vmatpush.msra.mxu0 %v389
    %998 = vmatpush.msra.mxu0 %v388
    %999 = vmatpush.msra.mxu0 %v387
    %1000 = vmatpush.msra.mxu0 %v386
    %1001 = vmatpush.msra.mxu0 %v385
    %1002 = vmatpush.msra.mxu0 %v384
    %1003 = vmatpush.msra.mxu0 %v383
    %1004 = vmatpush.msra.mxu0 %v382
    %1005 = vmatpush.msra.mxu0 %v381
    %1006 = vmatpush.msra.mxu0 %v380
    %1007 = vmatmul.f32.gmra.mxu0 %v516
    %v1008 = vpop.f32.mrf.mxu0
    %v1009 = vadd.f32 %v989, %v1008
    %1010 = vdwg.mxu0
    %1011 = vmatpush.msra.mxu0 %v411
    %1012 = vmatpush.msra.mxu0 %v410
    %1013 = vmatpush.msra.mxu0 %v409
    %1014 = vmatpush.msra.mxu0 %v408
    %1015 = vmatpush.msra.mxu0 %v407
    %1016 = vmatpush.msra.mxu0 %v406
    %1017 = vmatpush.msra.mxu0 %v405
    %1018 = vmatpush.msra.mxu0 %v404
    %1019 = vmatpush.msra.mxu0 %v403
    %1020 = vmatpush.msra.mxu0 %v402
    %1021 = vmatpush.msra.mxu0 %v401
    %1022 = vmatpush.msra.mxu0 %v400
    %1023 = vmatpush.msra.mxu0 %v399
    %1024 = vmatpush.msra.mxu0 %v398
    %1025 = vmatpush.msra.mxu0 %v397
    %1026 = vmatpush.msra.mxu0 %v396
    %1027 = vmatmul.f32.gmra.mxu0 %v517
    %v1028 = vpop.f32.mrf.mxu0
    %v1029 = vadd.f32 %v1009, %v1028
    %1030 = vdwg.mxu0
    %1031 = vmatpush.msra.mxu0 %v427
    %1032 = vmatpush.msra.mxu0 %v426
    %1033 = vmatpush.msra.mxu0 %v425
    %1034 = vmatpush.msra.mxu0 %v424
    %1035 = vmatpush.msra.mxu0 %v423
    %1036 = vmatpush.msra.mxu0 %v422
    %1037 = vmatpush.msra.mxu0 %v421
    %1038 = vmatpush.msra.mxu0 %v420
    %1039 = vmatpush.msra.mxu0 %v419
    %1040 = vmatpush.msra.mxu0 %v418
    %1041 = vmatpush.msra.mxu0 %v417
    %1042 = vmatpush.msra.mxu0 %v416
    %1043 = vmatpush.msra.mxu0 %v415
    %1044 = vmatpush.msra.mxu0 %v414
    %1045 = vmatpush.msra.mxu0 %v413
    %1046 = vmatpush.msra.mxu0 %v412
    %1047 = vmatmul.f32.gmra.mxu0 %v519
    %v1048 = vpop.f32.mrf.mxu0
    %v1049 = vadd.f32 %v1029, %v1048
    %1050 = vdwg.mxu0
    %1051 = vmatpush.msra.mxu0 %v443
    %1052 = vmatpush.msra.mxu0 %v442
    %1053 = vmatpush.msra.mxu0 %v441
    %1054 = vmatpush.msra.mxu0 %v440
    %1055 = vmatpush.msra.mxu0 %v439
    %1056 = vmatpush.msra.mxu0 %v438
    %1057 = vmatpush.msra.mxu0 %v437
    %1058 = vmatpush.msra.mxu0 %v436
    %1059 = vmatpush.msra.mxu0 %v435
    %1060 = vmatpush.msra.mxu0 %v434
    %1061 = vmatpush.msra.mxu0 %v433
    %1062 = vmatpush.msra.mxu0 %v432
    %1063 = vmatpush.msra.mxu0 %v431
    %1064 = vmatpush.msra.mxu0 %v430
    %1065 = vmatpush.msra.mxu0 %v429
    %1066 = vmatpush.msra.mxu0 %v428
    %1067 = vmatmul.f32.gmra.mxu0 %v520
    %v1068 = vpop.f32.mrf.mxu0
    %v1069 = vadd.f32 %v1049, %v1068
    %1070 = vdwg.mxu0
    %1071 = vmatpush.msra.mxu0 %v459
    %1072 = vmatpush.msra.mxu0 %v458
    %1073 = vmatpush.msra.mxu0 %v457
    %1074 = vmatpush.msra.mxu0 %v456
    %1075 = vmatpush.msra.mxu0 %v455
    %1076 = vmatpush.msra.mxu0 %v454
    %1077 = vmatpush.msra.mxu0 %v453
    %1078 = vmatpush.msra.mxu0 %v452
    %1079 = vmatpush.msra.mxu0 %v451
    %1080 = vmatpush.msra.mxu0 %v450
    %1081 = vmatpush.msra.mxu0 %v449
    %1082 = vmatpush.msra.mxu0 %v448
    %1083 = vmatpush.msra.mxu0 %v447
    %1084 = vmatpush.msra.mxu0 %v446
    %1085 = vmatpush.msra.mxu0 %v445
    %1086 = vmatpush.msra.mxu0 %v444
    %1087 = vmatmul.f32.gmra.mxu0 %v521
    %v1088 = vpop.f32.mrf.mxu0
    %v1089 = vadd.f32 %v1069, %v1088
    %1090 = vdwg.mxu0
    %1091 = vmatpush.msra.mxu0 %v475
    %1092 = vmatpush.msra.mxu0 %v474
    %1093 = vmatpush.msra.mxu0 %v473
    %1094 = vmatpush.msra.mxu0 %v472
    %1095 = vmatpush.msra.mxu0 %v471
    %1096 = vmatpush.msra.mxu0 %v470
    %1097 = vmatpush.msra.mxu0 %v469
    %1098 = vmatpush.msra.mxu0 %v468
    %1099 = vmatpush.msra.mxu0 %v467
    %1100 = vmatpush.msra.mxu0 %v466
    %1101 = vmatpush.msra.mxu0 %v465
    %1102 = vmatpush.msra.mxu0 %v464
    %1103 = vmatpush.msra.mxu0 %v463
    %1104 = vmatpush.msra.mxu0 %v462
    %1105 = vmatpush.msra.mxu0 %v461
    %1106 = vmatpush.msra.mxu0 %v460
    %1107 = vmatmul.f32.gmra.mxu0 %v522
    %v1108 = vpop.f32.mrf.mxu0
    %v1109 = vadd.f32 %v1089, %v1108
    %1110 = vdwg.mxu0
    %v1111 = vmax.f32 %v1109, 0.0
    %v1112 = vld [vmem:[%s3] sm:$0xff]
    %v1113 = vld [vmem:[%s3 + $0x8] sm:$0xff]
    %v1114 = vld [vmem:[%s3 + $0x10] sm:$0xff]
    %v1115 = vld [vmem:[%s3 + $0x18] sm:$0xff]
    %v1116 = vld [vmem:[%s3 + $0x20] sm:$0xff]
    %v1117 = vld [vmem:[%s3 + $0x28] sm:$0xff]
    %v1118 = vld [vmem:[%s3 + $0x30] sm:$0xff]
    %v1119 = vld [vmem:[%s3 + $0x38] sm:$0xff]
    %v1120 = vld [vmem:[%s3 + $0x40] sm:$0xff]
    %v1121 = vld [vmem:[%s3 + $0x48] sm:$0xff]
    %v1122 = vld [vmem:[%s3 + $0x50] sm:$0xff]
    %v1123 = vld [vmem:[%s3 + $0x58] sm:$0xff]
    %v1124 = vld [vmem:[%s3 + $0x60] sm:$0xff]
    %v1125 = vld [vmem:[%s3 + $0x68] sm:$0xff]
    %v1126 = vld [vmem:[%s3 + $0x70] sm:$0xff]
    %v1127 = vld [vmem:[%s3 + $0x78] sm:$0xff]
    %v1128 = vld [vmem:[%s4] sm:$0x1]
    %v1130 = vperm.slane %v1128, 0
    %1132 = vmatpush.msra.mxu0 %v1127
    %1133 = vmatpush.msra.mxu0 %v1126
    %1134 = vmatpush.msra.mxu0 %v1125
    %1135 = vmatpush.msra.mxu0 %v1124
    %1136 = vmatpush.msra.mxu0 %v1123
    %1137 = vmatpush.msra.mxu0 %v1122
    %1138 = vmatpush.msra.mxu0 %v1121
    %1139 = vmatpush.msra.mxu0 %v1120
    %1140 = vmatpush.msra.mxu0 %v1119
    %1141 = vmatpush.msra.mxu0 %v1118
    %1142 = vmatpush.msra.mxu0 %v1117
    %1143 = vmatpush.msra.mxu0 %v1116
    %1144 = vmatpush.msra.mxu0 %v1115
    %1145 = vmatpush.msra.mxu0 %v1114
    %1146 = vmatpush.msra.mxu0 %v1113
    %1147 = vmatpush.msra.mxu0 %v1112
    %1148 = vmatmul.f32.gmra.mxu0 %v1111
    %v1149 = vpop.f32.mrf.mxu0
    %v1150 = vadd.f32 %v1130, %v1149
    %1151 = vdwg.mxu0
    %vm1152 = vcmask 74752
    %1153 = vst.msk [vmem:[#allocation2] sm:$0x3] %vm1152, %v1150
    // Predicated region
    $region22: #{cnn_forward.5} parent=1 // pred_check
      _
    $region23: #{cnn_forward.5} parent=1 // pred_check_branch
      %1155 = sbr.rel (0) target = $region25
    $region24: #{cnn_forward.5} parent=1 // pred_region
      %1157 = vsyncadd [#allocation3], 0
      %s1159 = sshll.u32 [#allocation2], 4
      %s1160 = int_to_ptr.vmem [resolvable:$true] %s1159
      %s1161 = sshll.u32 %s5, 4
      %s1162 = int_to_ptr.hbm [resolvable:$true] %s1161
      %1164 = dma.vmem_to_hbm [thread:$0]  %s1160, 32, %s1162, [#allocation3]
    $region25: #{cnn_forward.5} parent=1 // pred_fallthru
      _
    // Predicated region
    $region26: #{cnn_forward.5} parent=1 // pred_check
      _
    $region27: #{cnn_forward.5} parent=1 // pred_check_branch
      %1166 = sbr.rel (0) target = $region29
    $region28: #{cnn_forward.5} parent=1 // pred_region
      %1168 = dma.done [#allocation3], 32
    $region29: #{cnn_forward.5} parent=1 // pred_fallthru
      _
    %1169 = vsyncpa [#allocation3], 1

</llo_original>
